<compile_context>
chip_gen: v5e
topology: v5e:2x2
jax: 0.10.0
libtpu: 0.0.40
codegen_flags: <defaults>
</compile_context>

<pallas_src>
import functools

import jax
import jax.numpy as jnp
from jax.experimental import pallas as pl
from jax.experimental.pallas import tpu as pltpu
from jax.scipy.linalg import block_diag

EPS = 1e-5
HID = 16  # radial-MLP hidden width (nn.Linear(c_in + 1, 16))


# ----------------------------------------------------------------------------
# host-side helpers
# ----------------------------------------------------------------------------
def _ln(h, g, b):
    mu = jnp.mean(h, axis=-1, keepdims=True)
    var = jnp.mean((h - mu) ** 2, axis=-1, keepdims=True)
    return (h - mu) * jax.lax.rsqrt(var + EPS) * g + b


def _block_avg(n_blocks, blk):
    """Block-diagonal averaging matrix -> exact per-block LayerNorm statistics."""
    return jnp.kron(jnp.eye(n_blocks, dtype=jnp.float32),
                    jnp.ones((blk, blk), jnp.float32) / blk)


def _stack_radial_T(plist):
    """Stack radial MLPs block-diagonally (transposed layout: hidden on rows,
    edges on lanes).  LayerNorm statistics are produced with a project-down /
    expand-up matmul pair (avg_dn, expand) rather than a dense block matrix."""
    n = len(plist)
    w1t = jnp.concatenate([p[0].T for p in plist], axis=0)      # (16n, c_in+1)
    b1 = jnp.concatenate([p[1].T for p in plist], axis=0)       # (16n, 1)
    g1 = jnp.concatenate([p[2].T for p in plist], axis=0)
    be1 = jnp.concatenate([p[3].T for p in plist], axis=0)
    w2t = block_diag(*[p[4].T for p in plist])                  # (16n, 16n)
    b2 = jnp.concatenate([p[5].T for p in plist], axis=0)
    g2 = jnp.concatenate([p[6].T for p in plist], axis=0)
    be2 = jnp.concatenate([p[7].T for p in plist], axis=0)
    w3t = block_diag(*[p[8].T for p in plist])                  # (R_tot, 16n)
    b3 = jnp.concatenate([p[9].T for p in plist], axis=0)       # (R_tot, 1)
    avg_dn = jnp.kron(jnp.eye(n, dtype=jnp.float32),
                      jnp.ones((1, HID), jnp.float32) / HID)    # (n, 16n)
    expand = jnp.kron(jnp.eye(n, dtype=jnp.float32),
                      jnp.ones((HID, 1), jnp.float32))          # (16n, n)
    return (avg_dn, expand, w1t, b1, g1, be1, w2t, b2, g2, be2, w3t, b3)


def _stack_si(plist, blk):
    """Stack the self-interaction MLPs block-diagonally (standard layout)."""
    w1 = block_diag(*[p[0] for p in plist])
    b1 = jnp.concatenate([p[1] for p in plist], axis=1)
    g1 = jnp.concatenate([p[2] for p in plist], axis=1)
    be1 = jnp.concatenate([p[3] for p in plist], axis=1)
    w2 = block_diag(*[p[4] for p in plist])
    b2 = jnp.concatenate([p[5] for p in plist], axis=1)
    g2 = jnp.concatenate([p[6] for p in plist], axis=1)
    be2 = jnp.concatenate([p[7] for p in plist], axis=1)
    w3 = block_diag(*[p[8] for p in plist])
    b3 = jnp.concatenate([p[9] for p in plist], axis=1)
    avg = _block_avg(len(plist), blk)
    return (avg, w1, b1, g1, be1, w2, b2, g2, be2, w3, b3)


def _pick_batch(n):
    """Destinations processed per grid step (must divide N)."""
    for d in (16, 8, 4, 2):
        if n % d == 0:
            return d
    return 1


# ----------------------------------------------------------------------------
# in-kernel helpers
# ----------------------------------------------------------------------------
def _ln_rows(h, avg_dn, expand, g, b):
    """LayerNorm over 16-row head blocks of h (hidden on rows, edges on lanes).
    Statistics via (n_heads, 16n) down-projection + (16n, n_heads) expansion."""
    mu = jnp.dot(expand, jnp.dot(avg_dn, h, preferred_element_type=jnp.float32),
                 preferred_element_type=jnp.float32)
    d = h - mu
    var = jnp.dot(expand, jnp.dot(avg_dn, d * d, preferred_element_type=jnp.float32),
                  preferred_element_type=jnp.float32)
    return d * jax.lax.rsqrt(var + EPS) * g + b


def _ln_cols(h, avg, g, b):
    """LayerNorm over column-blocks of h (hidden on lanes, nodes on sublanes)."""
    mu = jnp.dot(h, avg, preferred_element_type=jnp.float32)
    d = h - mu
    var = jnp.dot(d * d, avg, preferred_element_type=jnp.float32)
    return d * jax.lax.rsqrt(var + EPS) * g + b


# ----------------------------------------------------------------------------
# fused edge kernel: merged radial chain + attention + messages + reduction
# (one grid step = D destinations x N sources = D*N edges on lanes)
# ----------------------------------------------------------------------------
def gconv_edge_kernel(dist_ref, wj_ref, fdt_ref,
                      fsrc_ref, sel_ref, segt_ref, wqb_ref,
                      avg_ref, exp_ref, w1_ref, b1_ref, g1_ref, be1_ref,
                      w2_ref, b2_ref, g2_ref, be2_ref, w3_ref, b3_ref,
                      out_ref, *,
                      N, D, d_in, d_out, c_in, c_out,
                      f_off, wj_off, attn_off, val_off, q_off, out_off,
                      Ctot, Wrows, R_tot, Cout_tot):
    dmin = min(d_in, d_out)
    DN = D * N
    Qrows = c_out * sum(2 * l + 1 for l in range(dmin + 1))

    dist = dist_ref[0]                    # (1, DN)     edge distances, dst-major
    wjt = wj_ref[0]                       # (Wrows, DN) Wigner bases, channel-major
    fdT = fdt_ref[0]                      # (Ctot, D)   destination features
    fsrc = fsrc_ref[...]                  # (Ctot, DN)  source features (tiled)
    sel = sel_ref[...]                    # (D, DN)     per-destination selector
    segT = segt_ref[...]                  # (DN, D)     = sel.T

    # broadcast destination features / queries across the N source lanes (MXU)
    fd = jnp.dot(fdT, sel, preferred_element_type=jnp.float32)          # (Ctot, DN)
    q = jnp.dot(wqb_ref[...], fdT, preferred_element_type=jnp.float32)  # (Qrows, D)
    qE = jnp.dot(q, sel, preferred_element_type=jnp.float32)            # (Qrows, DN)

    fsrc_rows = [fsrc[r:r + 1, :] for r in range(Ctot)]
    fd_rows = [fd[r:r + 1, :] for r in range(Ctot)]

    # ---- merged radial chain (attention + value heads, one 3-matmul chain) --
    x_rows = [fd_rows[i] * fsrc_rows[i] for i in range(c_in)] + [dist]
    w1t = w1_ref[...]
    h = b1_ref[...] + w1t[:, 0:1] * x_rows[0]
    for c in range(1, c_in + 1):
        h = h + w1t[:, c:c + 1] * x_rows[c]
    h = jnp.maximum(
        _ln_rows(h, avg_ref[...], exp_ref[...], g1_ref[...], be1_ref[...]), 0.0)
    h = jnp.dot(w2_ref[...], h, preferred_element_type=jnp.float32) + b2_ref[...]
    h = jnp.maximum(
        _ln_rows(h, avg_ref[...], exp_ref[...], g2_ref[...], be2_ref[...]), 0.0)
    R = jnp.dot(w3_ref[...], h, preferred_element_type=jnp.float32) + b3_ref[...]

    R_rows = [R[r:r + 1, :] for r in range(R_tot)]
    wjt_rows = [wjt[r:r + 1, :] for r in range(Wrows)]
    q_rows = [qE[r:r + 1, :] for r in range(Qrows)]

    # ---- key / value contractions (CSE of sum_km wj*f across c_out) ---------
    macc = [jnp.zeros((1, DN), jnp.float32) for _ in range(Cout_tot)]
    kacc = [jnp.zeros((1, DN), jnp.float32) for _ in range(Qrows)]
    for k in range(d_in + 1):
        K = 2 * k + 1
        fo = f_off[k]
        for l in range(d_out + 1):
            L = 2 * l + 1
            J = 2 * min(k, l) + 1
            wo = wj_off[(k, l)]
            vo = val_off[(k, l)]
            attn = l <= dmin
            ao = attn_off[(l, k)] if attn else 0
            for j in range(J):
                sv_tab, sk_tab = [], []
                for lm in range(L):
                    wr = [wjt_rows[wo + (j * L + lm) * K + km] for km in range(K)]
                    sv_i, sk_i = [], []
                    for i in range(c_in):
                        sv = wr[0] * fsrc_rows[fo + i * K]
                        for km in range(1, K):
                            sv = sv + wr[km] * fsrc_rows[fo + i * K + km]
                        sv_i.append(sv)
                        if attn:
                            sk = wr[0] * fd_rows[fo + i * K]
                            for km in range(1, K):
                                sk = sk + wr[km] * fd_rows[fo + i * K + km]
                            sk_i.append(sk)
                    sv_tab.append(sv_i)
                    sk_tab.append(sk_i)
                for o in range(c_out):
                    for i in range(c_in):
                        rv = R_rows[vo + (j * c_out + o) * c_in + i]
                        ra = R_rows[ao + (j * c_out + o) * c_in + i] if attn else None
                        for lm in range(L):
                            col = out_off[l] + o * L + lm
                            macc[col] = macc[col] + rv * sv_tab[lm][i]
                            if attn:
                                qc = q_off[l] + o * L + lm
                                kacc[qc] = kacc[qc] + ra * sk_tab[lm][i]

    # q.k dot: elementwise product + row-sum via a ones matvec (MXU)
    kmat = jnp.concatenate(kacc, axis=0)                                # (Qrows, DN)
    dotv = jnp.dot(jnp.ones((1, Qrows), jnp.float32), qE * kmat,
                   preferred_element_type=jnp.float32)                  # (1, DN)

    # ---- per-destination softmax over the N sources --------------------------
    m = jnp.concatenate(
        [jnp.max(dotv[:, d * N:(d + 1) * N], axis=1, keepdims=True)
         for d in range(D)], axis=1)                                    # (1, D)
    e = jnp.exp(dotv - jnp.dot(m, sel, preferred_element_type=jnp.float32))
    ssum = jnp.dot(e, segT, preferred_element_type=jnp.float32)         # (1, D)
    inv = pl.reciprocal(ssum, approx=True)
    inv = inv * (2.0 - ssum * inv)            # one Newton step -> near-exact
    a = e * jnp.dot(inv, sel, preferred_element_type=jnp.float32)       # (1, DN)

    # ---- attention-weighted reduction over sources: one MXU matvec ----------
    msg = jnp.concatenate(macc, axis=0)                                 # (Cout_tot, DN)
    out_ref[0] = jnp.dot(msg * a, segT,
                         preferred_element_type=jnp.float32)            # (Cout_tot, D)


# ----------------------------------------------------------------------------
# fused self-interaction kernel: gram -> stacked MLPs -> per-node linear
# ----------------------------------------------------------------------------
def gconv_si_kernel(f_ref, avg, w1, b1, g1, be1, w2, b2, g2, be2, w3, b3,
                    out_ref, *, dmin, c_in, c_out):
    fl = f_ref[...]                                   # (TN, Cin_lo)
    S = c_in * c_out
    off = [c_in * sum(2 * t + 1 for t in range(l)) for l in range(dmin + 1)]

    cols = []                                         # gram: 'ncm,ndm->ncd'
    for l in range(dmin + 1):
        M = 2 * l + 1
        for c in range(c_in):
            fc = fl[:, off[l] + c * M: off[l] + (c + 1) * M]
            for d in range(c_in):
                fdv = fl[:, off[l] + d * M: off[l] + (d + 1) * M]
                cols.append(jnp.sum(fc * fdv, axis=1, keepdims=True))
    x = jnp.concatenate(cols, axis=1)                 # (TN, (dmin+1)*c_in^2)

    h = jnp.dot(x, w1[...], preferred_element_type=jnp.float32) + b1[...]
    h = jnp.maximum(_ln_cols(h, avg[...], g1[...], be1[...]), 0.0)
    h = jnp.dot(h, w2[...], preferred_element_type=jnp.float32) + b2[...]
    h = jnp.maximum(_ln_cols(h, avg[...], g2[...], be2[...]), 0.0)
    r = jnp.dot(h, w3[...], preferred_element_type=jnp.float32) + b3[...]

    outs = []                                         # 'noi,nim->nom'
    for l in range(dmin + 1):
        M = 2 * l + 1
        for o in range(c_out):
            acc = jnp.zeros((fl.shape[0], M), jnp.float32)
            for i in range(c_in):
                col = l * S + o * c_in + i
                acc = acc + r[:, col:col + 1] * fl[:, off[l] + i * M:
                                                   off[l] + (i + 1) * M]
            outs.append(acc)
    out_ref[...] = jnp.concatenate(outs, axis=1)


# ----------------------------------------------------------------------------
# GConv forward (Pallas path)
# ----------------------------------------------------------------------------
def gconv_pallas(params, f, wj, dist, *, N, d_in, d_out, c_in, c_out):
    dmin = min(d_in, d_out)
    D = _pick_batch(N)
    DN = D * N
    G = N // D

    # node features packed once (no O(N^2) src/dst feature materialisation)
    f_off, o = {}, 0
    for k in range(d_in + 1):
        f_off[k] = o
        o += c_in * (2 * k + 1)
    Ctot = o
    f_nodes = jnp.concatenate([f[k].reshape(N, -1) for k in range(d_in + 1)], axis=1)
    f_nodesT = jnp.transpose(f_nodes)                               # (Ctot, N)

    fsrc_flat = jnp.tile(f_nodesT, (1, D))                          # (Ctot, DN)
    fdT_h = f_nodesT.reshape(Ctot, G, D).transpose(1, 0, 2)         # (G, Ctot, D)
    dist_h = dist.reshape(G, 1, DN)                                 # dst-major

    sel = jnp.kron(jnp.eye(D, dtype=jnp.float32),
                   jnp.ones((1, N), jnp.float32))                   # (D, DN)
    segT = jnp.transpose(sel)                                       # (DN, D)

    # Wigner bases, channel-major with the (D dst, N src) edges on lanes
    wj_off, blocks, o = {}, [], 0
    for k in range(d_in + 1):
        for l in range(d_out + 1):
            J, L, K = 2 * min(k, l) + 1, 2 * l + 1, 2 * k + 1
            wj_off[(k, l)] = o
            o += J * L * K
            b = wj[(k, l)].reshape(N, N, J * L * K).transpose(0, 2, 1)
            b = b.reshape(G, D, J * L * K, N).transpose(0, 2, 1, 3)
            blocks.append(b.reshape(G, J * L * K, DN))
    Wrows = o
    wj_h = jnp.concatenate(blocks, axis=1)                          # (G, Wrows, DN)

    # ONE merged (attention + value) block-diagonal radial stack
    attn_off, heads, o = {}, [], 0
    for l in range(dmin + 1):
        for k in range(d_in + 1):
            attn_off[(l, k)] = o
            o += (2 * min(k, l) + 1) * c_out * c_in
            heads.append(params['attn_radial'][(l, k)])
    val_off = {}
    for k in range(d_in + 1):
        for l in range(d_out + 1):
            val_off[(k, l)] = o
            o += (2 * min(k, l) + 1) * c_out * c_in
            heads.append(params['v_radial'][(k, l)])
    R_tot = o
    radial_stack = _stack_radial_T(heads)

    # dense scatter of wq into (Qrows, Ctot): q = wq_big @ f_dst (MXU in-kernel)
    q_off = {l: c_out * sum(2 * t + 1 for t in range(l)) for l in range(dmin + 1)}
    Qrows = c_out * sum(2 * l + 1 for l in range(dmin + 1))
    wq_big = jnp.zeros((Qrows, Ctot), jnp.float32)
    for l in range(dmin + 1):
        L = 2 * l + 1
        for oc in range(c_out):
            for i in range(c_in):
                for lm in range(L):
                    wq_big = wq_big.at[q_off[l] + oc * L + lm,
                                       f_off[l] + i * L + lm].set(
                        params['wq'][l][oc, i])

    out_off = {l: c_out * sum(2 * t + 1 for t in range(l)) for l in range(d_out + 1)}
    Cout_tot = c_out * sum(2 * l + 1 for l in range(d_out + 1))

    kern = functools.partial(
        gconv_edge_kernel, N=N, D=D, d_in=d_in, d_out=d_out, c_in=c_in, c_out=c_out,
        f_off=f_off, wj_off=wj_off, attn_off=attn_off, val_off=val_off,
        q_off=q_off, out_off=out_off, Ctot=Ctot, Wrows=Wrows, R_tot=R_tot,
        Cout_tot=Cout_tot)

    resident = [fsrc_flat, sel, segT, wq_big, *radial_stack]
    out3 = pl.pallas_call(
        kern,
        out_shape=jax.ShapeDtypeStruct((G, Cout_tot, D), jnp.float32),
        grid=(G,),
        in_specs=[pl.BlockSpec((1, 1, DN), lambda b: (b, 0, 0)),        # dist
                  pl.BlockSpec((1, Wrows, DN), lambda b: (b, 0, 0)),    # wj bases
                  pl.BlockSpec((1, Ctot, D), lambda b: (b, 0, 0))]      # dst feats
                 + [pl.BlockSpec(memory_space=pltpu.MemorySpace.VMEM)
                    for _ in resident],
        out_specs=pl.BlockSpec((1, Cout_tot, D), lambda b: (b, 0, 0)),
        compiler_params=pltpu.CompilerParams(
            dimension_semantics=("parallel",),
            vmem_limit_bytes=32 * 1024 * 1024),
    )(dist_h, wj_h, fdT_h, *resident)
    out = out3.transpose(0, 2, 1).reshape(N, Cout_tot)

    # ---------------- self-interaction ----------------
    Cin_lo = c_in * sum(2 * l + 1 for l in range(dmin + 1))
    Cout_lo = c_out * sum(2 * l + 1 for l in range(dmin + 1))
    f_lo = f_nodes[:, :Cin_lo]
    si_stack = _stack_si([params['si'][l] for l in range(dmin + 1)], c_in * c_out)

    if N <= 512:
        TN = N
    else:
        TN = next((t for t in (512, 256, 128, 64, 32, 16, 8) if N % t == 0), N)

    si_kern = functools.partial(gconv_si_kernel, dmin=dmin, c_in=c_in, c_out=c_out)
    si_out = pl.pallas_call(
        si_kern,
        out_shape=jax.ShapeDtypeStruct((N, Cout_lo), jnp.float32),
        grid=(N // TN,),
        in_specs=[pl.BlockSpec((TN, Cin_lo), lambda i: (i, 0))]
                 + [pl.BlockSpec(memory_space=pltpu.MemorySpace.VMEM)
                    for _ in range(len(si_stack))],
        out_specs=pl.BlockSpec((TN, Cout_lo), lambda i: (i, 0)),
        compiler_params=pltpu.CompilerParams(
            dimension_semantics=("parallel",),
            vmem_limit_bytes=32 * 1024 * 1024),
    )(f_lo, *si_stack)

    out = out.at[:, :Cout_lo].add(si_out)

    f_out, o = {}, 0
    for l in range(d_out + 1):
        w = c_out * (2 * l + 1)
        f_out[l] = out[:, o:o + w].reshape(N, c_out, 2 * l + 1)
        o += w
    return f_out


# ----------------------------------------------------------------------------
# Pure-JAX reference (mirrors the PyTorch einsums) for validation
# ----------------------------------------------------------------------------
def _mlp3_ref(x, p):
    w1, b1, g1, be1, w2, b2, g2, be2, w3, b3 = p
    h = jnp.maximum(_ln(x @ w1 + b1, g1, be1), 0.0)
    h = jnp.maximum(_ln(h @ w2 + b2, g2, be2), 0.0)
    return h @ w3 + b3


def gconv_reference(params, f, wj, dist, *, N, d_in, d_out, c_in, c_out):
    E = N * N
    src = jnp.tile(jnp.arange(N), N)
    dst = jnp.repeat(jnp.arange(N), N)
    dmin = min(d_in, d_out)
    zero = jnp.sum(f[0][src] * f[0][dst], axis=2)
    inp_vec = jnp.concatenate([zero, dist[:, None]], axis=1)

    q = jnp.concatenate([jnp.einsum('oi,nim->nom', params['wq'][k], f[k])
                         for k in range(dmin + 1)], axis=2)
    k_parts = []
    for l in range(dmin + 1):
        s = 0.0
        for k in range(d_in + 1):
            J = 2 * min(k, l) + 1
            R = _mlp3_ref(inp_vec, params['attn_radial'][(l, k)]).reshape(E, J, c_out, c_in)
            w = jnp.einsum('ejoi,ejlk->eoilk', R, wj[(k, l)])
            s = s + jnp.einsum('eoilk,eik->eol', w, f[k][dst])
        k_parts.append(s)
    kf = jnp.concatenate(k_parts, axis=2)
    dot = jnp.einsum('eol,eol->e', q[dst], kf)
    lse = jax.scipy.special.logsumexp(dot.reshape(N, N), axis=1)
    a = jnp.exp(dot - lse[dst])

    f_out = {}
    for l in range(d_out + 1):
        acc = 0.0
        for k in range(d_in + 1):
            J = 2 * min(k, l) + 1
            R = _mlp3_ref(inp_vec, params['v_radial'][(k, l)]).reshape(E, J, c_out, c_in)
            w = jnp.einsum('ejoi,ejlk->eoilk', R, wj[(k, l)])
            acc = acc + jnp.einsum('e,eoilk,eik->eol', a, w, f[k][src])
        f_out[l] = acc.reshape(N, N, c_out, 2 * l + 1).sum(axis=1)

    for l in range(dmin + 1):
        inner = jnp.einsum('ncm,ndm->ncd', f[l], f[l]).reshape(N, c_in * c_in)
        si_w = _mlp3_ref(inner, params['si'][l]).reshape(N, c_out, c_in)
        f_out[l] = f_out[l] + jnp.einsum('noi,nim->nom', si_w, f[l])
    return f_out


# ----------------------------------------------------------------------------
# Deterministic parameter construction
# ----------------------------------------------------------------------------
def xavier(key, fan_in, fan_out, shape=None):
    std = (2.0 / (fan_in + fan_out)) ** 0.5
    if shape is None:
        shape = (fan_in, fan_out)
    return std * jax.random.normal(key, shape, jnp.float32)


def linear_bias(key, fan_in, n_out):
    bound = 1.0 / (fan_in ** 0.5)
    return jax.random.uniform(key, (1, n_out), jnp.float32, -bound, bound)


def make_mlp3_params(key, d_in_feat, d_hidden, d_out_feat):
    ks = jax.random.split(key, 6)
    w1 = xavier(ks[0], d_in_feat, d_hidden)
    b1 = linear_bias(ks[1], d_in_feat, d_hidden)
    w2 = xavier(ks[2], d_hidden, d_hidden)
    b2 = linear_bias(ks[3], d_hidden, d_hidden)
    w3 = xavier(ks[4], d_hidden, d_out_feat)
    b3 = linear_bias(ks[5], d_hidden, d_out_feat)
    ones_h = jnp.ones((1, d_hidden), jnp.float32)
    zeros_h = jnp.zeros((1, d_hidden), jnp.float32)
    return (w1, b1, ones_h, zeros_h, w2, b2, ones_h, zeros_h, w3, b3)


# ----------------------------------------------------------------------------
if __name__ == "__main__":
    N, d_in, d_out, c_in, c_out = 8, 1, 1, 2, 2
    E = N * N
    dmin = min(d_in, d_out)
    key = jax.random.PRNGKey(0)

    def nk(*tags):
        k = key
        for t in tags:
            k = jax.random.fold_in(k, t)
        return k

    # Inputs: degree-k node features, edge distances, synthetic Wigner bases w_j.
    f = {k: jax.random.normal(nk(100, k), (N, c_in, 2 * k + 1), jnp.float32)
         for k in range(d_in + 1)}
    pos = jax.random.normal(nk(200), (N, 3), jnp.float32)
    src = jnp.tile(jnp.arange(N), N)
    dst = jnp.repeat(jnp.arange(N), N)
    dist = jnp.linalg.norm(pos[src] - pos[dst], axis=1)
    wj = {}
    for k in range(d_in + 1):
        for l in range(d_out + 1):
            J = 2 * min(k, l) + 1
            wj[(k, l)] = jax.random.normal(nk(300, k, l),
                                           (E, J, 2 * l + 1, 2 * k + 1), jnp.float32)

    params = {
        'wq': [xavier(nk(400, k), c_in, c_out, shape=(c_out, c_in))
               for k in range(d_in + 1)],
        'attn_radial': {(l, k): make_mlp3_params(nk(500, l, k), c_in + 1, 16,
                                                 (2 * min(k, l) + 1) * c_out * c_in)
                        for l in range(d_out + 1) for k in range(d_in + 1)},
        'v_radial': {(k, l): make_mlp3_params(nk(600, k, l), c_in + 1, 16,
                                              (2 * min(k, l) + 1) * c_out * c_in)
                     for k in range(d_in + 1) for l in range(d_out + 1)},
        'si': [make_mlp3_params(nk(700, l), c_in * c_in, c_in * c_out, c_in * c_out)
               for l in range(dmin + 1)],
    }

    out = gconv_pallas(params, f, wj, dist,
                       N=N, d_in=d_in, d_out=d_out, c_in=c_in, c_out=c_out)
    out = jax.block_until_ready(out)

    ref = gconv_reference(params, f, wj, dist,
                          N=N, d_in=d_in, d_out=d_out, c_in=c_in, c_out=c_out)
    for l in range(d_out + 1):
        assert out[l].shape == (N, c_out, 2 * l + 1)
        assert jnp.allclose(out[l], ref[l], atol=1e-3, rtol=1e-3), f"mismatch @ degree {l}"

    print("KERNEL_OK")
</pallas_src>

<mosaic_0001>
module attributes {stable_mosaic.version = 11 : i64} {
  func.func @gconv_edge_kernel(%arg0: i32, %arg1: memref<1x1x64xf32, #tpu.memory_space<vmem>>, %arg2: memref<1x34x64xf32, #tpu.memory_space<vmem>>, %arg3: memref<1x8x8xf32, #tpu.memory_space<vmem>>, %arg4: memref<8x64xf32, #tpu.memory_space<vmem>>, %arg5: memref<8x64xf32, #tpu.memory_space<vmem>>, %arg6: memref<64x8xf32, #tpu.memory_space<vmem>>, %arg7: memref<8x8xf32, #tpu.memory_space<vmem>>, %arg8: memref<8x128xf32, #tpu.memory_space<vmem>>, %arg9: memref<128x8xf32, #tpu.memory_space<vmem>>, %arg10: memref<128x3xf32, #tpu.memory_space<vmem>>, %arg11: memref<128x1xf32, #tpu.memory_space<vmem>>, %arg12: memref<128x1xf32, #tpu.memory_space<vmem>>, %arg13: memref<128x1xf32, #tpu.memory_space<vmem>>, %arg14: memref<128x128xf32, #tpu.memory_space<vmem>>, %arg15: memref<128x1xf32, #tpu.memory_space<vmem>>, %arg16: memref<128x1xf32, #tpu.memory_space<vmem>>, %arg17: memref<128x1xf32, #tpu.memory_space<vmem>>, %arg18: memref<48x128xf32, #tpu.memory_space<vmem>>, %arg19: memref<48x1xf32, #tpu.memory_space<vmem>>, %arg20: memref<1x8x8xf32, #tpu.memory_space<vmem>>) attributes {dimension_semantics = [#tpu.dimension_semantics<parallel>], iteration_bounds = array<i64: 1>, scalar_prefetch = 0 : i64, scratch_operands = 0 : i64, tpu.core_type = #tpu.core_type<tc>, window_params = [{transform_indices = @transform_0, window_bounds = array<i64: 1, 1, 64>}, {transform_indices = @transform_1, window_bounds = array<i64: 1, 34, 64>}, {transform_indices = @transform_2, window_bounds = array<i64: 1, 8, 8>}, {pipeline_mode = #tpu.pipeline_mode<synchronous>, transform_indices = @transform_3, window_bounds = array<i64: 8, 64>}, {pipeline_mode = #tpu.pipeline_mode<synchronous>, transform_indices = @transform_4, window_bounds = array<i64: 8, 64>}, {pipeline_mode = #tpu.pipeline_mode<synchronous>, transform_indices = @transform_5, window_bounds = array<i64: 64, 8>}, {pipeline_mode = #tpu.pipeline_mode<synchronous>, transform_indices = @transform_6, window_bounds = array<i64: 8, 8>}, {pipeline_mode = #tpu.pipeline_mode<synchronous>, transform_indices = @transform_7, window_bounds = array<i64: 8, 128>}, {pipeline_mode = #tpu.pipeline_mode<synchronous>, transform_indices = @transform_8, window_bounds = array<i64: 128, 8>}, {pipeline_mode = #tpu.pipeline_mode<synchronous>, transform_indices = @transform_9, window_bounds = array<i64: 128, 3>}, {pipeline_mode = #tpu.pipeline_mode<synchronous>, transform_indices = @transform_10, window_bounds = array<i64: 128, 1>}, {pipeline_mode = #tpu.pipeline_mode<synchronous>, transform_indices = @transform_11, window_bounds = array<i64: 128, 1>}, {pipeline_mode = #tpu.pipeline_mode<synchronous>, transform_indices = @transform_12, window_bounds = array<i64: 128, 1>}, {pipeline_mode = #tpu.pipeline_mode<synchronous>, transform_indices = @transform_13, window_bounds = array<i64: 128, 128>}, {pipeline_mode = #tpu.pipeline_mode<synchronous>, transform_indices = @transform_14, window_bounds = array<i64: 128, 1>}, {pipeline_mode = #tpu.pipeline_mode<synchronous>, transform_indices = @transform_15, window_bounds = array<i64: 128, 1>}, {pipeline_mode = #tpu.pipeline_mode<synchronous>, transform_indices = @transform_16, window_bounds = array<i64: 128, 1>}, {pipeline_mode = #tpu.pipeline_mode<synchronous>, transform_indices = @transform_17, window_bounds = array<i64: 48, 128>}, {pipeline_mode = #tpu.pipeline_mode<synchronous>, transform_indices = @transform_18, window_bounds = array<i64: 48, 1>}, {transform_indices = @transform_19, window_bounds = array<i64: 1, 8, 8>}]} {
    %c0 = arith.constant 0 : index
    %c0_0 = arith.constant 0 : index
    %c0_1 = arith.constant 0 : index
    %0 = vector.load %arg1[%c0, %c0_0, %c0_1] : memref<1x1x64xf32, #tpu.memory_space<vmem>>, vector<1x1x64xf32>
    %1 = vector.shape_cast %0 : vector<1x1x64xf32> to vector<1x64xf32>
    %c0_2 = arith.constant 0 : index
    %c0_3 = arith.constant 0 : index
    %c0_4 = arith.constant 0 : index
    %2 = vector.load %arg2[%c0_2, %c0_3, %c0_4] : memref<1x34x64xf32, #tpu.memory_space<vmem>>, vector<1x34x64xf32>
    %3 = vector.shape_cast %2 : vector<1x34x64xf32> to vector<34x64xf32>
    %c0_5 = arith.constant 0 : index
    %c0_6 = arith.constant 0 : index
    %c0_7 = arith.constant 0 : index
    %4 = vector.load %arg3[%c0_5, %c0_6, %c0_7] : memref<1x8x8xf32, #tpu.memory_space<vmem>>, vector<1x8x8xf32>
    %5 = vector.shape_cast %4 : vector<1x8x8xf32> to vector<8x8xf32>
    %c0_8 = arith.constant 0 : index
    %c0_9 = arith.constant 0 : index
    %6 = vector.load %arg4[%c0_8, %c0_9] : memref<8x64xf32, #tpu.memory_space<vmem>>, vector<8x64xf32>
    %c0_10 = arith.constant 0 : index
    %c0_11 = arith.constant 0 : index
    %7 = vector.load %arg5[%c0_10, %c0_11] : memref<8x64xf32, #tpu.memory_space<vmem>>, vector<8x64xf32>
    %c0_12 = arith.constant 0 : index
    %c0_13 = arith.constant 0 : index
    %8 = vector.load %arg6[%c0_12, %c0_13] : memref<64x8xf32, #tpu.memory_space<vmem>>, vector<64x8xf32>
    %cst = arith.constant dense<0.000000e+00> : vector<8x64xf32>
    %9 = tpu.matmul %5, %7, %cst {dimension_numbers = #tpu.dot_dimension_numbers<[1], [0], [0], [1], [0, 0, 1, 1], [], []>} : vector<8x8xf32>, vector<8x64xf32>, vector<8x64xf32> -> vector<8x64xf32>
    %c0_14 = arith.constant 0 : index
    %c0_15 = arith.constant 0 : index
    %10 = vector.load %arg7[%c0_14, %c0_15] : memref<8x8xf32, #tpu.memory_space<vmem>>, vector<8x8xf32>
    %cst_16 = arith.constant dense<0.000000e+00> : vector<8x8xf32>
    %11 = tpu.matmul %10, %5, %cst_16 {dimension_numbers = #tpu.dot_dimension_numbers<[1], [0], [0], [1], [0, 0, 1, 1], [], []>} : vector<8x8xf32>, vector<8x8xf32>, vector<8x8xf32> -> vector<8x8xf32>
    %cst_17 = arith.constant dense<0.000000e+00> : vector<8x64xf32>
    %12 = tpu.matmul %11, %7, %cst_17 {dimension_numbers = #tpu.dot_dimension_numbers<[1], [0], [0], [1], [0, 0, 1, 1], [], []>} : vector<8x8xf32>, vector<8x64xf32>, vector<8x64xf32> -> vector<8x64xf32>
    %13 = vector.extract_strided_slice %6 {offsets = [0, 0], sizes = [1, 64], strides = [1, 1]} : vector<8x64xf32> to vector<1x64xf32>
    %14 = vector.extract_strided_slice %6 {offsets = [1, 0], sizes = [1, 64], strides = [1, 1]} : vector<8x64xf32> to vector<1x64xf32>
    %15 = vector.extract_strided_slice %6 {offsets = [2, 0], sizes = [1, 64], strides = [1, 1]} : vector<8x64xf32> to vector<1x64xf32>
    %16 = vector.extract_strided_slice %6 {offsets = [3, 0], sizes = [1, 64], strides = [1, 1]} : vector<8x64xf32> to vector<1x64xf32>
    %17 = vector.extract_strided_slice %6 {offsets = [4, 0], sizes = [1, 64], strides = [1, 1]} : vector<8x64xf32> to vector<1x64xf32>
    %18 = vector.extract_strided_slice %6 {offsets = [5, 0], sizes = [1, 64], strides = [1, 1]} : vector<8x64xf32> to vector<1x64xf32>
    %19 = vector.extract_strided_slice %6 {offsets = [6, 0], sizes = [1, 64], strides = [1, 1]} : vector<8x64xf32> to vector<1x64xf32>
    %20 = vector.extract_strided_slice %6 {offsets = [7, 0], sizes = [1, 64], strides = [1, 1]} : vector<8x64xf32> to vector<1x64xf32>
    %21 = vector.extract_strided_slice %9 {offsets = [0, 0], sizes = [1, 64], strides = [1, 1]} : vector<8x64xf32> to vector<1x64xf32>
    %22 = vector.extract_strided_slice %9 {offsets = [1, 0], sizes = [1, 64], strides = [1, 1]} : vector<8x64xf32> to vector<1x64xf32>
    %23 = vector.extract_strided_slice %9 {offsets = [2, 0], sizes = [1, 64], strides = [1, 1]} : vector<8x64xf32> to vector<1x64xf32>
    %24 = vector.extract_strided_slice %9 {offsets = [3, 0], sizes = [1, 64], strides = [1, 1]} : vector<8x64xf32> to vector<1x64xf32>
    %25 = vector.extract_strided_slice %9 {offsets = [4, 0], sizes = [1, 64], strides = [1, 1]} : vector<8x64xf32> to vector<1x64xf32>
    %26 = vector.extract_strided_slice %9 {offsets = [5, 0], sizes = [1, 64], strides = [1, 1]} : vector<8x64xf32> to vector<1x64xf32>
    %27 = vector.extract_strided_slice %9 {offsets = [6, 0], sizes = [1, 64], strides = [1, 1]} : vector<8x64xf32> to vector<1x64xf32>
    %28 = vector.extract_strided_slice %9 {offsets = [7, 0], sizes = [1, 64], strides = [1, 1]} : vector<8x64xf32> to vector<1x64xf32>
    %29 = arith.mulf %21, %13 : vector<1x64xf32>
    %30 = arith.mulf %22, %14 : vector<1x64xf32>
    %c0_18 = arith.constant 0 : index
    %c0_19 = arith.constant 0 : index
    %31 = vector.load %arg10[%c0_18, %c0_19] : memref<128x3xf32, #tpu.memory_space<vmem>>, vector<128x3xf32>
    %c0_20 = arith.constant 0 : index
    %c0_21 = arith.constant 0 : index
    %32 = vector.load %arg11[%c0_20, %c0_21] : memref<128x1xf32, #tpu.memory_space<vmem>>, vector<128x1xf32>
    %33 = vector.extract_strided_slice %31 {offsets = [0, 0], sizes = [128, 1], strides = [1, 1]} : vector<128x3xf32> to vector<128x1xf32>
    %34 = vector.broadcast %33 : vector<128x1xf32> to vector<128x64xf32>
    %35 = vector.broadcast %29 : vector<1x64xf32> to vector<128x64xf32>
    %36 = arith.mulf %34, %35 : vector<128x64xf32>
    %37 = vector.broadcast %32 : vector<128x1xf32> to vector<128x64xf32>
    %38 = arith.addf %37, %36 : vector<128x64xf32>
    %39 = vector.extract_strided_slice %31 {offsets = [0, 1], sizes = [128, 1], strides = [1, 1]} : vector<128x3xf32> to vector<128x1xf32>
    %40 = vector.broadcast %39 : vector<128x1xf32> to vector<128x64xf32>
    %41 = vector.broadcast %30 : vector<1x64xf32> to vector<128x64xf32>
    %42 = arith.mulf %40, %41 : vector<128x64xf32>
    %43 = arith.addf %38, %42 : vector<128x64xf32>
    %44 = vector.extract_strided_slice %31 {offsets = [0, 2], sizes = [128, 1], strides = [1, 1]} : vector<128x3xf32> to vector<128x1xf32>
    %45 = vector.broadcast %44 : vector<128x1xf32> to vector<128x64xf32>
    %46 = vector.broadcast %1 : vector<1x64xf32> to vector<128x64xf32>
    %47 = arith.mulf %45, %46 : vector<128x64xf32>
    %48 = arith.addf %43, %47 : vector<128x64xf32>
    %c0_22 = arith.constant 0 : index
    %c0_23 = arith.constant 0 : index
    %49 = vector.load %arg8[%c0_22, %c0_23] : memref<8x128xf32, #tpu.memory_space<vmem>>, vector<8x128xf32>
    %c0_24 = arith.constant 0 : index
    %c0_25 = arith.constant 0 : index
    %50 = vector.load %arg9[%c0_24, %c0_25] : memref<128x8xf32, #tpu.memory_space<vmem>>, vector<128x8xf32>
    %c0_26 = arith.constant 0 : index
    %c0_27 = arith.constant 0 : index
    %51 = vector.load %arg12[%c0_26, %c0_27] : memref<128x1xf32, #tpu.memory_space<vmem>>, vector<128x1xf32>
    %c0_28 = arith.constant 0 : index
    %c0_29 = arith.constant 0 : index
    %52 = vector.load %arg13[%c0_28, %c0_29] : memref<128x1xf32, #tpu.memory_space<vmem>>, vector<128x1xf32>
    %cst_30 = arith.constant dense<0.000000e+00> : vector<8x64xf32>
    %53 = tpu.matmul %49, %48, %cst_30 {dimension_numbers = #tpu.dot_dimension_numbers<[1], [0], [0], [1], [0, 0, 1, 1], [], []>} : vector<8x128xf32>, vector<128x64xf32>, vector<8x64xf32> -> vector<8x64xf32>
    %cst_31 = arith.constant dense<0.000000e+00> : vector<128x64xf32>
    %54 = tpu.matmul %50, %53, %cst_31 {dimension_numbers = #tpu.dot_dimension_numbers<[1], [0], [0], [1], [0, 0, 1, 1], [], []>} : vector<128x8xf32>, vector<8x64xf32>, vector<128x64xf32> -> vector<128x64xf32>
    %55 = arith.subf %48, %54 : vector<128x64xf32>
    %56 = arith.mulf %55, %55 : vector<128x64xf32>
    %cst_32 = arith.constant dense<0.000000e+00> : vector<8x64xf32>
    %57 = tpu.matmul %49, %56, %cst_32 {dimension_numbers = #tpu.dot_dimension_numbers<[1], [0], [0], [1], [0, 0, 1, 1], [], []>} : vector<8x128xf32>, vector<128x64xf32>, vector<8x64xf32> -> vector<8x64xf32>
    %cst_33 = arith.constant dense<0.000000e+00> : vector<128x64xf32>
    %58 = tpu.matmul %50, %57, %cst_33 {dimension_numbers = #tpu.dot_dimension_numbers<[1], [0], [0], [1], [0, 0, 1, 1], [], []>} : vector<128x8xf32>, vector<8x64xf32>, vector<128x64xf32> -> vector<128x64xf32>
    %cst_34 = arith.constant 9.99999974E-6 : f32
    %59 = vector.broadcast %cst_34 : f32 to vector<128x64xf32>
    %60 = arith.addf %58, %59 : vector<128x64xf32>
    %61 = math.rsqrt %60 : vector<128x64xf32>
    %62 = arith.mulf %55, %61 : vector<128x64xf32>
    %63 = vector.broadcast %51 : vector<128x1xf32> to vector<128x64xf32>
    %64 = arith.mulf %62, %63 : vector<128x64xf32>
    %65 = vector.broadcast %52 : vector<128x1xf32> to vector<128x64xf32>
    %66 = arith.addf %64, %65 : vector<128x64xf32>
    %cst_35 = arith.constant 0.000000e+00 : f32
    %67 = vector.broadcast %cst_35 : f32 to vector<128x64xf32>
    %68 = arith.maximumf %66, %67 : vector<128x64xf32>
    %c0_36 = arith.constant 0 : index
    %c0_37 = arith.constant 0 : index
    %69 = vector.load %arg14[%c0_36, %c0_37] : memref<128x128xf32, #tpu.memory_space<vmem>>, vector<128x128xf32>
    %cst_38 = arith.constant dense<0.000000e+00> : vector<128x64xf32>
    %70 = tpu.matmul %69, %68, %cst_38 {dimension_numbers = #tpu.dot_dimension_numbers<[1], [0], [0], [1], [0, 0, 1, 1], [], []>} : vector<128x128xf32>, vector<128x64xf32>, vector<128x64xf32> -> vector<128x64xf32>
    %c0_39 = arith.constant 0 : index
    %c0_40 = arith.constant 0 : index
    %71 = vector.load %arg15[%c0_39, %c0_40] : memref<128x1xf32, #tpu.memory_space<vmem>>, vector<128x1xf32>
    %72 = vector.broadcast %71 : vector<128x1xf32> to vector<128x64xf32>
    %73 = arith.addf %70, %72 : vector<128x64xf32>
    %c0_41 = arith.constant 0 : index
    %c0_42 = arith.constant 0 : index
    %74 = vector.load %arg8[%c0_41, %c0_42] : memref<8x128xf32, #tpu.memory_space<vmem>>, vector<8x128xf32>
    %c0_43 = arith.constant 0 : index
    %c0_44 = arith.constant 0 : index
    %75 = vector.load %arg9[%c0_43, %c0_44] : memref<128x8xf32, #tpu.memory_space<vmem>>, vector<128x8xf32>
    %c0_45 = arith.constant 0 : index
    %c0_46 = arith.constant 0 : index
    %76 = vector.load %arg16[%c0_45, %c0_46] : memref<128x1xf32, #tpu.memory_space<vmem>>, vector<128x1xf32>
    %c0_47 = arith.constant 0 : index
    %c0_48 = arith.constant 0 : index
    %77 = vector.load %arg17[%c0_47, %c0_48] : memref<128x1xf32, #tpu.memory_space<vmem>>, vector<128x1xf32>
    %cst_49 = arith.constant dense<0.000000e+00> : vector<8x64xf32>
    %78 = tpu.matmul %74, %73, %cst_49 {dimension_numbers = #tpu.dot_dimension_numbers<[1], [0], [0], [1], [0, 0, 1, 1], [], []>} : vector<8x128xf32>, vector<128x64xf32>, vector<8x64xf32> -> vector<8x64xf32>
    %cst_50 = arith.constant dense<0.000000e+00> : vector<128x64xf32>
    %79 = tpu.matmul %75, %78, %cst_50 {dimension_numbers = #tpu.dot_dimension_numbers<[1], [0], [0], [1], [0, 0, 1, 1], [], []>} : vector<128x8xf32>, vector<8x64xf32>, vector<128x64xf32> -> vector<128x64xf32>
    %80 = arith.subf %73, %79 : vector<128x64xf32>
    %81 = arith.mulf %80, %80 : vector<128x64xf32>
    %cst_51 = arith.constant dense<0.000000e+00> : vector<8x64xf32>
    %82 = tpu.matmul %74, %81, %cst_51 {dimension_numbers = #tpu.dot_dimension_numbers<[1], [0], [0], [1], [0, 0, 1, 1], [], []>} : vector<8x128xf32>, vector<128x64xf32>, vector<8x64xf32> -> vector<8x64xf32>
    %cst_52 = arith.constant dense<0.000000e+00> : vector<128x64xf32>
    %83 = tpu.matmul %75, %82, %cst_52 {dimension_numbers = #tpu.dot_dimension_numbers<[1], [0], [0], [1], [0, 0, 1, 1], [], []>} : vector<128x8xf32>, vector<8x64xf32>, vector<128x64xf32> -> vector<128x64xf32>
    %cst_53 = arith.constant 9.99999974E-6 : f32
    %84 = vector.broadcast %cst_53 : f32 to vector<128x64xf32>
    %85 = arith.addf %83, %84 : vector<128x64xf32>
    %86 = math.rsqrt %85 : vector<128x64xf32>
    %87 = arith.mulf %80, %86 : vector<128x64xf32>
    %88 = vector.broadcast %76 : vector<128x1xf32> to vector<128x64xf32>
    %89 = arith.mulf %87, %88 : vector<128x64xf32>
    %90 = vector.broadcast %77 : vector<128x1xf32> to vector<128x64xf32>
    %91 = arith.addf %89, %90 : vector<128x64xf32>
    %cst_54 = arith.constant 0.000000e+00 : f32
    %92 = vector.broadcast %cst_54 : f32 to vector<128x64xf32>
    %93 = arith.maximumf %91, %92 : vector<128x64xf32>
    %c0_55 = arith.constant 0 : index
    %c0_56 = arith.constant 0 : index
    %94 = vector.load %arg18[%c0_55, %c0_56] : memref<48x128xf32, #tpu.memory_space<vmem>>, vector<48x128xf32>
    %cst_57 = arith.constant dense<0.000000e+00> : vector<48x64xf32>
    %95 = tpu.matmul %94, %93, %cst_57 {dimension_numbers = #tpu.dot_dimension_numbers<[1], [0], [0], [1], [0, 0, 1, 1], [], []>} : vector<48x128xf32>, vector<128x64xf32>, vector<48x64xf32> -> vector<48x64xf32>
    %c0_58 = arith.constant 0 : index
    %c0_59 = arith.constant 0 : index
    %96 = vector.load %arg19[%c0_58, %c0_59] : memref<48x1xf32, #tpu.memory_space<vmem>>, vector<48x1xf32>
    %97 = vector.broadcast %96 : vector<48x1xf32> to vector<48x64xf32>
    %98 = arith.addf %95, %97 : vector<48x64xf32>
    %99 = vector.extract_strided_slice %98 {offsets = [0, 0], sizes = [1, 64], strides = [1, 1]} : vector<48x64xf32> to vector<1x64xf32>
    %100 = vector.extract_strided_slice %98 {offsets = [1, 0], sizes = [1, 64], strides = [1, 1]} : vector<48x64xf32> to vector<1x64xf32>
    %101 = vector.extract_strided_slice %98 {offsets = [2, 0], sizes = [1, 64], strides = [1, 1]} : vector<48x64xf32> to vector<1x64xf32>
    %102 = vector.extract_strided_slice %98 {offsets = [3, 0], sizes = [1, 64], strides = [1, 1]} : vector<48x64xf32> to vector<1x64xf32>
    %103 = vector.extract_strided_slice %98 {offsets = [4, 0], sizes = [1, 64], strides = [1, 1]} : vector<48x64xf32> to vector<1x64xf32>
    %104 = vector.extract_strided_slice %98 {offsets = [5, 0], sizes = [1, 64], strides = [1, 1]} : vector<48x64xf32> to vector<1x64xf32>
    %105 = vector.extract_strided_slice %98 {offsets = [6, 0], sizes = [1, 64], strides = [1, 1]} : vector<48x64xf32> to vector<1x64xf32>
    %106 = vector.extract_strided_slice %98 {offsets = [7, 0], sizes = [1, 64], strides = [1, 1]} : vector<48x64xf32> to vector<1x64xf32>
    %107 = vector.extract_strided_slice %98 {offsets = [8, 0], sizes = [1, 64], strides = [1, 1]} : vector<48x64xf32> to vector<1x64xf32>
    %108 = vector.extract_strided_slice %98 {offsets = [9, 0], sizes = [1, 64], strides = [1, 1]} : vector<48x64xf32> to vector<1x64xf32>
    %109 = vector.extract_strided_slice %98 {offsets = [10, 0], sizes = [1, 64], strides = [1, 1]} : vector<48x64xf32> to vector<1x64xf32>
    %110 = vector.extract_strided_slice %98 {offsets = [11, 0], sizes = [1, 64], strides = [1, 1]} : vector<48x64xf32> to vector<1x64xf32>
    %111 = vector.extract_strided_slice %98 {offsets = [12, 0], sizes = [1, 64], strides = [1, 1]} : vector<48x64xf32> to vector<1x64xf32>
    %112 = vector.extract_strided_slice %98 {offsets = [13, 0], sizes = [1, 64], strides = [1, 1]} : vector<48x64xf32> to vector<1x64xf32>
    %113 = vector.extract_strided_slice %98 {offsets = [14, 0], sizes = [1, 64], strides = [1, 1]} : vector<48x64xf32> to vector<1x64xf32>
    %114 = vector.extract_strided_slice %98 {offsets = [15, 0], sizes = [1, 64], strides = [1, 1]} : vector<48x64xf32> to vector<1x64xf32>
    %115 = vector.extract_strided_slice %98 {offsets = [16, 0], sizes = [1, 64], strides = [1, 1]} : vector<48x64xf32> to vector<1x64xf32>
    %116 = vector.extract_strided_slice %98 {offsets = [17, 0], sizes = [1, 64], strides = [1, 1]} : vector<48x64xf32> to vector<1x64xf32>
    %117 = vector.extract_strided_slice %98 {offsets = [18, 0], sizes = [1, 64], strides = [1, 1]} : vector<48x64xf32> to vector<1x64xf32>
    %118 = vector.extract_strided_slice %98 {offsets = [19, 0], sizes = [1, 64], strides = [1, 1]} : vector<48x64xf32> to vector<1x64xf32>
    %119 = vector.extract_strided_slice %98 {offsets = [20, 0], sizes = [1, 64], strides = [1, 1]} : vector<48x64xf32> to vector<1x64xf32>
    %120 = vector.extract_strided_slice %98 {offsets = [21, 0], sizes = [1, 64], strides = [1, 1]} : vector<48x64xf32> to vector<1x64xf32>
    %121 = vector.extract_strided_slice %98 {offsets = [22, 0], sizes = [1, 64], strides = [1, 1]} : vector<48x64xf32> to vector<1x64xf32>
    %122 = vector.extract_strided_slice %98 {offsets = [23, 0], sizes = [1, 64], strides = [1, 1]} : vector<48x64xf32> to vector<1x64xf32>
    %123 = vector.extract_strided_slice %98 {offsets = [24, 0], sizes = [1, 64], strides = [1, 1]} : vector<48x64xf32> to vector<1x64xf32>
    %124 = vector.extract_strided_slice %98 {offsets = [25, 0], sizes = [1, 64], strides = [1, 1]} : vector<48x64xf32> to vector<1x64xf32>
    %125 = vector.extract_strided_slice %98 {offsets = [26, 0], sizes = [1, 64], strides = [1, 1]} : vector<48x64xf32> to vector<1x64xf32>
    %126 = vector.extract_strided_slice %98 {offsets = [27, 0], sizes = [1, 64], strides = [1, 1]} : vector<48x64xf32> to vector<1x64xf32>
    %127 = vector.extract_strided_slice %98 {offsets = [28, 0], sizes = [1, 64], strides = [1, 1]} : vector<48x64xf32> to vector<1x64xf32>
    %128 = vector.extract_strided_slice %98 {offsets = [29, 0], sizes = [1, 64], strides = [1, 1]} : vector<48x64xf32> to vector<1x64xf32>
    %129 = vector.extract_strided_slice %98 {offsets = [30, 0], sizes = [1, 64], strides = [1, 1]} : vector<48x64xf32> to vector<1x64xf32>
    %130 = vector.extract_strided_slice %98 {offsets = [31, 0], sizes = [1, 64], strides = [1, 1]} : vector<48x64xf32> to vector<1x64xf32>
    %131 = vector.extract_strided_slice %98 {offsets = [32, 0], sizes = [1, 64], strides = [1, 1]} : vector<48x64xf32> to vector<1x64xf32>
    %132 = vector.extract_strided_slice %98 {offsets = [33, 0], sizes = [1, 64], strides = [1, 1]} : vector<48x64xf32> to vector<1x64xf32>
    %133 = vector.extract_strided_slice %98 {offsets = [34, 0], sizes = [1, 64], strides = [1, 1]} : vector<48x64xf32> to vector<1x64xf32>
    %134 = vector.extract_strided_slice %98 {offsets = [35, 0], sizes = [1, 64], strides = [1, 1]} : vector<48x64xf32> to vector<1x64xf32>
    %135 = vector.extract_strided_slice %98 {offsets = [36, 0], sizes = [1, 64], strides = [1, 1]} : vector<48x64xf32> to vector<1x64xf32>
    %136 = vector.extract_strided_slice %98 {offsets = [37, 0], sizes = [1, 64], strides = [1, 1]} : vector<48x64xf32> to vector<1x64xf32>
    %137 = vector.extract_strided_slice %98 {offsets = [38, 0], sizes = [1, 64], strides = [1, 1]} : vector<48x64xf32> to vector<1x64xf32>
    %138 = vector.extract_strided_slice %98 {offsets = [39, 0], sizes = [1, 64], strides = [1, 1]} : vector<48x64xf32> to vector<1x64xf32>
    %139 = vector.extract_strided_slice %98 {offsets = [40, 0], sizes = [1, 64], strides = [1, 1]} : vector<48x64xf32> to vector<1x64xf32>
    %140 = vector.extract_strided_slice %98 {offsets = [41, 0], sizes = [1, 64], strides = [1, 1]} : vector<48x64xf32> to vector<1x64xf32>
    %141 = vector.extract_strided_slice %98 {offsets = [42, 0], sizes = [1, 64], strides = [1, 1]} : vector<48x64xf32> to vector<1x64xf32>
    %142 = vector.extract_strided_slice %98 {offsets = [43, 0], sizes = [1, 64], strides = [1, 1]} : vector<48x64xf32> to vector<1x64xf32>
    %143 = vector.extract_strided_slice %98 {offsets = [44, 0], sizes = [1, 64], strides = [1, 1]} : vector<48x64xf32> to vector<1x64xf32>
    %144 = vector.extract_strided_slice %98 {offsets = [45, 0], sizes = [1, 64], strides = [1, 1]} : vector<48x64xf32> to vector<1x64xf32>
    %145 = vector.extract_strided_slice %98 {offsets = [46, 0], sizes = [1, 64], strides = [1, 1]} : vector<48x64xf32> to vector<1x64xf32>
    %146 = vector.extract_strided_slice %98 {offsets = [47, 0], sizes = [1, 64], strides = [1, 1]} : vector<48x64xf32> to vector<1x64xf32>
    %147 = vector.extract_strided_slice %3 {offsets = [0, 0], sizes = [1, 64], strides = [1, 1]} : vector<34x64xf32> to vector<1x64xf32>
    %148 = vector.extract_strided_slice %3 {offsets = [1, 0], sizes = [1, 64], strides = [1, 1]} : vector<34x64xf32> to vector<1x64xf32>
    %149 = vector.extract_strided_slice %3 {offsets = [2, 0], sizes = [1, 64], strides = [1, 1]} : vector<34x64xf32> to vector<1x64xf32>
    %150 = vector.extract_strided_slice %3 {offsets = [3, 0], sizes = [1, 64], strides = [1, 1]} : vector<34x64xf32> to vector<1x64xf32>
    %151 = vector.extract_strided_slice %3 {offsets = [4, 0], sizes = [1, 64], strides = [1, 1]} : vector<34x64xf32> to vector<1x64xf32>
    %152 = vector.extract_strided_slice %3 {offsets = [5, 0], sizes = [1, 64], strides = [1, 1]} : vector<34x64xf32> to vector<1x64xf32>
    %153 = vector.extract_strided_slice %3 {offsets = [6, 0], sizes = [1, 64], strides = [1, 1]} : vector<34x64xf32> to vector<1x64xf32>
    %154 = vector.extract_strided_slice %3 {offsets = [7, 0], sizes = [1, 64], strides = [1, 1]} : vector<34x64xf32> to vector<1x64xf32>
    %155 = vector.extract_strided_slice %3 {offsets = [8, 0], sizes = [1, 64], strides = [1, 1]} : vector<34x64xf32> to vector<1x64xf32>
    %156 = vector.extract_strided_slice %3 {offsets = [9, 0], sizes = [1, 64], strides = [1, 1]} : vector<34x64xf32> to vector<1x64xf32>
    %157 = vector.extract_strided_slice %3 {offsets = [10, 0], sizes = [1, 64], strides = [1, 1]} : vector<34x64xf32> to vector<1x64xf32>
    %158 = vector.extract_strided_slice %3 {offsets = [11, 0], sizes = [1, 64], strides = [1, 1]} : vector<34x64xf32> to vector<1x64xf32>
    %159 = vector.extract_strided_slice %3 {offsets = [12, 0], sizes = [1, 64], strides = [1, 1]} : vector<34x64xf32> to vector<1x64xf32>
    %160 = vector.extract_strided_slice %3 {offsets = [13, 0], sizes = [1, 64], strides = [1, 1]} : vector<34x64xf32> to vector<1x64xf32>
    %161 = vector.extract_strided_slice %3 {offsets = [14, 0], sizes = [1, 64], strides = [1, 1]} : vector<34x64xf32> to vector<1x64xf32>
    %162 = vector.extract_strided_slice %3 {offsets = [15, 0], sizes = [1, 64], strides = [1, 1]} : vector<34x64xf32> to vector<1x64xf32>
    %163 = vector.extract_strided_slice %3 {offsets = [16, 0], sizes = [1, 64], strides = [1, 1]} : vector<34x64xf32> to vector<1x64xf32>
    %164 = vector.extract_strided_slice %3 {offsets = [17, 0], sizes = [1, 64], strides = [1, 1]} : vector<34x64xf32> to vector<1x64xf32>
    %165 = vector.extract_strided_slice %3 {offsets = [18, 0], sizes = [1, 64], strides = [1, 1]} : vector<34x64xf32> to vector<1x64xf32>
    %166 = vector.extract_strided_slice %3 {offsets = [19, 0], sizes = [1, 64], strides = [1, 1]} : vector<34x64xf32> to vector<1x64xf32>
    %167 = vector.extract_strided_slice %3 {offsets = [20, 0], sizes = [1, 64], strides = [1, 1]} : vector<34x64xf32> to vector<1x64xf32>
    %168 = vector.extract_strided_slice %3 {offsets = [21, 0], sizes = [1, 64], strides = [1, 1]} : vector<34x64xf32> to vector<1x64xf32>
    %169 = vector.extract_strided_slice %3 {offsets = [22, 0], sizes = [1, 64], strides = [1, 1]} : vector<34x64xf32> to vector<1x64xf32>
    %170 = vector.extract_strided_slice %3 {offsets = [23, 0], sizes = [1, 64], strides = [1, 1]} : vector<34x64xf32> to vector<1x64xf32>
    %171 = vector.extract_strided_slice %3 {offsets = [24, 0], sizes = [1, 64], strides = [1, 1]} : vector<34x64xf32> to vector<1x64xf32>
    %172 = vector.extract_strided_slice %3 {offsets = [25, 0], sizes = [1, 64], strides = [1, 1]} : vector<34x64xf32> to vector<1x64xf32>
    %173 = vector.extract_strided_slice %3 {offsets = [26, 0], sizes = [1, 64], strides = [1, 1]} : vector<34x64xf32> to vector<1x64xf32>
    %174 = vector.extract_strided_slice %3 {offsets = [27, 0], sizes = [1, 64], strides = [1, 1]} : vector<34x64xf32> to vector<1x64xf32>
    %175 = vector.extract_strided_slice %3 {offsets = [28, 0], sizes = [1, 64], strides = [1, 1]} : vector<34x64xf32> to vector<1x64xf32>
    %176 = vector.extract_strided_slice %3 {offsets = [29, 0], sizes = [1, 64], strides = [1, 1]} : vector<34x64xf32> to vector<1x64xf32>
    %177 = vector.extract_strided_slice %3 {offsets = [30, 0], sizes = [1, 64], strides = [1, 1]} : vector<34x64xf32> to vector<1x64xf32>
    %178 = vector.extract_strided_slice %3 {offsets = [31, 0], sizes = [1, 64], strides = [1, 1]} : vector<34x64xf32> to vector<1x64xf32>
    %179 = vector.extract_strided_slice %3 {offsets = [32, 0], sizes = [1, 64], strides = [1, 1]} : vector<34x64xf32> to vector<1x64xf32>
    %180 = vector.extract_strided_slice %3 {offsets = [33, 0], sizes = [1, 64], strides = [1, 1]} : vector<34x64xf32> to vector<1x64xf32>
    %cst_60 = arith.constant 0.000000e+00 : f32
    %181 = vector.broadcast %cst_60 : f32 to vector<1x64xf32>
    %cst_61 = arith.constant 0.000000e+00 : f32
    %182 = vector.broadcast %cst_61 : f32 to vector<1x64xf32>
    %cst_62 = arith.constant 0.000000e+00 : f32
    %183 = vector.broadcast %cst_62 : f32 to vector<1x64xf32>
    %cst_63 = arith.constant 0.000000e+00 : f32
    %184 = vector.broadcast %cst_63 : f32 to vector<1x64xf32>
    %cst_64 = arith.constant 0.000000e+00 : f32
    %185 = vector.broadcast %cst_64 : f32 to vector<1x64xf32>
    %cst_65 = arith.constant 0.000000e+00 : f32
    %186 = vector.broadcast %cst_65 : f32 to vector<1x64xf32>
    %cst_66 = arith.constant 0.000000e+00 : f32
    %187 = vector.broadcast %cst_66 : f32 to vector<1x64xf32>
    %cst_67 = arith.constant 0.000000e+00 : f32
    %188 = vector.broadcast %cst_67 : f32 to vector<1x64xf32>
    %cst_68 = arith.constant 0.000000e+00 : f32
    %189 = vector.broadcast %cst_68 : f32 to vector<1x64xf32>
    %cst_69 = arith.constant 0.000000e+00 : f32
    %190 = vector.broadcast %cst_69 : f32 to vector<1x64xf32>
    %cst_70 = arith.constant 0.000000e+00 : f32
    %191 = vector.broadcast %cst_70 : f32 to vector<1x64xf32>
    %cst_71 = arith.constant 0.000000e+00 : f32
    %192 = vector.broadcast %cst_71 : f32 to vector<1x64xf32>
    %cst_72 = arith.constant 0.000000e+00 : f32
    %193 = vector.broadcast %cst_72 : f32 to vector<1x64xf32>
    %cst_73 = arith.constant 0.000000e+00 : f32
    %194 = vector.broadcast %cst_73 : f32 to vector<1x64xf32>
    %cst_74 = arith.constant 0.000000e+00 : f32
    %195 = vector.broadcast %cst_74 : f32 to vector<1x64xf32>
    %cst_75 = arith.constant 0.000000e+00 : f32
    %196 = vector.broadcast %cst_75 : f32 to vector<1x64xf32>
    %197 = arith.mulf %147, %13 : vector<1x64xf32>
    %198 = arith.mulf %147, %21 : vector<1x64xf32>
    %199 = arith.mulf %147, %14 : vector<1x64xf32>
    %200 = arith.mulf %147, %22 : vector<1x64xf32>
    %201 = arith.mulf %123, %197 : vector<1x64xf32>
    %202 = arith.addf %181, %201 : vector<1x64xf32>
    %203 = arith.mulf %99, %198 : vector<1x64xf32>
    %204 = arith.addf %189, %203 : vector<1x64xf32>
    %205 = arith.mulf %124, %199 : vector<1x64xf32>
    %206 = arith.addf %202, %205 : vector<1x64xf32>
    %207 = arith.mulf %100, %200 : vector<1x64xf32>
    %208 = arith.addf %204, %207 : vector<1x64xf32>
    %209 = arith.mulf %125, %197 : vector<1x64xf32>
    %210 = arith.addf %182, %209 : vector<1x64xf32>
    %211 = arith.mulf %101, %198 : vector<1x64xf32>
    %212 = arith.addf %190, %211 : vector<1x64xf32>
    %213 = arith.mulf %126, %199 : vector<1x64xf32>
    %214 = arith.addf %210, %213 : vector<1x64xf32>
    %215 = arith.mulf %102, %200 : vector<1x64xf32>
    %216 = arith.addf %212, %215 : vector<1x64xf32>
    %217 = arith.mulf %148, %13 : vector<1x64xf32>
    %218 = arith.mulf %148, %21 : vector<1x64xf32>
    %219 = arith.mulf %148, %14 : vector<1x64xf32>
    %220 = arith.mulf %148, %22 : vector<1x64xf32>
    %221 = arith.mulf %149, %13 : vector<1x64xf32>
    %222 = arith.mulf %149, %21 : vector<1x64xf32>
    %223 = arith.mulf %149, %14 : vector<1x64xf32>
    %224 = arith.mulf %149, %22 : vector<1x64xf32>
    %225 = arith.mulf %150, %13 : vector<1x64xf32>
    %226 = arith.mulf %150, %21 : vector<1x64xf32>
    %227 = arith.mulf %150, %14 : vector<1x64xf32>
    %228 = arith.mulf %150, %22 : vector<1x64xf32>
    %229 = arith.mulf %127, %217 : vector<1x64xf32>
    %230 = arith.addf %183, %229 : vector<1x64xf32>
    %231 = arith.mulf %107, %218 : vector<1x64xf32>
    %232 = arith.addf %191, %231 : vector<1x64xf32>
    %233 = arith.mulf %127, %221 : vector<1x64xf32>
    %234 = arith.addf %184, %233 : vector<1x64xf32>
    %235 = arith.mulf %107, %222 : vector<1x64xf32>
    %236 = arith.addf %192, %235 : vector<1x64xf32>
    %237 = arith.mulf %127, %225 : vector<1x64xf32>
    %238 = arith.addf %185, %237 : vector<1x64xf32>
    %239 = arith.mulf %107, %226 : vector<1x64xf32>
    %240 = arith.addf %193, %239 : vector<1x64xf32>
    %241 = arith.mulf %128, %219 : vector<1x64xf32>
    %242 = arith.addf %230, %241 : vector<1x64xf32>
    %243 = arith.mulf %108, %220 : vector<1x64xf32>
    %244 = arith.addf %232, %243 : vector<1x64xf32>
    %245 = arith.mulf %128, %223 : vector<1x64xf32>
    %246 = arith.addf %234, %245 : vector<1x64xf32>
    %247 = arith.mulf %108, %224 : vector<1x64xf32>
    %248 = arith.addf %236, %247 : vector<1x64xf32>
    %249 = arith.mulf %128, %227 : vector<1x64xf32>
    %250 = arith.addf %238, %249 : vector<1x64xf32>
    %251 = arith.mulf %108, %228 : vector<1x64xf32>
    %252 = arith.addf %240, %251 : vector<1x64xf32>
    %253 = arith.mulf %129, %217 : vector<1x64xf32>
    %254 = arith.addf %186, %253 : vector<1x64xf32>
    %255 = arith.mulf %109, %218 : vector<1x64xf32>
    %256 = arith.addf %194, %255 : vector<1x64xf32>
    %257 = arith.mulf %129, %221 : vector<1x64xf32>
    %258 = arith.addf %187, %257 : vector<1x64xf32>
    %259 = arith.mulf %109, %222 : vector<1x64xf32>
    %260 = arith.addf %195, %259 : vector<1x64xf32>
    %261 = arith.mulf %129, %225 : vector<1x64xf32>
    %262 = arith.addf %188, %261 : vector<1x64xf32>
    %263 = arith.mulf %109, %226 : vector<1x64xf32>
    %264 = arith.addf %196, %263 : vector<1x64xf32>
    %265 = arith.mulf %130, %219 : vector<1x64xf32>
    %266 = arith.addf %254, %265 : vector<1x64xf32>
    %267 = arith.mulf %110, %220 : vector<1x64xf32>
    %268 = arith.addf %256, %267 : vector<1x64xf32>
    %269 = arith.mulf %130, %223 : vector<1x64xf32>
    %270 = arith.addf %258, %269 : vector<1x64xf32>
    %271 = arith.mulf %110, %224 : vector<1x64xf32>
    %272 = arith.addf %260, %271 : vector<1x64xf32>
    %273 = arith.mulf %130, %227 : vector<1x64xf32>
    %274 = arith.addf %262, %273 : vector<1x64xf32>
    %275 = arith.mulf %110, %228 : vector<1x64xf32>
    %276 = arith.addf %264, %275 : vector<1x64xf32>
    %277 = arith.mulf %151, %15 : vector<1x64xf32>
    %278 = arith.mulf %152, %16 : vector<1x64xf32>
    %279 = arith.addf %277, %278 : vector<1x64xf32>
    %280 = arith.mulf %153, %17 : vector<1x64xf32>
    %281 = arith.addf %279, %280 : vector<1x64xf32>
    %282 = arith.mulf %151, %23 : vector<1x64xf32>
    %283 = arith.mulf %152, %24 : vector<1x64xf32>
    %284 = arith.addf %282, %283 : vector<1x64xf32>
    %285 = arith.mulf %153, %25 : vector<1x64xf32>
    %286 = arith.addf %284, %285 : vector<1x64xf32>
    %287 = arith.mulf %151, %18 : vector<1x64xf32>
    %288 = arith.mulf %152, %19 : vector<1x64xf32>
    %289 = arith.addf %287, %288 : vector<1x64xf32>
    %290 = arith.mulf %153, %20 : vector<1x64xf32>
    %291 = arith.addf %289, %290 : vector<1x64xf32>
    %292 = arith.mulf %151, %26 : vector<1x64xf32>
    %293 = arith.mulf %152, %27 : vector<1x64xf32>
    %294 = arith.addf %292, %293 : vector<1x64xf32>
    %295 = arith.mulf %153, %28 : vector<1x64xf32>
    %296 = arith.addf %294, %295 : vector<1x64xf32>
    %297 = arith.mulf %131, %281 : vector<1x64xf32>
    %298 = arith.addf %206, %297 : vector<1x64xf32>
    %299 = arith.mulf %103, %286 : vector<1x64xf32>
    %300 = arith.addf %208, %299 : vector<1x64xf32>
    %301 = arith.mulf %132, %291 : vector<1x64xf32>
    %302 = arith.addf %298, %301 : vector<1x64xf32>
    %303 = arith.mulf %104, %296 : vector<1x64xf32>
    %304 = arith.addf %300, %303 : vector<1x64xf32>
    %305 = arith.mulf %133, %281 : vector<1x64xf32>
    %306 = arith.addf %214, %305 : vector<1x64xf32>
    %307 = arith.mulf %105, %286 : vector<1x64xf32>
    %308 = arith.addf %216, %307 : vector<1x64xf32>
    %309 = arith.mulf %134, %291 : vector<1x64xf32>
    %310 = arith.addf %306, %309 : vector<1x64xf32>
    %311 = arith.mulf %106, %296 : vector<1x64xf32>
    %312 = arith.addf %308, %311 : vector<1x64xf32>
    %313 = arith.mulf %154, %15 : vector<1x64xf32>
    %314 = arith.mulf %155, %16 : vector<1x64xf32>
    %315 = arith.addf %313, %314 : vector<1x64xf32>
    %316 = arith.mulf %156, %17 : vector<1x64xf32>
    %317 = arith.addf %315, %316 : vector<1x64xf32>
    %318 = arith.mulf %154, %23 : vector<1x64xf32>
    %319 = arith.mulf %155, %24 : vector<1x64xf32>
    %320 = arith.addf %318, %319 : vector<1x64xf32>
    %321 = arith.mulf %156, %25 : vector<1x64xf32>
    %322 = arith.addf %320, %321 : vector<1x64xf32>
    %323 = arith.mulf %154, %18 : vector<1x64xf32>
    %324 = arith.mulf %155, %19 : vector<1x64xf32>
    %325 = arith.addf %323, %324 : vector<1x64xf32>
    %326 = arith.mulf %156, %20 : vector<1x64xf32>
    %327 = arith.addf %325, %326 : vector<1x64xf32>
    %328 = arith.mulf %154, %26 : vector<1x64xf32>
    %329 = arith.mulf %155, %27 : vector<1x64xf32>
    %330 = arith.addf %328, %329 : vector<1x64xf32>
    %331 = arith.mulf %156, %28 : vector<1x64xf32>
    %332 = arith.addf %330, %331 : vector<1x64xf32>
    %333 = arith.mulf %157, %15 : vector<1x64xf32>
    %334 = arith.mulf %158, %16 : vector<1x64xf32>
    %335 = arith.addf %333, %334 : vector<1x64xf32>
    %336 = arith.mulf %159, %17 : vector<1x64xf32>
    %337 = arith.addf %335, %336 : vector<1x64xf32>
    %338 = arith.mulf %157, %23 : vector<1x64xf32>
    %339 = arith.mulf %158, %24 : vector<1x64xf32>
    %340 = arith.addf %338, %339 : vector<1x64xf32>
    %341 = arith.mulf %159, %25 : vector<1x64xf32>
    %342 = arith.addf %340, %341 : vector<1x64xf32>
    %343 = arith.mulf %157, %18 : vector<1x64xf32>
    %344 = arith.mulf %158, %19 : vector<1x64xf32>
    %345 = arith.addf %343, %344 : vector<1x64xf32>
    %346 = arith.mulf %159, %20 : vector<1x64xf32>
    %347 = arith.addf %345, %346 : vector<1x64xf32>
    %348 = arith.mulf %157, %26 : vector<1x64xf32>
    %349 = arith.mulf %158, %27 : vector<1x64xf32>
    %350 = arith.addf %348, %349 : vector<1x64xf32>
    %351 = arith.mulf %159, %28 : vector<1x64xf32>
    %352 = arith.addf %350, %351 : vector<1x64xf32>
    %353 = arith.mulf %160, %15 : vector<1x64xf32>
    %354 = arith.mulf %161, %16 : vector<1x64xf32>
    %355 = arith.addf %353, %354 : vector<1x64xf32>
    %356 = arith.mulf %162, %17 : vector<1x64xf32>
    %357 = arith.addf %355, %356 : vector<1x64xf32>
    %358 = arith.mulf %160, %23 : vector<1x64xf32>
    %359 = arith.mulf %161, %24 : vector<1x64xf32>
    %360 = arith.addf %358, %359 : vector<1x64xf32>
    %361 = arith.mulf %162, %25 : vector<1x64xf32>
    %362 = arith.addf %360, %361 : vector<1x64xf32>
    %363 = arith.mulf %160, %18 : vector<1x64xf32>
    %364 = arith.mulf %161, %19 : vector<1x64xf32>
    %365 = arith.addf %363, %364 : vector<1x64xf32>
    %366 = arith.mulf %162, %20 : vector<1x64xf32>
    %367 = arith.addf %365, %366 : vector<1x64xf32>
    %368 = arith.mulf %160, %26 : vector<1x64xf32>
    %369 = arith.mulf %161, %27 : vector<1x64xf32>
    %370 = arith.addf %368, %369 : vector<1x64xf32>
    %371 = arith.mulf %162, %28 : vector<1x64xf32>
    %372 = arith.addf %370, %371 : vector<1x64xf32>
    %373 = arith.mulf %135, %317 : vector<1x64xf32>
    %374 = arith.addf %242, %373 : vector<1x64xf32>
    %375 = arith.mulf %111, %322 : vector<1x64xf32>
    %376 = arith.addf %244, %375 : vector<1x64xf32>
    %377 = arith.mulf %135, %337 : vector<1x64xf32>
    %378 = arith.addf %246, %377 : vector<1x64xf32>
    %379 = arith.mulf %111, %342 : vector<1x64xf32>
    %380 = arith.addf %248, %379 : vector<1x64xf32>
    %381 = arith.mulf %135, %357 : vector<1x64xf32>
    %382 = arith.addf %250, %381 : vector<1x64xf32>
    %383 = arith.mulf %111, %362 : vector<1x64xf32>
    %384 = arith.addf %252, %383 : vector<1x64xf32>
    %385 = arith.mulf %136, %327 : vector<1x64xf32>
    %386 = arith.addf %374, %385 : vector<1x64xf32>
    %387 = arith.mulf %112, %332 : vector<1x64xf32>
    %388 = arith.addf %376, %387 : vector<1x64xf32>
    %389 = arith.mulf %136, %347 : vector<1x64xf32>
    %390 = arith.addf %378, %389 : vector<1x64xf32>
    %391 = arith.mulf %112, %352 : vector<1x64xf32>
    %392 = arith.addf %380, %391 : vector<1x64xf32>
    %393 = arith.mulf %136, %367 : vector<1x64xf32>
    %394 = arith.addf %382, %393 : vector<1x64xf32>
    %395 = arith.mulf %112, %372 : vector<1x64xf32>
    %396 = arith.addf %384, %395 : vector<1x64xf32>
    %397 = arith.mulf %137, %317 : vector<1x64xf32>
    %398 = arith.addf %266, %397 : vector<1x64xf32>
    %399 = arith.mulf %113, %322 : vector<1x64xf32>
    %400 = arith.addf %268, %399 : vector<1x64xf32>
    %401 = arith.mulf %137, %337 : vector<1x64xf32>
    %402 = arith.addf %270, %401 : vector<1x64xf32>
    %403 = arith.mulf %113, %342 : vector<1x64xf32>
    %404 = arith.addf %272, %403 : vector<1x64xf32>
    %405 = arith.mulf %137, %357 : vector<1x64xf32>
    %406 = arith.addf %274, %405 : vector<1x64xf32>
    %407 = arith.mulf %113, %362 : vector<1x64xf32>
    %408 = arith.addf %276, %407 : vector<1x64xf32>
    %409 = arith.mulf %138, %327 : vector<1x64xf32>
    %410 = arith.addf %398, %409 : vector<1x64xf32>
    %411 = arith.mulf %114, %332 : vector<1x64xf32>
    %412 = arith.addf %400, %411 : vector<1x64xf32>
    %413 = arith.mulf %138, %347 : vector<1x64xf32>
    %414 = arith.addf %402, %413 : vector<1x64xf32>
    %415 = arith.mulf %114, %352 : vector<1x64xf32>
    %416 = arith.addf %404, %415 : vector<1x64xf32>
    %417 = arith.mulf %138, %367 : vector<1x64xf32>
    %418 = arith.addf %406, %417 : vector<1x64xf32>
    %419 = arith.mulf %114, %372 : vector<1x64xf32>
    %420 = arith.addf %408, %419 : vector<1x64xf32>
    %421 = arith.mulf %163, %15 : vector<1x64xf32>
    %422 = arith.mulf %164, %16 : vector<1x64xf32>
    %423 = arith.addf %421, %422 : vector<1x64xf32>
    %424 = arith.mulf %165, %17 : vector<1x64xf32>
    %425 = arith.addf %423, %424 : vector<1x64xf32>
    %426 = arith.mulf %163, %23 : vector<1x64xf32>
    %427 = arith.mulf %164, %24 : vector<1x64xf32>
    %428 = arith.addf %426, %427 : vector<1x64xf32>
    %429 = arith.mulf %165, %25 : vector<1x64xf32>
    %430 = arith.addf %428, %429 : vector<1x64xf32>
    %431 = arith.mulf %163, %18 : vector<1x64xf32>
    %432 = arith.mulf %164, %19 : vector<1x64xf32>
    %433 = arith.addf %431, %432 : vector<1x64xf32>
    %434 = arith.mulf %165, %20 : vector<1x64xf32>
    %435 = arith.addf %433, %434 : vector<1x64xf32>
    %436 = arith.mulf %163, %26 : vector<1x64xf32>
    %437 = arith.mulf %164, %27 : vector<1x64xf32>
    %438 = arith.addf %436, %437 : vector<1x64xf32>
    %439 = arith.mulf %165, %28 : vector<1x64xf32>
    %440 = arith.addf %438, %439 : vector<1x64xf32>
    %441 = arith.mulf %166, %15 : vector<1x64xf32>
    %442 = arith.mulf %167, %16 : vector<1x64xf32>
    %443 = arith.addf %441, %442 : vector<1x64xf32>
    %444 = arith.mulf %168, %17 : vector<1x64xf32>
    %445 = arith.addf %443, %444 : vector<1x64xf32>
    %446 = arith.mulf %166, %23 : vector<1x64xf32>
    %447 = arith.mulf %167, %24 : vector<1x64xf32>
    %448 = arith.addf %446, %447 : vector<1x64xf32>
    %449 = arith.mulf %168, %25 : vector<1x64xf32>
    %450 = arith.addf %448, %449 : vector<1x64xf32>
    %451 = arith.mulf %166, %18 : vector<1x64xf32>
    %452 = arith.mulf %167, %19 : vector<1x64xf32>
    %453 = arith.addf %451, %452 : vector<1x64xf32>
    %454 = arith.mulf %168, %20 : vector<1x64xf32>
    %455 = arith.addf %453, %454 : vector<1x64xf32>
    %456 = arith.mulf %166, %26 : vector<1x64xf32>
    %457 = arith.mulf %167, %27 : vector<1x64xf32>
    %458 = arith.addf %456, %457 : vector<1x64xf32>
    %459 = arith.mulf %168, %28 : vector<1x64xf32>
    %460 = arith.addf %458, %459 : vector<1x64xf32>
    %461 = arith.mulf %169, %15 : vector<1x64xf32>
    %462 = arith.mulf %170, %16 : vector<1x64xf32>
    %463 = arith.addf %461, %462 : vector<1x64xf32>
    %464 = arith.mulf %171, %17 : vector<1x64xf32>
    %465 = arith.addf %463, %464 : vector<1x64xf32>
    %466 = arith.mulf %169, %23 : vector<1x64xf32>
    %467 = arith.mulf %170, %24 : vector<1x64xf32>
    %468 = arith.addf %466, %467 : vector<1x64xf32>
    %469 = arith.mulf %171, %25 : vector<1x64xf32>
    %470 = arith.addf %468, %469 : vector<1x64xf32>
    %471 = arith.mulf %169, %18 : vector<1x64xf32>
    %472 = arith.mulf %170, %19 : vector<1x64xf32>
    %473 = arith.addf %471, %472 : vector<1x64xf32>
    %474 = arith.mulf %171, %20 : vector<1x64xf32>
    %475 = arith.addf %473, %474 : vector<1x64xf32>
    %476 = arith.mulf %169, %26 : vector<1x64xf32>
    %477 = arith.mulf %170, %27 : vector<1x64xf32>
    %478 = arith.addf %476, %477 : vector<1x64xf32>
    %479 = arith.mulf %171, %28 : vector<1x64xf32>
    %480 = arith.addf %478, %479 : vector<1x64xf32>
    %481 = arith.mulf %139, %425 : vector<1x64xf32>
    %482 = arith.addf %386, %481 : vector<1x64xf32>
    %483 = arith.mulf %115, %430 : vector<1x64xf32>
    %484 = arith.addf %388, %483 : vector<1x64xf32>
    %485 = arith.mulf %139, %445 : vector<1x64xf32>
    %486 = arith.addf %390, %485 : vector<1x64xf32>
    %487 = arith.mulf %115, %450 : vector<1x64xf32>
    %488 = arith.addf %392, %487 : vector<1x64xf32>
    %489 = arith.mulf %139, %465 : vector<1x64xf32>
    %490 = arith.addf %394, %489 : vector<1x64xf32>
    %491 = arith.mulf %115, %470 : vector<1x64xf32>
    %492 = arith.addf %396, %491 : vector<1x64xf32>
    %493 = arith.mulf %140, %435 : vector<1x64xf32>
    %494 = arith.addf %482, %493 : vector<1x64xf32>
    %495 = arith.mulf %116, %440 : vector<1x64xf32>
    %496 = arith.addf %484, %495 : vector<1x64xf32>
    %497 = arith.mulf %140, %455 : vector<1x64xf32>
    %498 = arith.addf %486, %497 : vector<1x64xf32>
    %499 = arith.mulf %116, %460 : vector<1x64xf32>
    %500 = arith.addf %488, %499 : vector<1x64xf32>
    %501 = arith.mulf %140, %475 : vector<1x64xf32>
    %502 = arith.addf %490, %501 : vector<1x64xf32>
    %503 = arith.mulf %116, %480 : vector<1x64xf32>
    %504 = arith.addf %492, %503 : vector<1x64xf32>
    %505 = arith.mulf %141, %425 : vector<1x64xf32>
    %506 = arith.addf %410, %505 : vector<1x64xf32>
    %507 = arith.mulf %117, %430 : vector<1x64xf32>
    %508 = arith.addf %412, %507 : vector<1x64xf32>
    %509 = arith.mulf %141, %445 : vector<1x64xf32>
    %510 = arith.addf %414, %509 : vector<1x64xf32>
    %511 = arith.mulf %117, %450 : vector<1x64xf32>
    %512 = arith.addf %416, %511 : vector<1x64xf32>
    %513 = arith.mulf %141, %465 : vector<1x64xf32>
    %514 = arith.addf %418, %513 : vector<1x64xf32>
    %515 = arith.mulf %117, %470 : vector<1x64xf32>
    %516 = arith.addf %420, %515 : vector<1x64xf32>
    %517 = arith.mulf %142, %435 : vector<1x64xf32>
    %518 = arith.addf %506, %517 : vector<1x64xf32>
    %519 = arith.mulf %118, %440 : vector<1x64xf32>
    %520 = arith.addf %508, %519 : vector<1x64xf32>
    %521 = arith.mulf %142, %455 : vector<1x64xf32>
    %522 = arith.addf %510, %521 : vector<1x64xf32>
    %523 = arith.mulf %118, %460 : vector<1x64xf32>
    %524 = arith.addf %512, %523 : vector<1x64xf32>
    %525 = arith.mulf %142, %475 : vector<1x64xf32>
    %526 = arith.addf %514, %525 : vector<1x64xf32>
    %527 = arith.mulf %118, %480 : vector<1x64xf32>
    %528 = arith.addf %516, %527 : vector<1x64xf32>
    %529 = arith.mulf %172, %15 : vector<1x64xf32>
    %530 = arith.mulf %173, %16 : vector<1x64xf32>
    %531 = arith.addf %529, %530 : vector<1x64xf32>
    %532 = arith.mulf %174, %17 : vector<1x64xf32>
    %533 = arith.addf %531, %532 : vector<1x64xf32>
    %534 = arith.mulf %172, %23 : vector<1x64xf32>
    %535 = arith.mulf %173, %24 : vector<1x64xf32>
    %536 = arith.addf %534, %535 : vector<1x64xf32>
    %537 = arith.mulf %174, %25 : vector<1x64xf32>
    %538 = arith.addf %536, %537 : vector<1x64xf32>
    %539 = arith.mulf %172, %18 : vector<1x64xf32>
    %540 = arith.mulf %173, %19 : vector<1x64xf32>
    %541 = arith.addf %539, %540 : vector<1x64xf32>
    %542 = arith.mulf %174, %20 : vector<1x64xf32>
    %543 = arith.addf %541, %542 : vector<1x64xf32>
    %544 = arith.mulf %172, %26 : vector<1x64xf32>
    %545 = arith.mulf %173, %27 : vector<1x64xf32>
    %546 = arith.addf %544, %545 : vector<1x64xf32>
    %547 = arith.mulf %174, %28 : vector<1x64xf32>
    %548 = arith.addf %546, %547 : vector<1x64xf32>
    %549 = arith.mulf %175, %15 : vector<1x64xf32>
    %550 = arith.mulf %176, %16 : vector<1x64xf32>
    %551 = arith.addf %549, %550 : vector<1x64xf32>
    %552 = arith.mulf %177, %17 : vector<1x64xf32>
    %553 = arith.addf %551, %552 : vector<1x64xf32>
    %554 = arith.mulf %175, %23 : vector<1x64xf32>
    %555 = arith.mulf %176, %24 : vector<1x64xf32>
    %556 = arith.addf %554, %555 : vector<1x64xf32>
    %557 = arith.mulf %177, %25 : vector<1x64xf32>
    %558 = arith.addf %556, %557 : vector<1x64xf32>
    %559 = arith.mulf %175, %18 : vector<1x64xf32>
    %560 = arith.mulf %176, %19 : vector<1x64xf32>
    %561 = arith.addf %559, %560 : vector<1x64xf32>
    %562 = arith.mulf %177, %20 : vector<1x64xf32>
    %563 = arith.addf %561, %562 : vector<1x64xf32>
    %564 = arith.mulf %175, %26 : vector<1x64xf32>
    %565 = arith.mulf %176, %27 : vector<1x64xf32>
    %566 = arith.addf %564, %565 : vector<1x64xf32>
    %567 = arith.mulf %177, %28 : vector<1x64xf32>
    %568 = arith.addf %566, %567 : vector<1x64xf32>
    %569 = arith.mulf %178, %15 : vector<1x64xf32>
    %570 = arith.mulf %179, %16 : vector<1x64xf32>
    %571 = arith.addf %569, %570 : vector<1x64xf32>
    %572 = arith.mulf %180, %17 : vector<1x64xf32>
    %573 = arith.addf %571, %572 : vector<1x64xf32>
    %574 = arith.mulf %178, %23 : vector<1x64xf32>
    %575 = arith.mulf %179, %24 : vector<1x64xf32>
    %576 = arith.addf %574, %575 : vector<1x64xf32>
    %577 = arith.mulf %180, %25 : vector<1x64xf32>
    %578 = arith.addf %576, %577 : vector<1x64xf32>
    %579 = arith.mulf %178, %18 : vector<1x64xf32>
    %580 = arith.mulf %179, %19 : vector<1x64xf32>
    %581 = arith.addf %579, %580 : vector<1x64xf32>
    %582 = arith.mulf %180, %20 : vector<1x64xf32>
    %583 = arith.addf %581, %582 : vector<1x64xf32>
    %584 = arith.mulf %178, %26 : vector<1x64xf32>
    %585 = arith.mulf %179, %27 : vector<1x64xf32>
    %586 = arith.addf %584, %585 : vector<1x64xf32>
    %587 = arith.mulf %180, %28 : vector<1x64xf32>
    %588 = arith.addf %586, %587 : vector<1x64xf32>
    %589 = arith.mulf %143, %533 : vector<1x64xf32>
    %590 = arith.addf %494, %589 : vector<1x64xf32>
    %591 = arith.mulf %119, %538 : vector<1x64xf32>
    %592 = arith.addf %496, %591 : vector<1x64xf32>
    %593 = arith.mulf %143, %553 : vector<1x64xf32>
    %594 = arith.addf %498, %593 : vector<1x64xf32>
    %595 = arith.mulf %119, %558 : vector<1x64xf32>
    %596 = arith.addf %500, %595 : vector<1x64xf32>
    %597 = arith.mulf %143, %573 : vector<1x64xf32>
    %598 = arith.addf %502, %597 : vector<1x64xf32>
    %599 = arith.mulf %119, %578 : vector<1x64xf32>
    %600 = arith.addf %504, %599 : vector<1x64xf32>
    %601 = arith.mulf %144, %543 : vector<1x64xf32>
    %602 = arith.addf %590, %601 : vector<1x64xf32>
    %603 = arith.mulf %120, %548 : vector<1x64xf32>
    %604 = arith.addf %592, %603 : vector<1x64xf32>
    %605 = arith.mulf %144, %563 : vector<1x64xf32>
    %606 = arith.addf %594, %605 : vector<1x64xf32>
    %607 = arith.mulf %120, %568 : vector<1x64xf32>
    %608 = arith.addf %596, %607 : vector<1x64xf32>
    %609 = arith.mulf %144, %583 : vector<1x64xf32>
    %610 = arith.addf %598, %609 : vector<1x64xf32>
    %611 = arith.mulf %120, %588 : vector<1x64xf32>
    %612 = arith.addf %600, %611 : vector<1x64xf32>
    %613 = arith.mulf %145, %533 : vector<1x64xf32>
    %614 = arith.addf %518, %613 : vector<1x64xf32>
    %615 = arith.mulf %121, %538 : vector<1x64xf32>
    %616 = arith.addf %520, %615 : vector<1x64xf32>
    %617 = arith.mulf %145, %553 : vector<1x64xf32>
    %618 = arith.addf %522, %617 : vector<1x64xf32>
    %619 = arith.mulf %121, %558 : vector<1x64xf32>
    %620 = arith.addf %524, %619 : vector<1x64xf32>
    %621 = arith.mulf %145, %573 : vector<1x64xf32>
    %622 = arith.addf %526, %621 : vector<1x64xf32>
    %623 = arith.mulf %121, %578 : vector<1x64xf32>
    %624 = arith.addf %528, %623 : vector<1x64xf32>
    %625 = arith.mulf %146, %543 : vector<1x64xf32>
    %626 = arith.addf %614, %625 : vector<1x64xf32>
    %627 = arith.mulf %122, %548 : vector<1x64xf32>
    %628 = arith.addf %616, %627 : vector<1x64xf32>
    %629 = arith.mulf %146, %563 : vector<1x64xf32>
    %630 = arith.addf %618, %629 : vector<1x64xf32>
    %631 = arith.mulf %122, %568 : vector<1x64xf32>
    %632 = arith.addf %620, %631 : vector<1x64xf32>
    %633 = arith.mulf %146, %583 : vector<1x64xf32>
    %634 = arith.addf %622, %633 : vector<1x64xf32>
    %635 = arith.mulf %122, %588 : vector<1x64xf32>
    %636 = arith.addf %624, %635 : vector<1x64xf32>
    %637 = tpu.concatenate %304, %312, %604, %608, %612, %628, %632, %636 in 0 : vector<1x64xf32>, vector<1x64xf32>, vector<1x64xf32>, vector<1x64xf32>, vector<1x64xf32>, vector<1x64xf32>, vector<1x64xf32>, vector<1x64xf32> -> vector<8x64xf32>
    %cst_76 = arith.constant 1.000000e+00 : f32
    %638 = vector.broadcast %cst_76 : f32 to vector<1x8xf32>
    %639 = arith.mulf %12, %637 : vector<8x64xf32>
    %cst_77 = arith.constant dense<0.000000e+00> : vector<1x64xf32>
    %640 = tpu.matmul %638, %639, %cst_77 {dimension_numbers = #tpu.dot_dimension_numbers<[1], [0], [0], [1], [0, 0, 1, 1], [], []>} : vector<1x8xf32>, vector<8x64xf32>, vector<1x64xf32> -> vector<1x64xf32>
    %641 = vector.extract_strided_slice %640 {offsets = [0, 0], sizes = [1, 8], strides = [1, 1]} : vector<1x64xf32> to vector<1x8xf32>
    %cst_78 = arith.constant dense<0xFF800000> : vector<1xf32>
    %642 = vector.multi_reduction <maximumf>, %641, %cst_78 [1] : vector<1x8xf32> to vector<1xf32>
    %643 = vector.shape_cast %642 : vector<1xf32> to vector<1x1xf32>
    %644 = vector.extract_strided_slice %640 {offsets = [0, 8], sizes = [1, 8], strides = [1, 1]} : vector<1x64xf32> to vector<1x8xf32>
    %cst_79 = arith.constant dense<0xFF800000> : vector<1xf32>
    %645 = vector.multi_reduction <maximumf>, %644, %cst_79 [1] : vector<1x8xf32> to vector<1xf32>
    %646 = vector.shape_cast %645 : vector<1xf32> to vector<1x1xf32>
    %647 = vector.extract_strided_slice %640 {offsets = [0, 16], sizes = [1, 8], strides = [1, 1]} : vector<1x64xf32> to vector<1x8xf32>
    %cst_80 = arith.constant dense<0xFF800000> : vector<1xf32>
    %648 = vector.multi_reduction <maximumf>, %647, %cst_80 [1] : vector<1x8xf32> to vector<1xf32>
    %649 = vector.shape_cast %648 : vector<1xf32> to vector<1x1xf32>
    %650 = vector.extract_strided_slice %640 {offsets = [0, 24], sizes = [1, 8], strides = [1, 1]} : vector<1x64xf32> to vector<1x8xf32>
    %cst_81 = arith.constant dense<0xFF800000> : vector<1xf32>
    %651 = vector.multi_reduction <maximumf>, %650, %cst_81 [1] : vector<1x8xf32> to vector<1xf32>
    %652 = vector.shape_cast %651 : vector<1xf32> to vector<1x1xf32>
    %653 = vector.extract_strided_slice %640 {offsets = [0, 32], sizes = [1, 8], strides = [1, 1]} : vector<1x64xf32> to vector<1x8xf32>
    %cst_82 = arith.constant dense<0xFF800000> : vector<1xf32>
    %654 = vector.multi_reduction <maximumf>, %653, %cst_82 [1] : vector<1x8xf32> to vector<1xf32>
    %655 = vector.shape_cast %654 : vector<1xf32> to vector<1x1xf32>
    %656 = vector.extract_strided_slice %640 {offsets = [0, 40], sizes = [1, 8], strides = [1, 1]} : vector<1x64xf32> to vector<1x8xf32>
    %cst_83 = arith.constant dense<0xFF800000> : vector<1xf32>
    %657 = vector.multi_reduction <maximumf>, %656, %cst_83 [1] : vector<1x8xf32> to vector<1xf32>
    %658 = vector.shape_cast %657 : vector<1xf32> to vector<1x1xf32>
    %659 = vector.extract_strided_slice %640 {offsets = [0, 48], sizes = [1, 8], strides = [1, 1]} : vector<1x64xf32> to vector<1x8xf32>
    %cst_84 = arith.constant dense<0xFF800000> : vector<1xf32>
    %660 = vector.multi_reduction <maximumf>, %659, %cst_84 [1] : vector<1x8xf32> to vector<1xf32>
    %661 = vector.shape_cast %660 : vector<1xf32> to vector<1x1xf32>
    %662 = vector.extract_strided_slice %640 {offsets = [0, 56], sizes = [1, 8], strides = [1, 1]} : vector<1x64xf32> to vector<1x8xf32>
    %cst_85 = arith.constant dense<0xFF800000> : vector<1xf32>
    %663 = vector.multi_reduction <maximumf>, %662, %cst_85 [1] : vector<1x8xf32> to vector<1xf32>
    %664 = vector.shape_cast %663 : vector<1xf32> to vector<1x1xf32>
    %665 = tpu.concatenate %643, %646, %649, %652, %655, %658, %661, %664 in 1 : vector<1x1xf32>, vector<1x1xf32>, vector<1x1xf32>, vector<1x1xf32>, vector<1x1xf32>, vector<1x1xf32>, vector<1x1xf32>, vector<1x1xf32> -> vector<1x8xf32>
    %cst_86 = arith.constant dense<0.000000e+00> : vector<1x64xf32>
    %666 = tpu.matmul %665, %7, %cst_86 {dimension_numbers = #tpu.dot_dimension_numbers<[1], [0], [0], [1], [0, 0, 1, 1], [], []>} : vector<1x8xf32>, vector<8x64xf32>, vector<1x64xf32> -> vector<1x64xf32>
    %667 = arith.subf %640, %666 : vector<1x64xf32>
    %668 = math.exp %667 : vector<1x64xf32>
    %cst_87 = arith.constant dense<0.000000e+00> : vector<1x8xf32>
    %669 = tpu.matmul %668, %8, %cst_87 {dimension_numbers = #tpu.dot_dimension_numbers<[1], [0], [0], [1], [0, 0, 1, 1], [], []>} : vector<1x64xf32>, vector<64x8xf32>, vector<1x8xf32> -> vector<1x8xf32>
    %670 = tpu.reciprocal %669 {approx = true} : vector<1x8xf32> -> vector<1x8xf32>
    %671 = arith.mulf %669, %670 : vector<1x8xf32>
    %cst_88 = arith.constant 2.000000e+00 : f32
    %672 = vector.broadcast %cst_88 : f32 to vector<1x8xf32>
    %673 = arith.subf %672, %671 : vector<1x8xf32>
    %674 = arith.mulf %670, %673 : vector<1x8xf32>
    %cst_89 = arith.constant dense<0.000000e+00> : vector<1x64xf32>
    %675 = tpu.matmul %674, %7, %cst_89 {dimension_numbers = #tpu.dot_dimension_numbers<[1], [0], [0], [1], [0, 0, 1, 1], [], []>} : vector<1x8xf32>, vector<8x64xf32>, vector<1x64xf32> -> vector<1x64xf32>
    %676 = arith.mulf %668, %675 : vector<1x64xf32>
    %677 = tpu.concatenate %302, %310, %602, %606, %610, %626, %630, %634 in 0 : vector<1x64xf32>, vector<1x64xf32>, vector<1x64xf32>, vector<1x64xf32>, vector<1x64xf32>, vector<1x64xf32>, vector<1x64xf32>, vector<1x64xf32> -> vector<8x64xf32>
    %678 = vector.broadcast %676 : vector<1x64xf32> to vector<8x64xf32>
    %679 = arith.mulf %677, %678 : vector<8x64xf32>
    %cst_90 = arith.constant dense<0.000000e+00> : vector<8x8xf32>
    %680 = tpu.matmul %679, %8, %cst_90 {dimension_numbers = #tpu.dot_dimension_numbers<[1], [0], [0], [1], [0, 0, 1, 1], [], []>} : vector<8x64xf32>, vector<64x8xf32>, vector<8x8xf32> -> vector<8x8xf32>
    %c0_91 = arith.constant 0 : index
    %c0_92 = arith.constant 0 : index
    %c0_93 = arith.constant 0 : index
    %681 = vector.load %arg20[%c0_91, %c0_92, %c0_93] : memref<1x8x8xf32, #tpu.memory_space<vmem>>, vector<1x8x8xf32>
    %682 = vector.shape_cast %681 : vector<1x8x8xf32> to vector<8x8xf32>
    %683 = vector.shape_cast %680 : vector<8x8xf32> to vector<1x8x8xf32>
    tpu.vector_store %arg20[%c0_91, %c0_92, %c0_93], %683 {strides = array<i32>} : memref<1x8x8xf32, #tpu.memory_space<vmem>>, vector<1x8x8xf32>,
    return
  }
  func.func @transform_0(%arg0: i32) -> (i32, i32, i32) {
    %c0_i32 = arith.constant 0 : i32
    %c0_i32_0 = arith.constant 0 : i32
    %c0_i32_1 = arith.constant 0 : i32
    return %arg0, %c0_i32, %c0_i32_0 : i32, i32, i32
  }
  func.func @transform_1(%arg0: i32) -> (i32, i32, i32) {
    %c0_i32 = arith.constant 0 : i32
    %c0_i32_0 = arith.constant 0 : i32
    %c0_i32_1 = arith.constant 0 : i32
    return %arg0, %c0_i32, %c0_i32_0 : i32, i32, i32
  }
  func.func @transform_2(%arg0: i32) -> (i32, i32, i32) {
    %c0_i32 = arith.constant 0 : i32
    %c0_i32_0 = arith.constant 0 : i32
    %c0_i32_1 = arith.constant 0 : i32
    return %arg0, %c0_i32, %c0_i32_0 : i32, i32, i32
  }
  func.func @transform_3(%arg0: i32) -> (i32, i32) {
    %c0_i32 = arith.constant 0 : i32
    %c0_i32_0 = arith.constant 0 : i32
    %c0_i32_1 = arith.constant 0 : i32
    return %c0_i32, %c0_i32_0 : i32, i32
  }
  func.func @transform_4(%arg0: i32) -> (i32, i32) {
    %c0_i32 = arith.constant 0 : i32
    %c0_i32_0 = arith.constant 0 : i32
    %c0_i32_1 = arith.constant 0 : i32
    return %c0_i32, %c0_i32_0 : i32, i32
  }
  func.func @transform_5(%arg0: i32) -> (i32, i32) {
    %c0_i32 = arith.constant 0 : i32
    %c0_i32_0 = arith.constant 0 : i32
    %c0_i32_1 = arith.constant 0 : i32
    return %c0_i32, %c0_i32_0 : i32, i32
  }
  func.func @transform_6(%arg0: i32) -> (i32, i32) {
    %c0_i32 = arith.constant 0 : i32
    %c0_i32_0 = arith.constant 0 : i32
    %c0_i32_1 = arith.constant 0 : i32
    return %c0_i32, %c0_i32_0 : i32, i32
  }
  func.func @transform_7(%arg0: i32) -> (i32, i32) {
    %c0_i32 = arith.constant 0 : i32
    %c0_i32_0 = arith.constant 0 : i32
    %c0_i32_1 = arith.constant 0 : i32
    return %c0_i32, %c0_i32_0 : i32, i32
  }
  func.func @transform_8(%arg0: i32) -> (i32, i32) {
    %c0_i32 = arith.constant 0 : i32
    %c0_i32_0 = arith.constant 0 : i32
    %c0_i32_1 = arith.constant 0 : i32
    return %c0_i32, %c0_i32_0 : i32, i32
  }
  func.func @transform_9(%arg0: i32) -> (i32, i32) {
    %c0_i32 = arith.constant 0 : i32
    %c0_i32_0 = arith.constant 0 : i32
    %c0_i32_1 = arith.constant 0 : i32
    return %c0_i32, %c0_i32_0 : i32, i32
  }
  func.func @transform_10(%arg0: i32) -> (i32, i32) {
    %c0_i32 = arith.constant 0 : i32
    %c0_i32_0 = arith.constant 0 : i32
    %c0_i32_1 = arith.constant 0 : i32
    return %c0_i32, %c0_i32_0 : i32, i32
  }
  func.func @transform_11(%arg0: i32) -> (i32, i32) {
    %c0_i32 = arith.constant 0 : i32
    %c0_i32_0 = arith.constant 0 : i32
    %c0_i32_1 = arith.constant 0 : i32
    return %c0_i32, %c0_i32_0 : i32, i32
  }
  func.func @transform_12(%arg0: i32) -> (i32, i32) {
    %c0_i32 = arith.constant 0 : i32
    %c0_i32_0 = arith.constant 0 : i32
    %c0_i32_1 = arith.constant 0 : i32
    return %c0_i32, %c0_i32_0 : i32, i32
  }
  func.func @transform_13(%arg0: i32) -> (i32, i32) {
    %c0_i32 = arith.constant 0 : i32
    %c0_i32_0 = arith.constant 0 : i32
    %c0_i32_1 = arith.constant 0 : i32
    return %c0_i32, %c0_i32_0 : i32, i32
  }
  func.func @transform_14(%arg0: i32) -> (i32, i32) {
    %c0_i32 = arith.constant 0 : i32
    %c0_i32_0 = arith.constant 0 : i32
    %c0_i32_1 = arith.constant 0 : i32
    return %c0_i32, %c0_i32_0 : i32, i32
  }
  func.func @transform_15(%arg0: i32) -> (i32, i32) {
    %c0_i32 = arith.constant 0 : i32
    %c0_i32_0 = arith.constant 0 : i32
    %c0_i32_1 = arith.constant 0 : i32
    return %c0_i32, %c0_i32_0 : i32, i32
  }
  func.func @transform_16(%arg0: i32) -> (i32, i32) {
    %c0_i32 = arith.constant 0 : i32
    %c0_i32_0 = arith.constant 0 : i32
    %c0_i32_1 = arith.constant 0 : i32
    return %c0_i32, %c0_i32_0 : i32, i32
  }
  func.func @transform_17(%arg0: i32) -> (i32, i32) {
    %c0_i32 = arith.constant 0 : i32
    %c0_i32_0 = arith.constant 0 : i32
    %c0_i32_1 = arith.constant 0 : i32
    return %c0_i32, %c0_i32_0 : i32, i32
  }
  func.func @transform_18(%arg0: i32) -> (i32, i32) {
    %c0_i32 = arith.constant 0 : i32
    %c0_i32_0 = arith.constant 0 : i32
    %c0_i32_1 = arith.constant 0 : i32
    return %c0_i32, %c0_i32_0 : i32, i32
  }
  func.func @transform_19(%arg0: i32) -> (i32, i32, i32) {
    %c0_i32 = arith.constant 0 : i32
    %c0_i32_0 = arith.constant 0 : i32
    %c0_i32_1 = arith.constant 0 : i32
    return %arg0, %c0_i32, %c0_i32_0 : i32, i32, i32
  }
}

</mosaic_0001>

<llo_original>
// kernel: tpu_custom_call.1
$region0: #{tpu_custom_call.1}
  #allocation0 [shape = 'u32[]', space=smem, size = 0x4, offset = 0x4, fixed_abs, tag = 'smem constant byte address 0x4 - core index']
  #allocation1 [shape = 'u32[72,128]{1,0:T(1,128)}', space=vmem, size = 0x9000, scoped, tag = 'internal scratch']
  %s0 = inlined_call_operand.vmem [shape: f32[1,1,64], index: 0, kind: input, shape index: {}]
  %s1 = inlined_call_operand.vmem [shape: f32[1,34,64], index: 1, kind: input, shape index: {}]
  %s2 = inlined_call_operand.vmem [shape: f32[1,8,8], index: 2, kind: input, shape index: {}]
  %s3 = inlined_call_operand.vmem [shape: f32[8,64], index: 3, kind: input, shape index: {}]
  %s4 = inlined_call_operand.vmem [shape: f32[8,64], index: 4, kind: input, shape index: {}]
  %s5 = inlined_call_operand.vmem [shape: f32[64,8], index: 5, kind: input, shape index: {}]
  %s6 = inlined_call_operand.vmem [shape: f32[8,8], index: 6, kind: input, shape index: {}]
  %s7 = inlined_call_operand.vmem [shape: f32[8,128], index: 7, kind: input, shape index: {}]
  %s8 = inlined_call_operand.vmem [shape: f32[128,8], index: 8, kind: input, shape index: {}]
  %s9 = inlined_call_operand.vmem [shape: f32[128,3], index: 9, kind: input, shape index: {}]
  %s10 = inlined_call_operand.vmem [shape: f32[128,1], index: 10, kind: input, shape index: {}]
  %s11 = inlined_call_operand.vmem [shape: f32[128,1], index: 11, kind: input, shape index: {}]
  %s12 = inlined_call_operand.vmem [shape: f32[128,1], index: 12, kind: input, shape index: {}]
  %s13 = inlined_call_operand.vmem [shape: f32[128,128], index: 13, kind: input, shape index: {}]
  %s14 = inlined_call_operand.vmem [shape: f32[128,1], index: 14, kind: input, shape index: {}]
  %s15 = inlined_call_operand.vmem [shape: f32[128,1], index: 15, kind: input, shape index: {}]
  %s16 = inlined_call_operand.vmem [shape: f32[128,1], index: 16, kind: input, shape index: {}]
  %s17 = inlined_call_operand.vmem [shape: f32[48,128], index: 17, kind: input, shape index: {}]
  %s18 = inlined_call_operand.vmem [shape: f32[48,1], index: 18, kind: input, shape index: {}]
  %s19 = inlined_call_operand.hbm [shape: f32[1,8,8], index: 19, kind: output, shape index: {}]
  %s20 = sld [smem:[#allocation0]]
  $region86: #{tpu_custom_call.1} parent=0
    _
  %s22 = ssub.s32 1, %s20
  %s23 = scalar_select 0, %s22, %s20
  $region1: #{tpu_custom_call.1} parent=0
    #allocation2 [shape = 'u8[4096]{0}', space=vmem, size = 0x1000, scoped, tag = 'output window, operand 0, single buffered']
    #allocation3 [shape = 's32[1]{0}', space=sflag, size = 0x4, scoped, tag = 'scoped memory for tpu_custom_call.1']
    %24 = vsyncpa [#allocation3], 0
    // Predicated region
    $region2: #{tpu_custom_call.1} parent=1 // pred_check
      _
    $region3: #{tpu_custom_call.1} parent=1 // pred_check_branch
      %26 = sbr.rel (0) target = $region5
    $region4: #{tpu_custom_call.1} parent=1 // pred_region
      _
    $region5: #{tpu_custom_call.1} parent=1 // pred_fallthru
      _
    // Predicated region
    $region6: #{tpu_custom_call.1} parent=1 // pred_check
      _
    $region7: #{tpu_custom_call.1} parent=1 // pred_check_branch
      %28 = sbr.rel (0) target = $region9
    $region8: #{tpu_custom_call.1} parent=1 // pred_region
      _
    $region9: #{tpu_custom_call.1} parent=1 // pred_fallthru
      _
    // Predicated region
    $region10: #{tpu_custom_call.1} parent=1 // pred_check
      _
    $region11: #{tpu_custom_call.1} parent=1 // pred_check_branch
      %30 = sbr.rel (0) target = $region13
    $region12: #{tpu_custom_call.1} parent=1 // pred_region
      _
    $region13: #{tpu_custom_call.1} parent=1 // pred_fallthru
      _
    // Predicated region
    $region14: #{tpu_custom_call.1} parent=1 // pred_check
      _
    $region15: #{tpu_custom_call.1} parent=1 // pred_check_branch
      %32 = sbr.rel (0) target = $region17
    $region16: #{tpu_custom_call.1} parent=1 // pred_region
      _
    $region17: #{tpu_custom_call.1} parent=1 // pred_fallthru
      _
    // Predicated region
    $region18: #{tpu_custom_call.1} parent=1 // pred_check
      _
    $region19: #{tpu_custom_call.1} parent=1 // pred_check_branch
      %34 = sbr.rel (0) target = $region21
    $region20: #{tpu_custom_call.1} parent=1 // pred_region
      _
    $region21: #{tpu_custom_call.1} parent=1 // pred_fallthru
      _
    // Predicated region
    $region22: #{tpu_custom_call.1} parent=1 // pred_check
      _
    $region23: #{tpu_custom_call.1} parent=1 // pred_check_branch
      %36 = sbr.rel (0) target = $region25
    $region24: #{tpu_custom_call.1} parent=1 // pred_region
      _
    $region25: #{tpu_custom_call.1} parent=1 // pred_fallthru
      _
    // Predicated region
    $region26: #{tpu_custom_call.1} parent=1 // pred_check
      _
    $region27: #{tpu_custom_call.1} parent=1 // pred_check_branch
      %38 = sbr.rel (0) target = $region29
    $region28: #{tpu_custom_call.1} parent=1 // pred_region
      _
    $region29: #{tpu_custom_call.1} parent=1 // pred_fallthru
      _
    // Predicated region
    $region30: #{tpu_custom_call.1} parent=1 // pred_check
      _
    $region31: #{tpu_custom_call.1} parent=1 // pred_check_branch
      %40 = sbr.rel (0) target = $region33
    $region32: #{tpu_custom_call.1} parent=1 // pred_region
      _
    $region33: #{tpu_custom_call.1} parent=1 // pred_fallthru
      _
    // Predicated region
    $region34: #{tpu_custom_call.1} parent=1 // pred_check
      _
    $region35: #{tpu_custom_call.1} parent=1 // pred_check_branch
      %42 = sbr.rel (0) target = $region37
    $region36: #{tpu_custom_call.1} parent=1 // pred_region
      _
    $region37: #{tpu_custom_call.1} parent=1 // pred_fallthru
      _
    // Predicated region
    $region38: #{tpu_custom_call.1} parent=1 // pred_check
      _
    $region39: #{tpu_custom_call.1} parent=1 // pred_check_branch
      %44 = sbr.rel (0) target = $region41
    $region40: #{tpu_custom_call.1} parent=1 // pred_region
      _
    $region41: #{tpu_custom_call.1} parent=1 // pred_fallthru
      _
    // Predicated region
    $region42: #{tpu_custom_call.1} parent=1 // pred_check
      _
    $region43: #{tpu_custom_call.1} parent=1 // pred_check_branch
      %46 = sbr.rel (0) target = $region45
    $region44: #{tpu_custom_call.1} parent=1 // pred_region
      _
    $region45: #{tpu_custom_call.1} parent=1 // pred_fallthru
      _
    // Predicated region
    $region46: #{tpu_custom_call.1} parent=1 // pred_check
      _
    $region47: #{tpu_custom_call.1} parent=1 // pred_check_branch
      %48 = sbr.rel (0) target = $region49
    $region48: #{tpu_custom_call.1} parent=1 // pred_region
      _
    $region49: #{tpu_custom_call.1} parent=1 // pred_fallthru
      _
    // Predicated region
    $region50: #{tpu_custom_call.1} parent=1 // pred_check
      _
    $region51: #{tpu_custom_call.1} parent=1 // pred_check_branch
      %50 = sbr.rel (0) target = $region53
    $region52: #{tpu_custom_call.1} parent=1 // pred_region
      _
    $region53: #{tpu_custom_call.1} parent=1 // pred_fallthru
      _
    // Predicated region
    $region54: #{tpu_custom_call.1} parent=1 // pred_check
      _
    $region55: #{tpu_custom_call.1} parent=1 // pred_check_branch
      %52 = sbr.rel (0) target = $region57
    $region56: #{tpu_custom_call.1} parent=1 // pred_region
      _
    $region57: #{tpu_custom_call.1} parent=1 // pred_fallthru
      _
    // Predicated region
    $region58: #{tpu_custom_call.1} parent=1 // pred_check
      _
    $region59: #{tpu_custom_call.1} parent=1 // pred_check_branch
      %54 = sbr.rel (0) target = $region61
    $region60: #{tpu_custom_call.1} parent=1 // pred_region
      _
    $region61: #{tpu_custom_call.1} parent=1 // pred_fallthru
      _
    // Predicated region
    $region62: #{tpu_custom_call.1} parent=1 // pred_check
      _
    $region63: #{tpu_custom_call.1} parent=1 // pred_check_branch
      %56 = sbr.rel (0) target = $region65
    $region64: #{tpu_custom_call.1} parent=1 // pred_region
      _
    $region65: #{tpu_custom_call.1} parent=1 // pred_fallthru
      _
    // Predicated region
    $region66: #{tpu_custom_call.1} parent=1 // pred_check
      _
    $region67: #{tpu_custom_call.1} parent=1 // pred_check_branch
      %58 = sbr.rel (0) target = $region69
    $region68: #{tpu_custom_call.1} parent=1 // pred_region
      _
    $region69: #{tpu_custom_call.1} parent=1 // pred_fallthru
      _
    // Predicated region
    $region70: #{tpu_custom_call.1} parent=1 // pred_check
      _
    $region71: #{tpu_custom_call.1} parent=1 // pred_check_branch
      %60 = sbr.rel (0) target = $region73
    $region72: #{tpu_custom_call.1} parent=1 // pred_region
      _
    $region73: #{tpu_custom_call.1} parent=1 // pred_fallthru
      _
    // Predicated region
    $region74: #{tpu_custom_call.1} parent=1 // pred_check
      _
    $region75: #{tpu_custom_call.1} parent=1 // pred_check_branch
      %62 = sbr.rel (0) target = $region77
    $region76: #{tpu_custom_call.1} parent=1 // pred_region
      _
    $region77: #{tpu_custom_call.1} parent=1 // pred_fallthru
      _
    %v63 = vld [vmem:[%s0] sm:$0x1]
    %v64 = vld [vmem:[%s1] sm:$0xff]
    %v65 = vld [vmem:[%s1 + $0x8] sm:$0xff]
    %v66 = vld [vmem:[%s1 + $0x10] sm:$0xff]
    %v67 = vld [vmem:[%s1 + $0x18] sm:$0xff]
    %v68 = vld [vmem:[%s1 + $0x20] sm:$0x3]
    %v69 = vld [vmem:[%s2] sm:$0xff]
    %v70 = vld [vmem:[%s3] sm:$0xff]
    %v71 = vld [vmem:[%s4] sm:$0xff]
    %v72 = vld [vmem:[%s5] sm:$0xff]
    %v73 = vld [vmem:[%s5 + $0x8] sm:$0xff]
    %v74 = vld [vmem:[%s5 + $0x10] sm:$0xff]
    %v75 = vld [vmem:[%s5 + $0x18] sm:$0xff]
    %v76 = vld [vmem:[%s5 + $0x20] sm:$0xff]
    %v77 = vld [vmem:[%s5 + $0x28] sm:$0xff]
    %v78 = vld [vmem:[%s5 + $0x30] sm:$0xff]
    %v79 = vld [vmem:[%s5 + $0x38] sm:$0xff]
    %vm80 = vcmask 64512
    %v82 = vsel %vm80, %v69, 0
    %84 = vmatpush.msra.mxu0 0.0
    %85 = vmatpush.msra.mxu0 0.0
    %86 = vmatpush.msra.mxu0 0.0
    %87 = vmatpush.msra.mxu0 0.0
    %88 = vmatpush.msra.mxu0 0.0
    %89 = vmatpush.msra.mxu0 0.0
    %90 = vmatpush.msra.mxu0 0.0
    %91 = vmatpush.msra.mxu0 0.0
    %92 = vmatpush.msra.mxu0 0.0
    %93 = vmatpush.msra.mxu0 0.0
    %94 = vmatpush.msra.mxu0 0.0
    %95 = vmatpush.msra.mxu0 0.0
    %96 = vmatpush.msra.mxu0 0.0
    %97 = vmatpush.msra.mxu0 0.0
    %98 = vmatpush.msra.mxu0 0.0
    %99 = vmatpush.msra.mxu0 %v71
    %100 = vmatmul.f32.gmra.mxu0 %v82
    %v101 = vpop.f32.mrf.mxu0
    %v102 = vadd.f32 0.0, %v101
    %103 = vdwg.mxu0
    %v104 = vld [vmem:[%s6] sm:$0xff]
    %v106 = vsel %vm80, %v104, 0
    %108 = vmatpush.msra.mxu0 0.0
    %109 = vmatpush.msra.mxu0 0.0
    %110 = vmatpush.msra.mxu0 0.0
    %111 = vmatpush.msra.mxu0 0.0
    %112 = vmatpush.msra.mxu0 0.0
    %113 = vmatpush.msra.mxu0 0.0
    %114 = vmatpush.msra.mxu0 0.0
    %115 = vmatpush.msra.mxu0 0.0
    %116 = vmatpush.msra.mxu0 0.0
    %117 = vmatpush.msra.mxu0 0.0
    %118 = vmatpush.msra.mxu0 0.0
    %119 = vmatpush.msra.mxu0 0.0
    %120 = vmatpush.msra.mxu0 0.0
    %121 = vmatpush.msra.mxu0 0.0
    %122 = vmatpush.msra.mxu0 0.0
    %123 = vmatpush.msra.mxu0 %v69
    %124 = vmatmul.f32.gmra.mxu0 %v106
    %v125 = vpop.f32.mrf.mxu0
    %v126 = vadd.f32 0.0, %v125
    %127 = vdwg.mxu0
    %v129 = vsel %vm80, %v126, 0
    %131 = vmatpush.msra.mxu0 0.0
    %132 = vmatpush.msra.mxu0 0.0
    %133 = vmatpush.msra.mxu0 0.0
    %134 = vmatpush.msra.mxu0 0.0
    %135 = vmatpush.msra.mxu0 0.0
    %136 = vmatpush.msra.mxu0 0.0
    %137 = vmatpush.msra.mxu0 0.0
    %138 = vmatpush.msra.mxu0 0.0
    %139 = vmatpush.msra.mxu0 0.0
    %140 = vmatpush.msra.mxu0 0.0
    %141 = vmatpush.msra.mxu0 0.0
    %142 = vmatpush.msra.mxu0 0.0
    %143 = vmatpush.msra.mxu0 0.0
    %144 = vmatpush.msra.mxu0 0.0
    %145 = vmatpush.msra.mxu0 0.0
    %146 = vmatpush.msra.mxu0 %v71
    %147 = vmatmul.f32.gmra.mxu0 %v129
    %v148 = vpop.f32.mrf.mxu0
    %v149 = vadd.f32 0.0, %v148
    %150 = vdwg.mxu0
    %v151 = vmul.f32 %v102, %v70
    %v152 = vld [vmem:[%s9] sm:$0xff]
    %v153 = vld [vmem:[%s9 + $0x8] sm:$0xff]
    %v154 = vld [vmem:[%s9 + $0x10] sm:$0xff]
    %v155 = vld [vmem:[%s9 + $0x18] sm:$0xff]
    %v156 = vld [vmem:[%s9 + $0x20] sm:$0xff]
    %v157 = vld [vmem:[%s9 + $0x28] sm:$0xff]
    %v158 = vld [vmem:[%s9 + $0x30] sm:$0xff]
    %v159 = vld [vmem:[%s9 + $0x38] sm:$0xff]
    %v160 = vld [vmem:[%s9 + $0x40] sm:$0xff]
    %v161 = vld [vmem:[%s9 + $0x48] sm:$0xff]
    %v162 = vld [vmem:[%s9 + $0x50] sm:$0xff]
    %v163 = vld [vmem:[%s9 + $0x58] sm:$0xff]
    %v164 = vld [vmem:[%s9 + $0x60] sm:$0xff]
    %v165 = vld [vmem:[%s9 + $0x68] sm:$0xff]
    %v166 = vld [vmem:[%s9 + $0x70] sm:$0xff]
    %v167 = vld [vmem:[%s9 + $0x78] sm:$0xff]
    %v168 = vld [vmem:[%s10] sm:$0xff]
    %v169 = vld [vmem:[%s10 + $0x8] sm:$0xff]
    %v170 = vld [vmem:[%s10 + $0x10] sm:$0xff]
    %v171 = vld [vmem:[%s10 + $0x18] sm:$0xff]
    %v172 = vld [vmem:[%s10 + $0x20] sm:$0xff]
    %v173 = vld [vmem:[%s10 + $0x28] sm:$0xff]
    %v174 = vld [vmem:[%s10 + $0x30] sm:$0xff]
    %v175 = vld [vmem:[%s10 + $0x38] sm:$0xff]
    %v176 = vld [vmem:[%s10 + $0x40] sm:$0xff]
    %v177 = vld [vmem:[%s10 + $0x48] sm:$0xff]
    %v178 = vld [vmem:[%s10 + $0x50] sm:$0xff]
    %v179 = vld [vmem:[%s10 + $0x58] sm:$0xff]
    %v180 = vld [vmem:[%s10 + $0x60] sm:$0xff]
    %v181 = vld [vmem:[%s10 + $0x68] sm:$0xff]
    %v182 = vld [vmem:[%s10 + $0x70] sm:$0xff]
    %v183 = vld [vmem:[%s10 + $0x78] sm:$0xff]
    %185 = vset.pattern.permute.xlu0 0
    %186 = vperm.xlu0 %185, %v152
    %v187 = vpop.permute.xlu0 %186
    %190 = vset.pattern.permute.xlu0 0
    %191 = vperm.xlu0 %190, %v153
    %v192 = vpop.permute.xlu0 %191
    %195 = vset.pattern.permute.xlu0 0
    %196 = vperm.xlu0 %195, %v154
    %v197 = vpop.permute.xlu0 %196
    %200 = vset.pattern.permute.xlu0 0
    %201 = vperm.xlu0 %200, %v155
    %v202 = vpop.permute.xlu0 %201
    %205 = vset.pattern.permute.xlu0 0
    %206 = vperm.xlu0 %205, %v156
    %v207 = vpop.permute.xlu0 %206
    %210 = vset.pattern.permute.xlu0 0
    %211 = vperm.xlu0 %210, %v157
    %v212 = vpop.permute.xlu0 %211
    %215 = vset.pattern.permute.xlu0 0
    %216 = vperm.xlu0 %215, %v158
    %v217 = vpop.permute.xlu0 %216
    %220 = vset.pattern.permute.xlu0 0
    %221 = vperm.xlu0 %220, %v159
    %v222 = vpop.permute.xlu0 %221
    %225 = vset.pattern.permute.xlu0 0
    %226 = vperm.xlu0 %225, %v160
    %v227 = vpop.permute.xlu0 %226
    %230 = vset.pattern.permute.xlu0 0
    %231 = vperm.xlu0 %230, %v161
    %v232 = vpop.permute.xlu0 %231
    %235 = vset.pattern.permute.xlu0 0
    %236 = vperm.xlu0 %235, %v162
    %v237 = vpop.permute.xlu0 %236
    %240 = vset.pattern.permute.xlu0 0
    %241 = vperm.xlu0 %240, %v163
    %v242 = vpop.permute.xlu0 %241
    %245 = vset.pattern.permute.xlu0 0
    %246 = vperm.xlu0 %245, %v164
    %v247 = vpop.permute.xlu0 %246
    %250 = vset.pattern.permute.xlu0 0
    %251 = vperm.xlu0 %250, %v165
    %v252 = vpop.permute.xlu0 %251
    %255 = vset.pattern.permute.xlu0 0
    %256 = vperm.xlu0 %255, %v166
    %v257 = vpop.permute.xlu0 %256
    %260 = vset.pattern.permute.xlu0 0
    %261 = vperm.xlu0 %260, %v167
    %v262 = vpop.permute.xlu0 %261
    %v264 = vperm.slane %v151, 0
    %v265 = vmul.f32 %v187, %v264
    %v266 = vmul.f32 %v192, %v264
    %v267 = vmul.f32 %v197, %v264
    %v268 = vmul.f32 %v202, %v264
    %v269 = vmul.f32 %v207, %v264
    %v270 = vmul.f32 %v212, %v264
    %v271 = vmul.f32 %v217, %v264
    %v272 = vmul.f32 %v222, %v264
    %v273 = vmul.f32 %v227, %v264
    %v274 = vmul.f32 %v232, %v264
    %v275 = vmul.f32 %v237, %v264
    %v276 = vmul.f32 %v242, %v264
    %v277 = vmul.f32 %v247, %v264
    %v278 = vmul.f32 %v252, %v264
    %v279 = vmul.f32 %v257, %v264
    %v280 = vmul.f32 %v262, %v264
    %282 = vset.pattern.permute.xlu0 0
    %283 = vperm.xlu0 %282, %v168
    %v284 = vpop.permute.xlu0 %283
    %287 = vset.pattern.permute.xlu0 0
    %288 = vperm.xlu0 %287, %v169
    %v289 = vpop.permute.xlu0 %288
    %292 = vset.pattern.permute.xlu0 0
    %293 = vperm.xlu0 %292, %v170
    %v294 = vpop.permute.xlu0 %293
    %297 = vset.pattern.permute.xlu0 0
    %298 = vperm.xlu0 %297, %v171
    %v299 = vpop.permute.xlu0 %298
    %302 = vset.pattern.permute.xlu0 0
    %303 = vperm.xlu0 %302, %v172
    %v304 = vpop.permute.xlu0 %303
    %307 = vset.pattern.permute.xlu0 0
    %308 = vperm.xlu0 %307, %v173
    %v309 = vpop.permute.xlu0 %308
    %312 = vset.pattern.permute.xlu0 0
    %313 = vperm.xlu0 %312, %v174
    %v314 = vpop.permute.xlu0 %313
    %317 = vset.pattern.permute.xlu0 0
    %318 = vperm.xlu0 %317, %v175
    %v319 = vpop.permute.xlu0 %318
    %322 = vset.pattern.permute.xlu0 0
    %323 = vperm.xlu0 %322, %v176
    %v324 = vpop.permute.xlu0 %323
    %327 = vset.pattern.permute.xlu0 0
    %328 = vperm.xlu0 %327, %v177
    %v329 = vpop.permute.xlu0 %328
    %332 = vset.pattern.permute.xlu0 0
    %333 = vperm.xlu0 %332, %v178
    %v334 = vpop.permute.xlu0 %333
    %337 = vset.pattern.permute.xlu0 0
    %338 = vperm.xlu0 %337, %v179
    %v339 = vpop.permute.xlu0 %338
    %342 = vset.pattern.permute.xlu0 0
    %343 = vperm.xlu0 %342, %v180
    %v344 = vpop.permute.xlu0 %343
    %347 = vset.pattern.permute.xlu0 0
    %348 = vperm.xlu0 %347, %v181
    %v349 = vpop.permute.xlu0 %348
    %352 = vset.pattern.permute.xlu0 0
    %353 = vperm.xlu0 %352, %v182
    %v354 = vpop.permute.xlu0 %353
    %357 = vset.pattern.permute.xlu0 0
    %358 = vperm.xlu0 %357, %v183
    %v359 = vpop.permute.xlu0 %358
    %v361 = vadd.f32 %v284, %v265
    %v362 = vadd.f32 %v289, %v266
    %v363 = vadd.f32 %v294, %v267
    %v364 = vadd.f32 %v299, %v268
    %v365 = vadd.f32 %v304, %v269
    %v366 = vadd.f32 %v309, %v270
    %v367 = vadd.f32 %v314, %v271
    %v368 = vadd.f32 %v319, %v272
    %v369 = vadd.f32 %v324, %v273
    %v370 = vadd.f32 %v329, %v274
    %v371 = vadd.f32 %v334, %v275
    %v372 = vadd.f32 %v339, %v276
    %v373 = vadd.f32 %v344, %v277
    %v374 = vadd.f32 %v349, %v278
    %v375 = vadd.f32 %v354, %v279
    %v376 = vadd.f32 %v359, %v280
    %377 = vset.pattern.permute.xlu0 1
    %378 = vperm.xlu0 %377, %v152
    %v379 = vpop.permute.xlu0 %378
    %381 = vset.pattern.permute.xlu0 1
    %382 = vperm.xlu0 %381, %v153
    %v383 = vpop.permute.xlu0 %382
    %385 = vset.pattern.permute.xlu0 1
    %386 = vperm.xlu0 %385, %v154
    %v387 = vpop.permute.xlu0 %386
    %389 = vset.pattern.permute.xlu0 1
    %390 = vperm.xlu0 %389, %v155
    %v391 = vpop.permute.xlu0 %390
    %393 = vset.pattern.permute.xlu0 1
    %394 = vperm.xlu0 %393, %v156
    %v395 = vpop.permute.xlu0 %394
    %397 = vset.pattern.permute.xlu0 1
    %398 = vperm.xlu0 %397, %v157
    %v399 = vpop.permute.xlu0 %398
    %401 = vset.pattern.permute.xlu0 1
    %402 = vperm.xlu0 %401, %v158
    %v403 = vpop.permute.xlu0 %402
    %405 = vset.pattern.permute.xlu0 1
    %406 = vperm.xlu0 %405, %v159
    %v407 = vpop.permute.xlu0 %406
    %409 = vset.pattern.permute.xlu0 1
    %410 = vperm.xlu0 %409, %v160
    %v411 = vpop.permute.xlu0 %410
    %413 = vset.pattern.permute.xlu0 1
    %414 = vperm.xlu0 %413, %v161
    %v415 = vpop.permute.xlu0 %414
    %417 = vset.pattern.permute.xlu0 1
    %418 = vperm.xlu0 %417, %v162
    %v419 = vpop.permute.xlu0 %418
    %421 = vset.pattern.permute.xlu0 1
    %422 = vperm.xlu0 %421, %v163
    %v423 = vpop.permute.xlu0 %422
    %425 = vset.pattern.permute.xlu0 1
    %426 = vperm.xlu0 %425, %v164
    %v427 = vpop.permute.xlu0 %426
    %429 = vset.pattern.permute.xlu0 1
    %430 = vperm.xlu0 %429, %v165
    %v431 = vpop.permute.xlu0 %430
    %433 = vset.pattern.permute.xlu0 1
    %434 = vperm.xlu0 %433, %v166
    %v435 = vpop.permute.xlu0 %434
    %437 = vset.pattern.permute.xlu0 1
    %438 = vperm.xlu0 %437, %v167
    %v439 = vpop.permute.xlu0 %438
    %v441 = vperm.slane %v151, 1
    %v442 = vmul.f32 %v379, %v441
    %v443 = vmul.f32 %v383, %v441
    %v444 = vmul.f32 %v387, %v441
    %v445 = vmul.f32 %v391, %v441
    %v446 = vmul.f32 %v395, %v441
    %v447 = vmul.f32 %v399, %v441
    %v448 = vmul.f32 %v403, %v441
    %v449 = vmul.f32 %v407, %v441
    %v450 = vmul.f32 %v411, %v441
    %v451 = vmul.f32 %v415, %v441
    %v452 = vmul.f32 %v419, %v441
    %v453 = vmul.f32 %v423, %v441
    %v454 = vmul.f32 %v427, %v441
    %v455 = vmul.f32 %v431, %v441
    %v456 = vmul.f32 %v435, %v441
    %v457 = vmul.f32 %v439, %v441
    %v458 = vadd.f32 %v361, %v442
    %v459 = vadd.f32 %v362, %v443
    %v460 = vadd.f32 %v363, %v444
    %v461 = vadd.f32 %v364, %v445
    %v462 = vadd.f32 %v365, %v446
    %v463 = vadd.f32 %v366, %v447
    %v464 = vadd.f32 %v367, %v448
    %v465 = vadd.f32 %v368, %v449
    %v466 = vadd.f32 %v369, %v450
    %v467 = vadd.f32 %v370, %v451
    %v468 = vadd.f32 %v371, %v452
    %v469 = vadd.f32 %v372, %v453
    %v470 = vadd.f32 %v373, %v454
    %v471 = vadd.f32 %v374, %v455
    %v472 = vadd.f32 %v375, %v456
    %v473 = vadd.f32 %v376, %v457
    %474 = vset.pattern.permute.xlu0 2
    %475 = vperm.xlu0 %474, %v152
    %v476 = vpop.permute.xlu0 %475
    %478 = vset.pattern.permute.xlu0 2
    %479 = vperm.xlu0 %478, %v153
    %v480 = vpop.permute.xlu0 %479
    %482 = vset.pattern.permute.xlu0 2
    %483 = vperm.xlu0 %482, %v154
    %v484 = vpop.permute.xlu0 %483
    %486 = vset.pattern.permute.xlu0 2
    %487 = vperm.xlu0 %486, %v155
    %v488 = vpop.permute.xlu0 %487
    %490 = vset.pattern.permute.xlu0 2
    %491 = vperm.xlu0 %490, %v156
    %v492 = vpop.permute.xlu0 %491
    %494 = vset.pattern.permute.xlu0 2
    %495 = vperm.xlu0 %494, %v157
    %v496 = vpop.permute.xlu0 %495
    %498 = vset.pattern.permute.xlu0 2
    %499 = vperm.xlu0 %498, %v158
    %v500 = vpop.permute.xlu0 %499
    %502 = vset.pattern.permute.xlu0 2
    %503 = vperm.xlu0 %502, %v159
    %v504 = vpop.permute.xlu0 %503
    %506 = vset.pattern.permute.xlu0 2
    %507 = vperm.xlu0 %506, %v160
    %v508 = vpop.permute.xlu0 %507
    %510 = vset.pattern.permute.xlu0 2
    %511 = vperm.xlu0 %510, %v161
    %v512 = vpop.permute.xlu0 %511
    %514 = vset.pattern.permute.xlu0 2
    %515 = vperm.xlu0 %514, %v162
    %v516 = vpop.permute.xlu0 %515
    %518 = vset.pattern.permute.xlu0 2
    %519 = vperm.xlu0 %518, %v163
    %v520 = vpop.permute.xlu0 %519
    %522 = vset.pattern.permute.xlu0 2
    %523 = vperm.xlu0 %522, %v164
    %v524 = vpop.permute.xlu0 %523
    %526 = vset.pattern.permute.xlu0 2
    %527 = vperm.xlu0 %526, %v165
    %v528 = vpop.permute.xlu0 %527
    %530 = vset.pattern.permute.xlu0 2
    %531 = vperm.xlu0 %530, %v166
    %v532 = vpop.permute.xlu0 %531
    %534 = vset.pattern.permute.xlu0 2
    %535 = vperm.xlu0 %534, %v167
    %v536 = vpop.permute.xlu0 %535
    %v539 = vperm.slane %v63, 0
    %v541 = vmul.f32 %v476, %v539
    %v542 = vmul.f32 %v480, %v539
    %v543 = vmul.f32 %v484, %v539
    %v544 = vmul.f32 %v488, %v539
    %v545 = vmul.f32 %v492, %v539
    %v546 = vmul.f32 %v496, %v539
    %v547 = vmul.f32 %v500, %v539
    %v548 = vmul.f32 %v504, %v539
    %v549 = vmul.f32 %v508, %v539
    %v550 = vmul.f32 %v512, %v539
    %v551 = vmul.f32 %v516, %v539
    %v552 = vmul.f32 %v520, %v539
    %v553 = vmul.f32 %v524, %v539
    %v554 = vmul.f32 %v528, %v539
    %v555 = vmul.f32 %v532, %v539
    %v556 = vmul.f32 %v536, %v539
    %v557 = vadd.f32 %v458, %v541
    %v558 = vadd.f32 %v459, %v542
    %v559 = vadd.f32 %v460, %v543
    %v560 = vadd.f32 %v461, %v544
    %v561 = vadd.f32 %v462, %v545
    %v562 = vadd.f32 %v463, %v546
    %v563 = vadd.f32 %v464, %v547
    %v564 = vadd.f32 %v465, %v548
    %v565 = vadd.f32 %v466, %v549
    %v566 = vadd.f32 %v467, %v550
    %v567 = vadd.f32 %v468, %v551
    %v568 = vadd.f32 %v469, %v552
    %v569 = vadd.f32 %v470, %v553
    %v570 = vadd.f32 %v471, %v554
    %v571 = vadd.f32 %v472, %v555
    %v572 = vadd.f32 %v473, %v556
    %v573 = vld [vmem:[%s7] sm:$0xff]
    %v574 = vld [vmem:[%s8] sm:$0xff]
    %v575 = vld [vmem:[%s8 + $0x8] sm:$0xff]
    %v576 = vld [vmem:[%s8 + $0x10] sm:$0xff]
    %v577 = vld [vmem:[%s8 + $0x18] sm:$0xff]
    %v578 = vld [vmem:[%s8 + $0x20] sm:$0xff]
    %v579 = vld [vmem:[%s8 + $0x28] sm:$0xff]
    %v580 = vld [vmem:[%s8 + $0x30] sm:$0xff]
    %v581 = vld [vmem:[%s8 + $0x38] sm:$0xff]
    %v582 = vld [vmem:[%s8 + $0x40] sm:$0xff]
    %v583 = vld [vmem:[%s8 + $0x48] sm:$0xff]
    %v584 = vld [vmem:[%s8 + $0x50] sm:$0xff]
    %v585 = vld [vmem:[%s8 + $0x58] sm:$0xff]
    %v586 = vld [vmem:[%s8 + $0x60] sm:$0xff]
    %v587 = vld [vmem:[%s8 + $0x68] sm:$0xff]
    %v588 = vld [vmem:[%s8 + $0x70] sm:$0xff]
    %v589 = vld [vmem:[%s8 + $0x78] sm:$0xff]
    %v590 = vld [vmem:[%s11] sm:$0xff]
    %v591 = vld [vmem:[%s11 + $0x8] sm:$0xff]
    %v592 = vld [vmem:[%s11 + $0x10] sm:$0xff]
    %v593 = vld [vmem:[%s11 + $0x18] sm:$0xff]
    %v594 = vld [vmem:[%s11 + $0x20] sm:$0xff]
    %v595 = vld [vmem:[%s11 + $0x28] sm:$0xff]
    %v596 = vld [vmem:[%s11 + $0x30] sm:$0xff]
    %v597 = vld [vmem:[%s11 + $0x38] sm:$0xff]
    %v598 = vld [vmem:[%s11 + $0x40] sm:$0xff]
    %v599 = vld [vmem:[%s11 + $0x48] sm:$0xff]
    %v600 = vld [vmem:[%s11 + $0x50] sm:$0xff]
    %v601 = vld [vmem:[%s11 + $0x58] sm:$0xff]
    %v602 = vld [vmem:[%s11 + $0x60] sm:$0xff]
    %v603 = vld [vmem:[%s11 + $0x68] sm:$0xff]
    %v604 = vld [vmem:[%s11 + $0x70] sm:$0xff]
    %v605 = vld [vmem:[%s11 + $0x78] sm:$0xff]
    %v606 = vld [vmem:[%s12] sm:$0xff]
    %v607 = vld [vmem:[%s12 + $0x8] sm:$0xff]
    %v608 = vld [vmem:[%s12 + $0x10] sm:$0xff]
    %v609 = vld [vmem:[%s12 + $0x18] sm:$0xff]
    %v610 = vld [vmem:[%s12 + $0x20] sm:$0xff]
    %v611 = vld [vmem:[%s12 + $0x28] sm:$0xff]
    %v612 = vld [vmem:[%s12 + $0x30] sm:$0xff]
    %v613 = vld [vmem:[%s12 + $0x38] sm:$0xff]
    %v614 = vld [vmem:[%s12 + $0x40] sm:$0xff]
    %v615 = vld [vmem:[%s12 + $0x48] sm:$0xff]
    %v616 = vld [vmem:[%s12 + $0x50] sm:$0xff]
    %v617 = vld [vmem:[%s12 + $0x58] sm:$0xff]
    %v618 = vld [vmem:[%s12 + $0x60] sm:$0xff]
    %v619 = vld [vmem:[%s12 + $0x68] sm:$0xff]
    %v620 = vld [vmem:[%s12 + $0x70] sm:$0xff]
    %v621 = vld [vmem:[%s12 + $0x78] sm:$0xff]
    %622 = vmatpush.msra.mxu0 %v572
    %623 = vmatpush.msra.mxu0 %v571
    %624 = vmatpush.msra.mxu0 %v570
    %625 = vmatpush.msra.mxu0 %v569
    %626 = vmatpush.msra.mxu0 %v568
    %627 = vmatpush.msra.mxu0 %v567
    %628 = vmatpush.msra.mxu0 %v566
    %629 = vmatpush.msra.mxu0 %v565
    %630 = vmatpush.msra.mxu0 %v564
    %631 = vmatpush.msra.mxu0 %v563
    %632 = vmatpush.msra.mxu0 %v562
    %633 = vmatpush.msra.mxu0 %v561
    %634 = vmatpush.msra.mxu0 %v560
    %635 = vmatpush.msra.mxu0 %v559
    %636 = vmatpush.msra.mxu0 %v558
    %637 = vmatpush.msra.mxu0 %v557
    %638 = vmatmul.f32.gmra.mxu0 %v573
    %v639 = vpop.f32.mrf.mxu0
    %v640 = vadd.f32 0.0, %v639
    %641 = vdwg.mxu0
    %v643 = vsel %vm80, %v574, 0
    %v646 = vsel %vm80, %v575, 0
    %v649 = vsel %vm80, %v576, 0
    %v652 = vsel %vm80, %v577, 0
    %v655 = vsel %vm80, %v578, 0
    %v658 = vsel %vm80, %v579, 0
    %v661 = vsel %vm80, %v580, 0
    %v664 = vsel %vm80, %v581, 0
    %v667 = vsel %vm80, %v582, 0
    %v670 = vsel %vm80, %v583, 0
    %v673 = vsel %vm80, %v584, 0
    %v676 = vsel %vm80, %v585, 0
    %v679 = vsel %vm80, %v586, 0
    %v682 = vsel %vm80, %v587, 0
    %v685 = vsel %vm80, %v588, 0
    %v688 = vsel %vm80, %v589, 0
    %690 = vmatpush.msra.mxu0 0.0
    %691 = vmatpush.msra.mxu0 0.0
    %692 = vmatpush.msra.mxu0 0.0
    %693 = vmatpush.msra.mxu0 0.0
    %694 = vmatpush.msra.mxu0 0.0
    %695 = vmatpush.msra.mxu0 0.0
    %696 = vmatpush.msra.mxu0 0.0
    %697 = vmatpush.msra.mxu0 0.0
    %698 = vmatpush.msra.mxu0 0.0
    %699 = vmatpush.msra.mxu0 0.0
    %700 = vmatpush.msra.mxu0 0.0
    %701 = vmatpush.msra.mxu0 0.0
    %702 = vmatpush.msra.mxu0 0.0
    %703 = vmatpush.msra.mxu0 0.0
    %704 = vmatpush.msra.mxu0 0.0
    %705 = vmatpush.msra.mxu0 %v640
    %706 = vmatmul.f32.gmra.mxu0 %v643
    %v707 = vpop.f32.mrf.mxu0
    %v708 = vadd.f32 0.0, %v707
    %709 = vmatmul.f32.gmra.mxu0 %v646
    %v710 = vpop.f32.mrf.mxu0
    %v711 = vadd.f32 0.0, %v710
    %712 = vmatmul.f32.gmra.mxu0 %v649
    %v713 = vpop.f32.mrf.mxu0
    %v714 = vadd.f32 0.0, %v713
    %715 = vmatmul.f32.gmra.mxu0 %v652
    %v716 = vpop.f32.mrf.mxu0
    %v717 = vadd.f32 0.0, %v716
    %718 = vmatmul.f32.gmra.mxu0 %v655
    %v719 = vpop.f32.mrf.mxu0
    %v720 = vadd.f32 0.0, %v719
    %721 = vmatmul.f32.gmra.mxu0 %v658
    %v722 = vpop.f32.mrf.mxu0
    %v723 = vadd.f32 0.0, %v722
    %724 = vmatmul.f32.gmra.mxu0 %v661
    %v725 = vpop.f32.mrf.mxu0
    %v726 = vadd.f32 0.0, %v725
    %727 = vmatmul.f32.gmra.mxu0 %v664
    %v728 = vpop.f32.mrf.mxu0
    %v729 = vadd.f32 0.0, %v728
    %730 = vmatmul.f32.gmra.mxu0 %v667
    %v731 = vpop.f32.mrf.mxu0
    %v732 = vadd.f32 0.0, %v731
    %733 = vmatmul.f32.gmra.mxu0 %v670
    %v734 = vpop.f32.mrf.mxu0
    %v735 = vadd.f32 0.0, %v734
    %736 = vmatmul.f32.gmra.mxu0 %v673
    %v737 = vpop.f32.mrf.mxu0
    %v738 = vadd.f32 0.0, %v737
    %739 = vmatmul.f32.gmra.mxu0 %v676
    %v740 = vpop.f32.mrf.mxu0
    %v741 = vadd.f32 0.0, %v740
    %742 = vmatmul.f32.gmra.mxu0 %v679
    %v743 = vpop.f32.mrf.mxu0
    %v744 = vadd.f32 0.0, %v743
    %745 = vmatmul.f32.gmra.mxu0 %v682
    %v746 = vpop.f32.mrf.mxu0
    %v747 = vadd.f32 0.0, %v746
    %748 = vmatmul.f32.gmra.mxu0 %v685
    %v749 = vpop.f32.mrf.mxu0
    %v750 = vadd.f32 0.0, %v749
    %751 = vmatmul.f32.gmra.mxu0 %v688
    %v752 = vpop.f32.mrf.mxu0
    %v753 = vadd.f32 0.0, %v752
    %754 = vdwg.mxu0
    %v755 = vsub.f32 %v557, %v708
    %v756 = vsub.f32 %v558, %v711
    %v757 = vsub.f32 %v559, %v714
    %v758 = vsub.f32 %v560, %v717
    %v759 = vsub.f32 %v561, %v720
    %v760 = vsub.f32 %v562, %v723
    %v761 = vsub.f32 %v563, %v726
    %v762 = vsub.f32 %v564, %v729
    %v763 = vsub.f32 %v565, %v732
    %v764 = vsub.f32 %v566, %v735
    %v765 = vsub.f32 %v567, %v738
    %v766 = vsub.f32 %v568, %v741
    %v767 = vsub.f32 %v569, %v744
    %v768 = vsub.f32 %v570, %v747
    %v769 = vsub.f32 %v571, %v750
    %v770 = vsub.f32 %v572, %v753
    %v771 = vmul.f32 %v755, %v755
    %v772 = vmul.f32 %v756, %v756
    %v773 = vmul.f32 %v757, %v757
    %v774 = vmul.f32 %v758, %v758
    %v775 = vmul.f32 %v759, %v759
    %v776 = vmul.f32 %v760, %v760
    %v777 = vmul.f32 %v761, %v761
    %v778 = vmul.f32 %v762, %v762
    %v779 = vmul.f32 %v763, %v763
    %v780 = vmul.f32 %v764, %v764
    %v781 = vmul.f32 %v765, %v765
    %v782 = vmul.f32 %v766, %v766
    %v783 = vmul.f32 %v767, %v767
    %v784 = vmul.f32 %v768, %v768
    %v785 = vmul.f32 %v769, %v769
    %v786 = vmul.f32 %v770, %v770
    %787 = vmatpush.msra.mxu0 %v786
    %788 = vmatpush.msra.mxu0 %v785
    %789 = vmatpush.msra.mxu0 %v784
    %790 = vmatpush.msra.mxu0 %v783
    %791 = vmatpush.msra.mxu0 %v782
    %792 = vmatpush.msra.mxu0 %v781
    %793 = vmatpush.msra.mxu0 %v780
    %794 = vmatpush.msra.mxu0 %v779
    %795 = vmatpush.msra.mxu0 %v778
    %796 = vmatpush.msra.mxu0 %v777
    %797 = vmatpush.msra.mxu0 %v776
    %798 = vmatpush.msra.mxu0 %v775
    %799 = vmatpush.msra.mxu0 %v774
    %800 = vmatpush.msra.mxu0 %v773
    %801 = vmatpush.msra.mxu0 %v772
    %802 = vmatpush.msra.mxu0 %v771
    %803 = vmatmul.f32.gmra.mxu0 %v573
    %v804 = vpop.f32.mrf.mxu0
    %v805 = vadd.f32 0.0, %v804
    %806 = vdwg.mxu0
    %807 = vmatpush.msra.mxu0 0.0
    %808 = vmatpush.msra.mxu0 0.0
    %809 = vmatpush.msra.mxu0 0.0
    %810 = vmatpush.msra.mxu0 0.0
    %811 = vmatpush.msra.mxu0 0.0
    %812 = vmatpush.msra.mxu0 0.0
    %813 = vmatpush.msra.mxu0 0.0
    %814 = vmatpush.msra.mxu0 0.0
    %815 = vmatpush.msra.mxu0 0.0
    %816 = vmatpush.msra.mxu0 0.0
    %817 = vmatpush.msra.mxu0 0.0
    %818 = vmatpush.msra.mxu0 0.0
    %819 = vmatpush.msra.mxu0 0.0
    %820 = vmatpush.msra.mxu0 0.0
    %821 = vmatpush.msra.mxu0 0.0
    %822 = vmatpush.msra.mxu0 %v805
    %823 = vmatmul.f32.gmra.mxu0 %v643
    %v824 = vpop.f32.mrf.mxu0
    %v825 = vadd.f32 1e-05, %v824
    %826 = vmatmul.f32.gmra.mxu0 %v646
    %v827 = vpop.f32.mrf.mxu0
    %v828 = vadd.f32 1e-05, %v827
    %829 = vmatmul.f32.gmra.mxu0 %v649
    %v830 = vpop.f32.mrf.mxu0
    %v831 = vadd.f32 1e-05, %v830
    %832 = vmatmul.f32.gmra.mxu0 %v652
    %v833 = vpop.f32.mrf.mxu0
    %v834 = vadd.f32 1e-05, %v833
    %835 = vmatmul.f32.gmra.mxu0 %v655
    %v836 = vpop.f32.mrf.mxu0
    %v837 = vadd.f32 1e-05, %v836
    %838 = vmatmul.f32.gmra.mxu0 %v658
    %v839 = vpop.f32.mrf.mxu0
    %v840 = vadd.f32 1e-05, %v839
    %841 = vmatmul.f32.gmra.mxu0 %v661
    %v842 = vpop.f32.mrf.mxu0
    %v843 = vadd.f32 1e-05, %v842
    %844 = vmatmul.f32.gmra.mxu0 %v664
    %v845 = vpop.f32.mrf.mxu0
    %v846 = vadd.f32 1e-05, %v845
    %847 = vmatmul.f32.gmra.mxu0 %v667
    %v848 = vpop.f32.mrf.mxu0
    %v849 = vadd.f32 1e-05, %v848
    %850 = vmatmul.f32.gmra.mxu0 %v670
    %v851 = vpop.f32.mrf.mxu0
    %v852 = vadd.f32 1e-05, %v851
    %853 = vmatmul.f32.gmra.mxu0 %v673
    %v854 = vpop.f32.mrf.mxu0
    %v855 = vadd.f32 1e-05, %v854
    %856 = vmatmul.f32.gmra.mxu0 %v676
    %v857 = vpop.f32.mrf.mxu0
    %v858 = vadd.f32 1e-05, %v857
    %859 = vmatmul.f32.gmra.mxu0 %v679
    %v860 = vpop.f32.mrf.mxu0
    %v861 = vadd.f32 1e-05, %v860
    %862 = vmatmul.f32.gmra.mxu0 %v682
    %v863 = vpop.f32.mrf.mxu0
    %v864 = vadd.f32 1e-05, %v863
    %865 = vmatmul.f32.gmra.mxu0 %v685
    %v866 = vpop.f32.mrf.mxu0
    %v867 = vadd.f32 1e-05, %v866
    %868 = vmatmul.f32.gmra.mxu0 %v688
    %v869 = vpop.f32.mrf.mxu0
    %v870 = vadd.f32 1e-05, %v869
    %871 = vdwg.mxu0
    %v872 = vrsqrt.pop %v825
    %v873 = vmul.f32 %v872, %v825
    %v874 = vmul.f32 %v873, %v872
    %v875 = vmul.f32 0.5, %v874
    %v876 = vsub.f32 1.5, %v875
    %v877 = vmul.f32 %v872, %v876
    %vm878 = vweird.f32 %v825
    %vm879 = vweird.f32 %v872
    %vm880 = vmor %vm878, %vm879
    %v881 = vsel %vm880, %v872, %v877
    %v882 = vrsqrt.pop %v828
    %v883 = vmul.f32 %v882, %v828
    %v884 = vmul.f32 %v883, %v882
    %v885 = vmul.f32 0.5, %v884
    %v886 = vsub.f32 1.5, %v885
    %v887 = vmul.f32 %v882, %v886
    %vm888 = vweird.f32 %v828
    %vm889 = vweird.f32 %v882
    %vm890 = vmor %vm888, %vm889
    %v891 = vsel %vm890, %v882, %v887
    %v892 = vrsqrt.pop %v831
    %v893 = vmul.f32 %v892, %v831
    %v894 = vmul.f32 %v893, %v892
    %v895 = vmul.f32 0.5, %v894
    %v896 = vsub.f32 1.5, %v895
    %v897 = vmul.f32 %v892, %v896
    %vm898 = vweird.f32 %v831
    %vm899 = vweird.f32 %v892
    %vm900 = vmor %vm898, %vm899
    %v901 = vsel %vm900, %v892, %v897
    %v902 = vrsqrt.pop %v834
    %v903 = vmul.f32 %v902, %v834
    %v904 = vmul.f32 %v903, %v902
    %v905 = vmul.f32 0.5, %v904
    %v906 = vsub.f32 1.5, %v905
    %v907 = vmul.f32 %v902, %v906
    %vm908 = vweird.f32 %v834
    %vm909 = vweird.f32 %v902
    %vm910 = vmor %vm908, %vm909
    %v911 = vsel %vm910, %v902, %v907
    %v912 = vrsqrt.pop %v837
    %v913 = vmul.f32 %v912, %v837
    %v914 = vmul.f32 %v913, %v912
    %v915 = vmul.f32 0.5, %v914
    %v916 = vsub.f32 1.5, %v915
    %v917 = vmul.f32 %v912, %v916
    %vm918 = vweird.f32 %v837
    %vm919 = vweird.f32 %v912
    %vm920 = vmor %vm918, %vm919
    %v921 = vsel %vm920, %v912, %v917
    %v922 = vrsqrt.pop %v840
    %v923 = vmul.f32 %v922, %v840
    %v924 = vmul.f32 %v923, %v922
    %v925 = vmul.f32 0.5, %v924
    %v926 = vsub.f32 1.5, %v925
    %v927 = vmul.f32 %v922, %v926
    %vm928 = vweird.f32 %v840
    %vm929 = vweird.f32 %v922
    %vm930 = vmor %vm928, %vm929
    %v931 = vsel %vm930, %v922, %v927
    %v932 = vrsqrt.pop %v843
    %v933 = vmul.f32 %v932, %v843
    %v934 = vmul.f32 %v933, %v932
    %v935 = vmul.f32 0.5, %v934
    %v936 = vsub.f32 1.5, %v935
    %v937 = vmul.f32 %v932, %v936
    %vm938 = vweird.f32 %v843
    %vm939 = vweird.f32 %v932
    %vm940 = vmor %vm938, %vm939
    %v941 = vsel %vm940, %v932, %v937
    %v942 = vrsqrt.pop %v846
    %v943 = vmul.f32 %v942, %v846
    %v944 = vmul.f32 %v943, %v942
    %v945 = vmul.f32 0.5, %v944
    %v946 = vsub.f32 1.5, %v945
    %v947 = vmul.f32 %v942, %v946
    %vm948 = vweird.f32 %v846
    %vm949 = vweird.f32 %v942
    %vm950 = vmor %vm948, %vm949
    %v951 = vsel %vm950, %v942, %v947
    %v952 = vrsqrt.pop %v849
    %v953 = vmul.f32 %v952, %v849
    %v954 = vmul.f32 %v953, %v952
    %v955 = vmul.f32 0.5, %v954
    %v956 = vsub.f32 1.5, %v955
    %v957 = vmul.f32 %v952, %v956
    %vm958 = vweird.f32 %v849
    %vm959 = vweird.f32 %v952
    %vm960 = vmor %vm958, %vm959
    %v961 = vsel %vm960, %v952, %v957
    %v962 = vrsqrt.pop %v852
    %v963 = vmul.f32 %v962, %v852
    %v964 = vmul.f32 %v963, %v962
    %v965 = vmul.f32 0.5, %v964
    %v966 = vsub.f32 1.5, %v965
    %v967 = vmul.f32 %v962, %v966
    %vm968 = vweird.f32 %v852
    %vm969 = vweird.f32 %v962
    %vm970 = vmor %vm968, %vm969
    %v971 = vsel %vm970, %v962, %v967
    %v972 = vrsqrt.pop %v855
    %v973 = vmul.f32 %v972, %v855
    %v974 = vmul.f32 %v973, %v972
    %v975 = vmul.f32 0.5, %v974
    %v976 = vsub.f32 1.5, %v975
    %v977 = vmul.f32 %v972, %v976
    %vm978 = vweird.f32 %v855
    %vm979 = vweird.f32 %v972
    %vm980 = vmor %vm978, %vm979
    %v981 = vsel %vm980, %v972, %v977
    %v982 = vrsqrt.pop %v858
    %v983 = vmul.f32 %v982, %v858
    %v984 = vmul.f32 %v983, %v982
    %v985 = vmul.f32 0.5, %v984
    %v986 = vsub.f32 1.5, %v985
    %v987 = vmul.f32 %v982, %v986
    %vm988 = vweird.f32 %v858
    %vm989 = vweird.f32 %v982
    %vm990 = vmor %vm988, %vm989
    %v991 = vsel %vm990, %v982, %v987
    %v992 = vrsqrt.pop %v861
    %v993 = vmul.f32 %v992, %v861
    %v994 = vmul.f32 %v993, %v992
    %v995 = vmul.f32 0.5, %v994
    %v996 = vsub.f32 1.5, %v995
    %v997 = vmul.f32 %v992, %v996
    %vm998 = vweird.f32 %v861
    %vm999 = vweird.f32 %v992
    %vm1000 = vmor %vm998, %vm999
    %v1001 = vsel %vm1000, %v992, %v997
    %v1002 = vrsqrt.pop %v864
    %v1003 = vmul.f32 %v1002, %v864
    %v1004 = vmul.f32 %v1003, %v1002
    %v1005 = vmul.f32 0.5, %v1004
    %v1006 = vsub.f32 1.5, %v1005
    %v1007 = vmul.f32 %v1002, %v1006
    %vm1008 = vweird.f32 %v864
    %vm1009 = vweird.f32 %v1002
    %vm1010 = vmor %vm1008, %vm1009
    %v1011 = vsel %vm1010, %v1002, %v1007
    %v1012 = vrsqrt.pop %v867
    %v1013 = vmul.f32 %v1012, %v867
    %v1014 = vmul.f32 %v1013, %v1012
    %v1015 = vmul.f32 0.5, %v1014
    %v1016 = vsub.f32 1.5, %v1015
    %v1017 = vmul.f32 %v1012, %v1016
    %vm1018 = vweird.f32 %v867
    %vm1019 = vweird.f32 %v1012
    %vm1020 = vmor %vm1018, %vm1019
    %v1021 = vsel %vm1020, %v1012, %v1017
    %v1022 = vrsqrt.pop %v870
    %v1023 = vmul.f32 %v1022, %v870
    %v1024 = vmul.f32 %v1023, %v1022
    %v1025 = vmul.f32 0.5, %v1024
    %v1026 = vsub.f32 1.5, %v1025
    %v1027 = vmul.f32 %v1022, %v1026
    %vm1028 = vweird.f32 %v870
    %vm1029 = vweird.f32 %v1022
    %vm1030 = vmor %vm1028, %vm1029
    %v1031 = vsel %vm1030, %v1022, %v1027
    %v1032 = vmul.f32 %v755, %v881
    %v1033 = vmul.f32 %v756, %v891
    %v1034 = vmul.f32 %v757, %v901
    %v1035 = vmul.f32 %v758, %v911
    %v1036 = vmul.f32 %v759, %v921
    %v1037 = vmul.f32 %v760, %v931
    %v1038 = vmul.f32 %v761, %v941
    %v1039 = vmul.f32 %v762, %v951
    %v1040 = vmul.f32 %v763, %v961
    %v1041 = vmul.f32 %v764, %v971
    %v1042 = vmul.f32 %v765, %v981
    %v1043 = vmul.f32 %v766, %v991
    %v1044 = vmul.f32 %v767, %v1001
    %v1045 = vmul.f32 %v768, %v1011
    %v1046 = vmul.f32 %v769, %v1021
    %v1047 = vmul.f32 %v770, %v1031
    %1049 = vset.pattern.permute.xlu0 0
    %1050 = vperm.xlu0 %1049, %v590
    %v1051 = vpop.permute.xlu0 %1050
    %1054 = vset.pattern.permute.xlu0 0
    %1055 = vperm.xlu0 %1054, %v591
    %v1056 = vpop.permute.xlu0 %1055
    %1059 = vset.pattern.permute.xlu0 0
    %1060 = vperm.xlu0 %1059, %v592
    %v1061 = vpop.permute.xlu0 %1060
    %1064 = vset.pattern.permute.xlu0 0
    %1065 = vperm.xlu0 %1064, %v593
    %v1066 = vpop.permute.xlu0 %1065
    %1069 = vset.pattern.permute.xlu0 0
    %1070 = vperm.xlu0 %1069, %v594
    %v1071 = vpop.permute.xlu0 %1070
    %1074 = vset.pattern.permute.xlu0 0
    %1075 = vperm.xlu0 %1074, %v595
    %v1076 = vpop.permute.xlu0 %1075
    %1079 = vset.pattern.permute.xlu0 0
    %1080 = vperm.xlu0 %1079, %v596
    %v1081 = vpop.permute.xlu0 %1080
    %1084 = vset.pattern.permute.xlu0 0
    %1085 = vperm.xlu0 %1084, %v597
    %v1086 = vpop.permute.xlu0 %1085
    %1089 = vset.pattern.permute.xlu0 0
    %1090 = vperm.xlu0 %1089, %v598
    %v1091 = vpop.permute.xlu0 %1090
    %1094 = vset.pattern.permute.xlu0 0
    %1095 = vperm.xlu0 %1094, %v599
    %v1096 = vpop.permute.xlu0 %1095
    %1099 = vset.pattern.permute.xlu0 0
    %1100 = vperm.xlu0 %1099, %v600
    %v1101 = vpop.permute.xlu0 %1100
    %1104 = vset.pattern.permute.xlu0 0
    %1105 = vperm.xlu0 %1104, %v601
    %v1106 = vpop.permute.xlu0 %1105
    %1109 = vset.pattern.permute.xlu0 0
    %1110 = vperm.xlu0 %1109, %v602
    %v1111 = vpop.permute.xlu0 %1110
    %1114 = vset.pattern.permute.xlu0 0
    %1115 = vperm.xlu0 %1114, %v603
    %v1116 = vpop.permute.xlu0 %1115
    %1119 = vset.pattern.permute.xlu0 0
    %1120 = vperm.xlu0 %1119, %v604
    %v1121 = vpop.permute.xlu0 %1120
    %1124 = vset.pattern.permute.xlu0 0
    %1125 = vperm.xlu0 %1124, %v605
    %v1126 = vpop.permute.xlu0 %1125
    %v1128 = vmul.f32 %v1032, %v1051
    %v1129 = vmul.f32 %v1033, %v1056
    %v1130 = vmul.f32 %v1034, %v1061
    %v1131 = vmul.f32 %v1035, %v1066
    %v1132 = vmul.f32 %v1036, %v1071
    %v1133 = vmul.f32 %v1037, %v1076
    %v1134 = vmul.f32 %v1038, %v1081
    %v1135 = vmul.f32 %v1039, %v1086
    %v1136 = vmul.f32 %v1040, %v1091
    %v1137 = vmul.f32 %v1041, %v1096
    %v1138 = vmul.f32 %v1042, %v1101
    %v1139 = vmul.f32 %v1043, %v1106
    %v1140 = vmul.f32 %v1044, %v1111
    %v1141 = vmul.f32 %v1045, %v1116
    %v1142 = vmul.f32 %v1046, %v1121
    %v1143 = vmul.f32 %v1047, %v1126
    %1145 = vset.pattern.permute.xlu0 0
    %1146 = vperm.xlu0 %1145, %v606
    %v1147 = vpop.permute.xlu0 %1146
    %1150 = vset.pattern.permute.xlu0 0
    %1151 = vperm.xlu0 %1150, %v607
    %v1152 = vpop.permute.xlu0 %1151
    %1155 = vset.pattern.permute.xlu0 0
    %1156 = vperm.xlu0 %1155, %v608
    %v1157 = vpop.permute.xlu0 %1156
    %1160 = vset.pattern.permute.xlu0 0
    %1161 = vperm.xlu0 %1160, %v609
    %v1162 = vpop.permute.xlu0 %1161
    %1165 = vset.pattern.permute.xlu0 0
    %1166 = vperm.xlu0 %1165, %v610
    %v1167 = vpop.permute.xlu0 %1166
    %1170 = vset.pattern.permute.xlu0 0
    %1171 = vperm.xlu0 %1170, %v611
    %v1172 = vpop.permute.xlu0 %1171
    %1175 = vset.pattern.permute.xlu0 0
    %1176 = vperm.xlu0 %1175, %v612
    %v1177 = vpop.permute.xlu0 %1176
    %1180 = vset.pattern.permute.xlu0 0
    %1181 = vperm.xlu0 %1180, %v613
    %v1182 = vpop.permute.xlu0 %1181
    %1185 = vset.pattern.permute.xlu0 0
    %1186 = vperm.xlu0 %1185, %v614
    %v1187 = vpop.permute.xlu0 %1186
    %1190 = vset.pattern.permute.xlu0 0
    %1191 = vperm.xlu0 %1190, %v615
    %v1192 = vpop.permute.xlu0 %1191
    %1195 = vset.pattern.permute.xlu0 0
    %1196 = vperm.xlu0 %1195, %v616
    %v1197 = vpop.permute.xlu0 %1196
    %1200 = vset.pattern.permute.xlu0 0
    %1201 = vperm.xlu0 %1200, %v617
    %v1202 = vpop.permute.xlu0 %1201
    %1205 = vset.pattern.permute.xlu0 0
    %1206 = vperm.xlu0 %1205, %v618
    %v1207 = vpop.permute.xlu0 %1206
    %1210 = vset.pattern.permute.xlu0 0
    %1211 = vperm.xlu0 %1210, %v619
    %v1212 = vpop.permute.xlu0 %1211
    %1215 = vset.pattern.permute.xlu0 0
    %1216 = vperm.xlu0 %1215, %v620
    %v1217 = vpop.permute.xlu0 %1216
    %1220 = vset.pattern.permute.xlu0 0
    %1221 = vperm.xlu0 %1220, %v621
    %v1222 = vpop.permute.xlu0 %1221
    %v1224 = vadd.f32 %v1128, %v1147
    %v1225 = vadd.f32 %v1129, %v1152
    %v1226 = vadd.f32 %v1130, %v1157
    %v1227 = vadd.f32 %v1131, %v1162
    %v1228 = vadd.f32 %v1132, %v1167
    %v1229 = vadd.f32 %v1133, %v1172
    %v1230 = vadd.f32 %v1134, %v1177
    %v1231 = vadd.f32 %v1135, %v1182
    %v1232 = vadd.f32 %v1136, %v1187
    %v1233 = vadd.f32 %v1137, %v1192
    %v1234 = vadd.f32 %v1138, %v1197
    %v1235 = vadd.f32 %v1139, %v1202
    %v1236 = vadd.f32 %v1140, %v1207
    %v1237 = vadd.f32 %v1141, %v1212
    %v1238 = vadd.f32 %v1142, %v1217
    %v1239 = vadd.f32 %v1143, %v1222
    %v1240 = vmax.f32 %v1224, 0.0
    %v1241 = vmax.f32 %v1225, 0.0
    %v1242 = vmax.f32 %v1226, 0.0
    %v1243 = vmax.f32 %v1227, 0.0
    %v1244 = vmax.f32 %v1228, 0.0
    %v1245 = vmax.f32 %v1229, 0.0
    %v1246 = vmax.f32 %v1230, 0.0
    %v1247 = vmax.f32 %v1231, 0.0
    %v1248 = vmax.f32 %v1232, 0.0
    %v1249 = vmax.f32 %v1233, 0.0
    %v1250 = vmax.f32 %v1234, 0.0
    %v1251 = vmax.f32 %v1235, 0.0
    %v1252 = vmax.f32 %v1236, 0.0
    %v1253 = vmax.f32 %v1237, 0.0
    %v1254 = vmax.f32 %v1238, 0.0
    %v1255 = vmax.f32 %v1239, 0.0
    %v1256 = vld [vmem:[%s13] sm:$0xff]
    %v1257 = vld [vmem:[%s13 + $0x8] sm:$0xff]
    %v1258 = vld [vmem:[%s13 + $0x10] sm:$0xff]
    %v1259 = vld [vmem:[%s13 + $0x18] sm:$0xff]
    %v1260 = vld [vmem:[%s13 + $0x20] sm:$0xff]
    %v1261 = vld [vmem:[%s13 + $0x28] sm:$0xff]
    %v1262 = vld [vmem:[%s13 + $0x30] sm:$0xff]
    %v1263 = vld [vmem:[%s13 + $0x38] sm:$0xff]
    %v1264 = vld [vmem:[%s13 + $0x40] sm:$0xff]
    %v1265 = vld [vmem:[%s13 + $0x48] sm:$0xff]
    %v1266 = vld [vmem:[%s13 + $0x50] sm:$0xff]
    %v1267 = vld [vmem:[%s13 + $0x58] sm:$0xff]
    %v1268 = vld [vmem:[%s13 + $0x60] sm:$0xff]
    %v1269 = vld [vmem:[%s13 + $0x68] sm:$0xff]
    %v1270 = vld [vmem:[%s13 + $0x70] sm:$0xff]
    %v1271 = vld [vmem:[%s13 + $0x78] sm:$0xff]
    %v1272 = vld [vmem:[%s14] sm:$0xff]
    %v1273 = vld [vmem:[%s14 + $0x8] sm:$0xff]
    %v1274 = vld [vmem:[%s14 + $0x10] sm:$0xff]
    %v1275 = vld [vmem:[%s14 + $0x18] sm:$0xff]
    %v1276 = vld [vmem:[%s14 + $0x20] sm:$0xff]
    %v1277 = vld [vmem:[%s14 + $0x28] sm:$0xff]
    %v1278 = vld [vmem:[%s14 + $0x30] sm:$0xff]
    %v1279 = vld [vmem:[%s14 + $0x38] sm:$0xff]
    %v1280 = vld [vmem:[%s14 + $0x40] sm:$0xff]
    %v1281 = vld [vmem:[%s14 + $0x48] sm:$0xff]
    %v1282 = vld [vmem:[%s14 + $0x50] sm:$0xff]
    %v1283 = vld [vmem:[%s14 + $0x58] sm:$0xff]
    %v1284 = vld [vmem:[%s14 + $0x60] sm:$0xff]
    %v1285 = vld [vmem:[%s14 + $0x68] sm:$0xff]
    %v1286 = vld [vmem:[%s14 + $0x70] sm:$0xff]
    %v1287 = vld [vmem:[%s14 + $0x78] sm:$0xff]
    %1289 = vset.pattern.permute.xlu0 0
    %1290 = vperm.xlu0 %1289, %v1272
    %v1291 = vpop.permute.xlu0 %1290
    %1294 = vset.pattern.permute.xlu0 0
    %1295 = vperm.xlu0 %1294, %v1273
    %v1296 = vpop.permute.xlu0 %1295
    %1299 = vset.pattern.permute.xlu0 0
    %1300 = vperm.xlu0 %1299, %v1274
    %v1301 = vpop.permute.xlu0 %1300
    %1304 = vset.pattern.permute.xlu0 0
    %1305 = vperm.xlu0 %1304, %v1275
    %v1306 = vpop.permute.xlu0 %1305
    %1309 = vset.pattern.permute.xlu0 0
    %1310 = vperm.xlu0 %1309, %v1276
    %v1311 = vpop.permute.xlu0 %1310
    %1314 = vset.pattern.permute.xlu0 0
    %1315 = vperm.xlu0 %1314, %v1277
    %v1316 = vpop.permute.xlu0 %1315
    %1319 = vset.pattern.permute.xlu0 0
    %1320 = vperm.xlu0 %1319, %v1278
    %v1321 = vpop.permute.xlu0 %1320
    %1324 = vset.pattern.permute.xlu0 0
    %1325 = vperm.xlu0 %1324, %v1279
    %v1326 = vpop.permute.xlu0 %1325
    %1329 = vset.pattern.permute.xlu0 0
    %1330 = vperm.xlu0 %1329, %v1280
    %v1331 = vpop.permute.xlu0 %1330
    %1334 = vset.pattern.permute.xlu0 0
    %1335 = vperm.xlu0 %1334, %v1281
    %v1336 = vpop.permute.xlu0 %1335
    %1339 = vset.pattern.permute.xlu0 0
    %1340 = vperm.xlu0 %1339, %v1282
    %v1341 = vpop.permute.xlu0 %1340
    %1344 = vset.pattern.permute.xlu0 0
    %1345 = vperm.xlu0 %1344, %v1283
    %v1346 = vpop.permute.xlu0 %1345
    %1349 = vset.pattern.permute.xlu0 0
    %1350 = vperm.xlu0 %1349, %v1284
    %v1351 = vpop.permute.xlu0 %1350
    %1354 = vset.pattern.permute.xlu0 0
    %1355 = vperm.xlu0 %1354, %v1285
    %v1356 = vpop.permute.xlu0 %1355
    %1359 = vset.pattern.permute.xlu0 0
    %1360 = vperm.xlu0 %1359, %v1286
    %v1361 = vpop.permute.xlu0 %1360
    %1364 = vset.pattern.permute.xlu0 0
    %1365 = vperm.xlu0 %1364, %v1287
    %v1366 = vpop.permute.xlu0 %1365
    %1368 = vmatpush.msra.mxu0 %v1255
    %1369 = vmatpush.msra.mxu0 %v1254
    %1370 = vmatpush.msra.mxu0 %v1253
    %1371 = vmatpush.msra.mxu0 %v1252
    %1372 = vmatpush.msra.mxu0 %v1251
    %1373 = vmatpush.msra.mxu0 %v1250
    %1374 = vmatpush.msra.mxu0 %v1249
    %1375 = vmatpush.msra.mxu0 %v1248
    %1376 = vmatpush.msra.mxu0 %v1247
    %1377 = vmatpush.msra.mxu0 %v1246
    %1378 = vmatpush.msra.mxu0 %v1245
    %1379 = vmatpush.msra.mxu0 %v1244
    %1380 = vmatpush.msra.mxu0 %v1243
    %1381 = vmatpush.msra.mxu0 %v1242
    %1382 = vmatpush.msra.mxu0 %v1241
    %1383 = vmatpush.msra.mxu0 %v1240
    %1384 = vmatmul.f32.gmra.mxu0 %v1256
    %v1385 = vpop.f32.mrf.mxu0
    %v1386 = vadd.f32 %v1291, %v1385
    %1387 = vmatmul.f32.gmra.mxu0 %v1257
    %v1388 = vpop.f32.mrf.mxu0
    %v1389 = vadd.f32 %v1296, %v1388
    %1390 = vmatmul.f32.gmra.mxu0 %v1258
    %v1391 = vpop.f32.mrf.mxu0
    %v1392 = vadd.f32 %v1301, %v1391
    %1393 = vmatmul.f32.gmra.mxu0 %v1259
    %v1394 = vpop.f32.mrf.mxu0
    %v1395 = vadd.f32 %v1306, %v1394
    %1396 = vmatmul.f32.gmra.mxu0 %v1260
    %v1397 = vpop.f32.mrf.mxu0
    %v1398 = vadd.f32 %v1311, %v1397
    %1399 = vmatmul.f32.gmra.mxu0 %v1261
    %v1400 = vpop.f32.mrf.mxu0
    %v1401 = vadd.f32 %v1316, %v1400
    %1402 = vmatmul.f32.gmra.mxu0 %v1262
    %v1403 = vpop.f32.mrf.mxu0
    %v1404 = vadd.f32 %v1321, %v1403
    %1405 = vmatmul.f32.gmra.mxu0 %v1263
    %v1406 = vpop.f32.mrf.mxu0
    %v1407 = vadd.f32 %v1326, %v1406
    %1408 = vmatmul.f32.gmra.mxu0 %v1264
    %v1409 = vpop.f32.mrf.mxu0
    %v1410 = vadd.f32 %v1331, %v1409
    %1411 = vmatmul.f32.gmra.mxu0 %v1265
    %v1412 = vpop.f32.mrf.mxu0
    %v1413 = vadd.f32 %v1336, %v1412
    %1414 = vmatmul.f32.gmra.mxu0 %v1266
    %v1415 = vpop.f32.mrf.mxu0
    %v1416 = vadd.f32 %v1341, %v1415
    %1417 = vmatmul.f32.gmra.mxu0 %v1267
    %v1418 = vpop.f32.mrf.mxu0
    %v1419 = vadd.f32 %v1346, %v1418
    %1420 = vmatmul.f32.gmra.mxu0 %v1268
    %v1421 = vpop.f32.mrf.mxu0
    %v1422 = vadd.f32 %v1351, %v1421
    %1423 = vmatmul.f32.gmra.mxu0 %v1269
    %v1424 = vpop.f32.mrf.mxu0
    %v1425 = vadd.f32 %v1356, %v1424
    %1426 = vmatmul.f32.gmra.mxu0 %v1270
    %v1427 = vpop.f32.mrf.mxu0
    %v1428 = vadd.f32 %v1361, %v1427
    %1429 = vmatmul.f32.gmra.mxu0 %v1271
    %v1430 = vpop.f32.mrf.mxu0
    %v1431 = vadd.f32 %v1366, %v1430
    %1432 = vdwg.mxu0
    %v1433 = vld [vmem:[%s15] sm:$0xff]
    %v1434 = vld [vmem:[%s15 + $0x8] sm:$0xff]
    %v1435 = vld [vmem:[%s15 + $0x10] sm:$0xff]
    %v1436 = vld [vmem:[%s15 + $0x18] sm:$0xff]
    %v1437 = vld [vmem:[%s15 + $0x20] sm:$0xff]
    %v1438 = vld [vmem:[%s15 + $0x28] sm:$0xff]
    %v1439 = vld [vmem:[%s15 + $0x30] sm:$0xff]
    %v1440 = vld [vmem:[%s15 + $0x38] sm:$0xff]
    %v1441 = vld [vmem:[%s15 + $0x40] sm:$0xff]
    %v1442 = vld [vmem:[%s15 + $0x48] sm:$0xff]
    %v1443 = vld [vmem:[%s15 + $0x50] sm:$0xff]
    %v1444 = vld [vmem:[%s15 + $0x58] sm:$0xff]
    %v1445 = vld [vmem:[%s15 + $0x60] sm:$0xff]
    %v1446 = vld [vmem:[%s15 + $0x68] sm:$0xff]
    %v1447 = vld [vmem:[%s15 + $0x70] sm:$0xff]
    %v1448 = vld [vmem:[%s15 + $0x78] sm:$0xff]
    %v1449 = vld [vmem:[%s16] sm:$0xff]
    %v1450 = vld [vmem:[%s16 + $0x8] sm:$0xff]
    %v1451 = vld [vmem:[%s16 + $0x10] sm:$0xff]
    %v1452 = vld [vmem:[%s16 + $0x18] sm:$0xff]
    %v1453 = vld [vmem:[%s16 + $0x20] sm:$0xff]
    %v1454 = vld [vmem:[%s16 + $0x28] sm:$0xff]
    %v1455 = vld [vmem:[%s16 + $0x30] sm:$0xff]
    %v1456 = vld [vmem:[%s16 + $0x38] sm:$0xff]
    %v1457 = vld [vmem:[%s16 + $0x40] sm:$0xff]
    %v1458 = vld [vmem:[%s16 + $0x48] sm:$0xff]
    %v1459 = vld [vmem:[%s16 + $0x50] sm:$0xff]
    %v1460 = vld [vmem:[%s16 + $0x58] sm:$0xff]
    %v1461 = vld [vmem:[%s16 + $0x60] sm:$0xff]
    %v1462 = vld [vmem:[%s16 + $0x68] sm:$0xff]
    %v1463 = vld [vmem:[%s16 + $0x70] sm:$0xff]
    %v1464 = vld [vmem:[%s16 + $0x78] sm:$0xff]
    %1465 = vmatpush.msra.mxu0 %v1431
    %1466 = vmatpush.msra.mxu0 %v1428
    %1467 = vmatpush.msra.mxu0 %v1425
    %1468 = vmatpush.msra.mxu0 %v1422
    %1469 = vmatpush.msra.mxu0 %v1419
    %1470 = vmatpush.msra.mxu0 %v1416
    %1471 = vmatpush.msra.mxu0 %v1413
    %1472 = vmatpush.msra.mxu0 %v1410
    %1473 = vmatpush.msra.mxu0 %v1407
    %1474 = vmatpush.msra.mxu0 %v1404
    %1475 = vmatpush.msra.mxu0 %v1401
    %1476 = vmatpush.msra.mxu0 %v1398
    %1477 = vmatpush.msra.mxu0 %v1395
    %1478 = vmatpush.msra.mxu0 %v1392
    %1479 = vmatpush.msra.mxu0 %v1389
    %1480 = vmatpush.msra.mxu0 %v1386
    %1481 = vmatmul.f32.gmra.mxu0 %v573
    %v1482 = vpop.f32.mrf.mxu0
    %v1483 = vadd.f32 0.0, %v1482
    %1484 = vdwg.mxu0
    %1485 = vmatpush.msra.mxu0 0.0
    %1486 = vmatpush.msra.mxu0 0.0
    %1487 = vmatpush.msra.mxu0 0.0
    %1488 = vmatpush.msra.mxu0 0.0
    %1489 = vmatpush.msra.mxu0 0.0
    %1490 = vmatpush.msra.mxu0 0.0
    %1491 = vmatpush.msra.mxu0 0.0
    %1492 = vmatpush.msra.mxu0 0.0
    %1493 = vmatpush.msra.mxu0 0.0
    %1494 = vmatpush.msra.mxu0 0.0
    %1495 = vmatpush.msra.mxu0 0.0
    %1496 = vmatpush.msra.mxu0 0.0
    %1497 = vmatpush.msra.mxu0 0.0
    %1498 = vmatpush.msra.mxu0 0.0
    %1499 = vmatpush.msra.mxu0 0.0
    %1500 = vmatpush.msra.mxu0 %v1483
    %1501 = vmatmul.f32.gmra.mxu0 %v643
    %v1502 = vpop.f32.mrf.mxu0
    %v1503 = vadd.f32 0.0, %v1502
    %1504 = vmatmul.f32.gmra.mxu0 %v646
    %v1505 = vpop.f32.mrf.mxu0
    %v1506 = vadd.f32 0.0, %v1505
    %1507 = vmatmul.f32.gmra.mxu0 %v649
    %v1508 = vpop.f32.mrf.mxu0
    %v1509 = vadd.f32 0.0, %v1508
    %1510 = vmatmul.f32.gmra.mxu0 %v652
    %v1511 = vpop.f32.mrf.mxu0
    %v1512 = vadd.f32 0.0, %v1511
    %1513 = vmatmul.f32.gmra.mxu0 %v655
    %v1514 = vpop.f32.mrf.mxu0
    %v1515 = vadd.f32 0.0, %v1514
    %1516 = vmatmul.f32.gmra.mxu0 %v658
    %v1517 = vpop.f32.mrf.mxu0
    %v1518 = vadd.f32 0.0, %v1517
    %1519 = vmatmul.f32.gmra.mxu0 %v661
    %v1520 = vpop.f32.mrf.mxu0
    %v1521 = vadd.f32 0.0, %v1520
    %1522 = vmatmul.f32.gmra.mxu0 %v664
    %v1523 = vpop.f32.mrf.mxu0
    %v1524 = vadd.f32 0.0, %v1523
    %1525 = vmatmul.f32.gmra.mxu0 %v667
    %v1526 = vpop.f32.mrf.mxu0
    %v1527 = vadd.f32 0.0, %v1526
    %1528 = vmatmul.f32.gmra.mxu0 %v670
    %v1529 = vpop.f32.mrf.mxu0
    %v1530 = vadd.f32 0.0, %v1529
    %1531 = vmatmul.f32.gmra.mxu0 %v673
    %v1532 = vpop.f32.mrf.mxu0
    %v1533 = vadd.f32 0.0, %v1532
    %1534 = vmatmul.f32.gmra.mxu0 %v676
    %v1535 = vpop.f32.mrf.mxu0
    %v1536 = vadd.f32 0.0, %v1535
    %1537 = vmatmul.f32.gmra.mxu0 %v679
    %v1538 = vpop.f32.mrf.mxu0
    %v1539 = vadd.f32 0.0, %v1538
    %1540 = vmatmul.f32.gmra.mxu0 %v682
    %v1541 = vpop.f32.mrf.mxu0
    %v1542 = vadd.f32 0.0, %v1541
    %1543 = vmatmul.f32.gmra.mxu0 %v685
    %v1544 = vpop.f32.mrf.mxu0
    %v1545 = vadd.f32 0.0, %v1544
    %1546 = vmatmul.f32.gmra.mxu0 %v688
    %v1547 = vpop.f32.mrf.mxu0
    %v1548 = vadd.f32 0.0, %v1547
    %1549 = vdwg.mxu0
    %v1550 = vsub.f32 %v1386, %v1503
    %v1551 = vsub.f32 %v1389, %v1506
    %v1552 = vsub.f32 %v1392, %v1509
    %v1553 = vsub.f32 %v1395, %v1512
    %v1554 = vsub.f32 %v1398, %v1515
    %v1555 = vsub.f32 %v1401, %v1518
    %v1556 = vsub.f32 %v1404, %v1521
    %v1557 = vsub.f32 %v1407, %v1524
    %v1558 = vsub.f32 %v1410, %v1527
    %v1559 = vsub.f32 %v1413, %v1530
    %v1560 = vsub.f32 %v1416, %v1533
    %v1561 = vsub.f32 %v1419, %v1536
    %v1562 = vsub.f32 %v1422, %v1539
    %v1563 = vsub.f32 %v1425, %v1542
    %v1564 = vsub.f32 %v1428, %v1545
    %v1565 = vsub.f32 %v1431, %v1548
    %v1566 = vmul.f32 %v1550, %v1550
    %v1567 = vmul.f32 %v1551, %v1551
    %v1568 = vmul.f32 %v1552, %v1552
    %v1569 = vmul.f32 %v1553, %v1553
    %v1570 = vmul.f32 %v1554, %v1554
    %v1571 = vmul.f32 %v1555, %v1555
    %v1572 = vmul.f32 %v1556, %v1556
    %v1573 = vmul.f32 %v1557, %v1557
    %v1574 = vmul.f32 %v1558, %v1558
    %v1575 = vmul.f32 %v1559, %v1559
    %v1576 = vmul.f32 %v1560, %v1560
    %v1577 = vmul.f32 %v1561, %v1561
    %v1578 = vmul.f32 %v1562, %v1562
    %v1579 = vmul.f32 %v1563, %v1563
    %v1580 = vmul.f32 %v1564, %v1564
    %v1581 = vmul.f32 %v1565, %v1565
    %1582 = vmatpush.msra.mxu0 %v1581
    %1583 = vmatpush.msra.mxu0 %v1580
    %1584 = vmatpush.msra.mxu0 %v1579
    %1585 = vmatpush.msra.mxu0 %v1578
    %1586 = vmatpush.msra.mxu0 %v1577
    %1587 = vmatpush.msra.mxu0 %v1576
    %1588 = vmatpush.msra.mxu0 %v1575
    %1589 = vmatpush.msra.mxu0 %v1574
    %1590 = vmatpush.msra.mxu0 %v1573
    %1591 = vmatpush.msra.mxu0 %v1572
    %1592 = vmatpush.msra.mxu0 %v1571
    %1593 = vmatpush.msra.mxu0 %v1570
    %1594 = vmatpush.msra.mxu0 %v1569
    %1595 = vmatpush.msra.mxu0 %v1568
    %1596 = vmatpush.msra.mxu0 %v1567
    %1597 = vmatpush.msra.mxu0 %v1566
    %1598 = vmatmul.f32.gmra.mxu0 %v573
    %v1599 = vpop.f32.mrf.mxu0
    %v1600 = vadd.f32 0.0, %v1599
    %1601 = vdwg.mxu0
    %1602 = vmatpush.msra.mxu0 0.0
    %1603 = vmatpush.msra.mxu0 0.0
    %1604 = vmatpush.msra.mxu0 0.0
    %1605 = vmatpush.msra.mxu0 0.0
    %1606 = vmatpush.msra.mxu0 0.0
    %1607 = vmatpush.msra.mxu0 0.0
    %1608 = vmatpush.msra.mxu0 0.0
    %1609 = vmatpush.msra.mxu0 0.0
    %1610 = vmatpush.msra.mxu0 0.0
    %1611 = vmatpush.msra.mxu0 0.0
    %1612 = vmatpush.msra.mxu0 0.0
    %1613 = vmatpush.msra.mxu0 0.0
    %1614 = vmatpush.msra.mxu0 0.0
    %1615 = vmatpush.msra.mxu0 0.0
    %1616 = vmatpush.msra.mxu0 0.0
    %1617 = vmatpush.msra.mxu0 %v1600
    %1618 = vmatmul.f32.gmra.mxu0 %v643
    %v1619 = vpop.f32.mrf.mxu0
    %v1620 = vadd.f32 1e-05, %v1619
    %1621 = vmatmul.f32.gmra.mxu0 %v646
    %v1622 = vpop.f32.mrf.mxu0
    %v1623 = vadd.f32 1e-05, %v1622
    %1624 = vmatmul.f32.gmra.mxu0 %v649
    %v1625 = vpop.f32.mrf.mxu0
    %v1626 = vadd.f32 1e-05, %v1625
    %1627 = vmatmul.f32.gmra.mxu0 %v652
    %v1628 = vpop.f32.mrf.mxu0
    %v1629 = vadd.f32 1e-05, %v1628
    %1630 = vmatmul.f32.gmra.mxu0 %v655
    %v1631 = vpop.f32.mrf.mxu0
    %v1632 = vadd.f32 1e-05, %v1631
    %1633 = vmatmul.f32.gmra.mxu0 %v658
    %v1634 = vpop.f32.mrf.mxu0
    %v1635 = vadd.f32 1e-05, %v1634
    %1636 = vmatmul.f32.gmra.mxu0 %v661
    %v1637 = vpop.f32.mrf.mxu0
    %v1638 = vadd.f32 1e-05, %v1637
    %1639 = vmatmul.f32.gmra.mxu0 %v664
    %v1640 = vpop.f32.mrf.mxu0
    %v1641 = vadd.f32 1e-05, %v1640
    %1642 = vmatmul.f32.gmra.mxu0 %v667
    %v1643 = vpop.f32.mrf.mxu0
    %v1644 = vadd.f32 1e-05, %v1643
    %1645 = vmatmul.f32.gmra.mxu0 %v670
    %v1646 = vpop.f32.mrf.mxu0
    %v1647 = vadd.f32 1e-05, %v1646
    %1648 = vmatmul.f32.gmra.mxu0 %v673
    %v1649 = vpop.f32.mrf.mxu0
    %v1650 = vadd.f32 1e-05, %v1649
    %1651 = vmatmul.f32.gmra.mxu0 %v676
    %v1652 = vpop.f32.mrf.mxu0
    %v1653 = vadd.f32 1e-05, %v1652
    %1654 = vmatmul.f32.gmra.mxu0 %v679
    %v1655 = vpop.f32.mrf.mxu0
    %v1656 = vadd.f32 1e-05, %v1655
    %1657 = vmatmul.f32.gmra.mxu0 %v682
    %v1658 = vpop.f32.mrf.mxu0
    %v1659 = vadd.f32 1e-05, %v1658
    %1660 = vmatmul.f32.gmra.mxu0 %v685
    %v1661 = vpop.f32.mrf.mxu0
    %v1662 = vadd.f32 1e-05, %v1661
    %1663 = vmatmul.f32.gmra.mxu0 %v688
    %v1664 = vpop.f32.mrf.mxu0
    %v1665 = vadd.f32 1e-05, %v1664
    %1666 = vdwg.mxu0
    %v1667 = vrsqrt.pop %v1620
    %v1668 = vmul.f32 %v1667, %v1620
    %v1669 = vmul.f32 %v1668, %v1667
    %v1670 = vmul.f32 0.5, %v1669
    %v1671 = vsub.f32 1.5, %v1670
    %v1672 = vmul.f32 %v1667, %v1671
    %vm1673 = vweird.f32 %v1620
    %vm1674 = vweird.f32 %v1667
    %vm1675 = vmor %vm1673, %vm1674
    %v1676 = vsel %vm1675, %v1667, %v1672
    %v1677 = vrsqrt.pop %v1623
    %v1678 = vmul.f32 %v1677, %v1623
    %v1679 = vmul.f32 %v1678, %v1677
    %v1680 = vmul.f32 0.5, %v1679
    %v1681 = vsub.f32 1.5, %v1680
    %v1682 = vmul.f32 %v1677, %v1681
    %vm1683 = vweird.f32 %v1623
    %vm1684 = vweird.f32 %v1677
    %vm1685 = vmor %vm1683, %vm1684
    %v1686 = vsel %vm1685, %v1677, %v1682
    %v1687 = vrsqrt.pop %v1626
    %v1688 = vmul.f32 %v1687, %v1626
    %v1689 = vmul.f32 %v1688, %v1687
    %v1690 = vmul.f32 0.5, %v1689
    %v1691 = vsub.f32 1.5, %v1690
    %v1692 = vmul.f32 %v1687, %v1691
    %vm1693 = vweird.f32 %v1626
    %vm1694 = vweird.f32 %v1687
    %vm1695 = vmor %vm1693, %vm1694
    %v1696 = vsel %vm1695, %v1687, %v1692
    %v1697 = vrsqrt.pop %v1629
    %v1698 = vmul.f32 %v1697, %v1629
    %v1699 = vmul.f32 %v1698, %v1697
    %v1700 = vmul.f32 0.5, %v1699
    %v1701 = vsub.f32 1.5, %v1700
    %v1702 = vmul.f32 %v1697, %v1701
    %vm1703 = vweird.f32 %v1629
    %vm1704 = vweird.f32 %v1697
    %vm1705 = vmor %vm1703, %vm1704
    %v1706 = vsel %vm1705, %v1697, %v1702
    %v1707 = vrsqrt.pop %v1632
    %v1708 = vmul.f32 %v1707, %v1632
    %v1709 = vmul.f32 %v1708, %v1707
    %v1710 = vmul.f32 0.5, %v1709
    %v1711 = vsub.f32 1.5, %v1710
    %v1712 = vmul.f32 %v1707, %v1711
    %vm1713 = vweird.f32 %v1632
    %vm1714 = vweird.f32 %v1707
    %vm1715 = vmor %vm1713, %vm1714
    %v1716 = vsel %vm1715, %v1707, %v1712
    %v1717 = vrsqrt.pop %v1635
    %v1718 = vmul.f32 %v1717, %v1635
    %v1719 = vmul.f32 %v1718, %v1717
    %v1720 = vmul.f32 0.5, %v1719
    %v1721 = vsub.f32 1.5, %v1720
    %v1722 = vmul.f32 %v1717, %v1721
    %vm1723 = vweird.f32 %v1635
    %vm1724 = vweird.f32 %v1717
    %vm1725 = vmor %vm1723, %vm1724
    %v1726 = vsel %vm1725, %v1717, %v1722
    %v1727 = vrsqrt.pop %v1638
    %v1728 = vmul.f32 %v1727, %v1638
    %v1729 = vmul.f32 %v1728, %v1727
    %v1730 = vmul.f32 0.5, %v1729
    %v1731 = vsub.f32 1.5, %v1730
    %v1732 = vmul.f32 %v1727, %v1731
    %vm1733 = vweird.f32 %v1638
    %vm1734 = vweird.f32 %v1727
    %vm1735 = vmor %vm1733, %vm1734
    %v1736 = vsel %vm1735, %v1727, %v1732
    %v1737 = vrsqrt.pop %v1641
    %v1738 = vmul.f32 %v1737, %v1641
    %v1739 = vmul.f32 %v1738, %v1737
    %v1740 = vmul.f32 0.5, %v1739
    %v1741 = vsub.f32 1.5, %v1740
    %v1742 = vmul.f32 %v1737, %v1741
    %vm1743 = vweird.f32 %v1641
    %vm1744 = vweird.f32 %v1737
    %vm1745 = vmor %vm1743, %vm1744
    %v1746 = vsel %vm1745, %v1737, %v1742
    %v1747 = vrsqrt.pop %v1644
    %v1748 = vmul.f32 %v1747, %v1644
    %v1749 = vmul.f32 %v1748, %v1747
    %v1750 = vmul.f32 0.5, %v1749
    %v1751 = vsub.f32 1.5, %v1750
    %v1752 = vmul.f32 %v1747, %v1751
    %vm1753 = vweird.f32 %v1644
    %vm1754 = vweird.f32 %v1747
    %vm1755 = vmor %vm1753, %vm1754
    %v1756 = vsel %vm1755, %v1747, %v1752
    %v1757 = vrsqrt.pop %v1647
    %v1758 = vmul.f32 %v1757, %v1647
    %v1759 = vmul.f32 %v1758, %v1757
    %v1760 = vmul.f32 0.5, %v1759
    %v1761 = vsub.f32 1.5, %v1760
    %v1762 = vmul.f32 %v1757, %v1761
    %vm1763 = vweird.f32 %v1647
    %vm1764 = vweird.f32 %v1757
    %vm1765 = vmor %vm1763, %vm1764
    %v1766 = vsel %vm1765, %v1757, %v1762
    %v1767 = vrsqrt.pop %v1650
    %v1768 = vmul.f32 %v1767, %v1650
    %v1769 = vmul.f32 %v1768, %v1767
    %v1770 = vmul.f32 0.5, %v1769
    %v1771 = vsub.f32 1.5, %v1770
    %v1772 = vmul.f32 %v1767, %v1771
    %vm1773 = vweird.f32 %v1650
    %vm1774 = vweird.f32 %v1767
    %vm1775 = vmor %vm1773, %vm1774
    %v1776 = vsel %vm1775, %v1767, %v1772
    %v1777 = vrsqrt.pop %v1653
    %v1778 = vmul.f32 %v1777, %v1653
    %v1779 = vmul.f32 %v1778, %v1777
    %v1780 = vmul.f32 0.5, %v1779
    %v1781 = vsub.f32 1.5, %v1780
    %v1782 = vmul.f32 %v1777, %v1781
    %vm1783 = vweird.f32 %v1653
    %vm1784 = vweird.f32 %v1777
    %vm1785 = vmor %vm1783, %vm1784
    %v1786 = vsel %vm1785, %v1777, %v1782
    %v1787 = vrsqrt.pop %v1656
    %v1788 = vmul.f32 %v1787, %v1656
    %v1789 = vmul.f32 %v1788, %v1787
    %v1790 = vmul.f32 0.5, %v1789
    %v1791 = vsub.f32 1.5, %v1790
    %v1792 = vmul.f32 %v1787, %v1791
    %vm1793 = vweird.f32 %v1656
    %vm1794 = vweird.f32 %v1787
    %vm1795 = vmor %vm1793, %vm1794
    %v1796 = vsel %vm1795, %v1787, %v1792
    %v1797 = vrsqrt.pop %v1659
    %v1798 = vmul.f32 %v1797, %v1659
    %v1799 = vmul.f32 %v1798, %v1797
    %v1800 = vmul.f32 0.5, %v1799
    %v1801 = vsub.f32 1.5, %v1800
    %v1802 = vmul.f32 %v1797, %v1801
    %vm1803 = vweird.f32 %v1659
    %vm1804 = vweird.f32 %v1797
    %vm1805 = vmor %vm1803, %vm1804
    %v1806 = vsel %vm1805, %v1797, %v1802
    %v1807 = vrsqrt.pop %v1662
    %v1808 = vmul.f32 %v1807, %v1662
    %v1809 = vmul.f32 %v1808, %v1807
    %v1810 = vmul.f32 0.5, %v1809
    %v1811 = vsub.f32 1.5, %v1810
    %v1812 = vmul.f32 %v1807, %v1811
    %vm1813 = vweird.f32 %v1662
    %vm1814 = vweird.f32 %v1807
    %vm1815 = vmor %vm1813, %vm1814
    %v1816 = vsel %vm1815, %v1807, %v1812
    %v1817 = vrsqrt.pop %v1665
    %v1818 = vmul.f32 %v1817, %v1665
    %v1819 = vmul.f32 %v1818, %v1817
    %v1820 = vmul.f32 0.5, %v1819
    %v1821 = vsub.f32 1.5, %v1820
    %v1822 = vmul.f32 %v1817, %v1821
    %vm1823 = vweird.f32 %v1665
    %vm1824 = vweird.f32 %v1817
    %vm1825 = vmor %vm1823, %vm1824
    %v1826 = vsel %vm1825, %v1817, %v1822
    %v1827 = vmul.f32 %v1550, %v1676
    %v1828 = vmul.f32 %v1551, %v1686
    %v1829 = vmul.f32 %v1552, %v1696
    %v1830 = vmul.f32 %v1553, %v1706
    %v1831 = vmul.f32 %v1554, %v1716
    %v1832 = vmul.f32 %v1555, %v1726
    %v1833 = vmul.f32 %v1556, %v1736
    %v1834 = vmul.f32 %v1557, %v1746
    %v1835 = vmul.f32 %v1558, %v1756
    %v1836 = vmul.f32 %v1559, %v1766
    %v1837 = vmul.f32 %v1560, %v1776
    %v1838 = vmul.f32 %v1561, %v1786
    %v1839 = vmul.f32 %v1562, %v1796
    %v1840 = vmul.f32 %v1563, %v1806
    %v1841 = vmul.f32 %v1564, %v1816
    %v1842 = vmul.f32 %v1565, %v1826
    %1844 = vset.pattern.permute.xlu0 0
    %1845 = vperm.xlu0 %1844, %v1433
    %v1846 = vpop.permute.xlu0 %1845
    %1849 = vset.pattern.permute.xlu0 0
    %1850 = vperm.xlu0 %1849, %v1434
    %v1851 = vpop.permute.xlu0 %1850
    %1854 = vset.pattern.permute.xlu0 0
    %1855 = vperm.xlu0 %1854, %v1435
    %v1856 = vpop.permute.xlu0 %1855
    %1859 = vset.pattern.permute.xlu0 0
    %1860 = vperm.xlu0 %1859, %v1436
    %v1861 = vpop.permute.xlu0 %1860
    %1864 = vset.pattern.permute.xlu0 0
    %1865 = vperm.xlu0 %1864, %v1437
    %v1866 = vpop.permute.xlu0 %1865
    %1869 = vset.pattern.permute.xlu0 0
    %1870 = vperm.xlu0 %1869, %v1438
    %v1871 = vpop.permute.xlu0 %1870
    %1874 = vset.pattern.permute.xlu0 0
    %1875 = vperm.xlu0 %1874, %v1439
    %v1876 = vpop.permute.xlu0 %1875
    %1879 = vset.pattern.permute.xlu0 0
    %1880 = vperm.xlu0 %1879, %v1440
    %v1881 = vpop.permute.xlu0 %1880
    %1884 = vset.pattern.permute.xlu0 0
    %1885 = vperm.xlu0 %1884, %v1441
    %v1886 = vpop.permute.xlu0 %1885
    %1889 = vset.pattern.permute.xlu0 0
    %1890 = vperm.xlu0 %1889, %v1442
    %v1891 = vpop.permute.xlu0 %1890
    %1894 = vset.pattern.permute.xlu0 0
    %1895 = vperm.xlu0 %1894, %v1443
    %v1896 = vpop.permute.xlu0 %1895
    %1899 = vset.pattern.permute.xlu0 0
    %1900 = vperm.xlu0 %1899, %v1444
    %v1901 = vpop.permute.xlu0 %1900
    %1904 = vset.pattern.permute.xlu0 0
    %1905 = vperm.xlu0 %1904, %v1445
    %v1906 = vpop.permute.xlu0 %1905
    %1909 = vset.pattern.permute.xlu0 0
    %1910 = vperm.xlu0 %1909, %v1446
    %v1911 = vpop.permute.xlu0 %1910
    %1914 = vset.pattern.permute.xlu0 0
    %1915 = vperm.xlu0 %1914, %v1447
    %v1916 = vpop.permute.xlu0 %1915
    %1919 = vset.pattern.permute.xlu0 0
    %1920 = vperm.xlu0 %1919, %v1448
    %v1921 = vpop.permute.xlu0 %1920
    %v1923 = vmul.f32 %v1827, %v1846
    %v1924 = vmul.f32 %v1828, %v1851
    %v1925 = vmul.f32 %v1829, %v1856
    %v1926 = vmul.f32 %v1830, %v1861
    %v1927 = vmul.f32 %v1831, %v1866
    %v1928 = vmul.f32 %v1832, %v1871
    %v1929 = vmul.f32 %v1833, %v1876
    %v1930 = vmul.f32 %v1834, %v1881
    %v1931 = vmul.f32 %v1835, %v1886
    %v1932 = vmul.f32 %v1836, %v1891
    %v1933 = vmul.f32 %v1837, %v1896
    %v1934 = vmul.f32 %v1838, %v1901
    %v1935 = vmul.f32 %v1839, %v1906
    %v1936 = vmul.f32 %v1840, %v1911
    %v1937 = vmul.f32 %v1841, %v1916
    %v1938 = vmul.f32 %v1842, %v1921
    %1940 = vset.pattern.permute.xlu0 0
    %1941 = vperm.xlu0 %1940, %v1449
    %v1942 = vpop.permute.xlu0 %1941
    %1945 = vset.pattern.permute.xlu0 0
    %1946 = vperm.xlu0 %1945, %v1450
    %v1947 = vpop.permute.xlu0 %1946
    %1950 = vset.pattern.permute.xlu0 0
    %1951 = vperm.xlu0 %1950, %v1451
    %v1952 = vpop.permute.xlu0 %1951
    %1955 = vset.pattern.permute.xlu0 0
    %1956 = vperm.xlu0 %1955, %v1452
    %v1957 = vpop.permute.xlu0 %1956
    %1960 = vset.pattern.permute.xlu0 0
    %1961 = vperm.xlu0 %1960, %v1453
    %v1962 = vpop.permute.xlu0 %1961
    %1965 = vset.pattern.permute.xlu0 0
    %1966 = vperm.xlu0 %1965, %v1454
    %v1967 = vpop.permute.xlu0 %1966
    %1970 = vset.pattern.permute.xlu0 0
    %1971 = vperm.xlu0 %1970, %v1455
    %v1972 = vpop.permute.xlu0 %1971
    %1975 = vset.pattern.permute.xlu0 0
    %1976 = vperm.xlu0 %1975, %v1456
    %v1977 = vpop.permute.xlu0 %1976
    %1980 = vset.pattern.permute.xlu0 0
    %1981 = vperm.xlu0 %1980, %v1457
    %v1982 = vpop.permute.xlu0 %1981
    %1985 = vset.pattern.permute.xlu0 0
    %1986 = vperm.xlu0 %1985, %v1458
    %v1987 = vpop.permute.xlu0 %1986
    %1990 = vset.pattern.permute.xlu0 0
    %1991 = vperm.xlu0 %1990, %v1459
    %v1992 = vpop.permute.xlu0 %1991
    %1995 = vset.pattern.permute.xlu0 0
    %1996 = vperm.xlu0 %1995, %v1460
    %v1997 = vpop.permute.xlu0 %1996
    %2000 = vset.pattern.permute.xlu0 0
    %2001 = vperm.xlu0 %2000, %v1461
    %v2002 = vpop.permute.xlu0 %2001
    %2005 = vset.pattern.permute.xlu0 0
    %2006 = vperm.xlu0 %2005, %v1462
    %v2007 = vpop.permute.xlu0 %2006
    %2010 = vset.pattern.permute.xlu0 0
    %2011 = vperm.xlu0 %2010, %v1463
    %v2012 = vpop.permute.xlu0 %2011
    %2015 = vset.pattern.permute.xlu0 0
    %2016 = vperm.xlu0 %2015, %v1464
    %v2017 = vpop.permute.xlu0 %2016
    %v2019 = vadd.f32 %v1923, %v1942
    %v2020 = vadd.f32 %v1924, %v1947
    %v2021 = vadd.f32 %v1925, %v1952
    %v2022 = vadd.f32 %v1926, %v1957
    %v2023 = vadd.f32 %v1927, %v1962
    %v2024 = vadd.f32 %v1928, %v1967
    %v2025 = vadd.f32 %v1929, %v1972
    %v2026 = vadd.f32 %v1930, %v1977
    %v2027 = vadd.f32 %v1931, %v1982
    %v2028 = vadd.f32 %v1932, %v1987
    %v2029 = vadd.f32 %v1933, %v1992
    %v2030 = vadd.f32 %v1934, %v1997
    %v2031 = vadd.f32 %v1935, %v2002
    %v2032 = vadd.f32 %v1936, %v2007
    %v2033 = vadd.f32 %v1937, %v2012
    %v2034 = vadd.f32 %v1938, %v2017
    %v2035 = vmax.f32 %v2019, 0.0
    %v2036 = vmax.f32 %v2020, 0.0
    %v2037 = vmax.f32 %v2021, 0.0
    %v2038 = vmax.f32 %v2022, 0.0
    %v2039 = vmax.f32 %v2023, 0.0
    %v2040 = vmax.f32 %v2024, 0.0
    %v2041 = vmax.f32 %v2025, 0.0
    %v2042 = vmax.f32 %v2026, 0.0
    %v2043 = vmax.f32 %v2027, 0.0
    %v2044 = vmax.f32 %v2028, 0.0
    %v2045 = vmax.f32 %v2029, 0.0
    %v2046 = vmax.f32 %v2030, 0.0
    %v2047 = vmax.f32 %v2031, 0.0
    %v2048 = vmax.f32 %v2032, 0.0
    %v2049 = vmax.f32 %v2033, 0.0
    %v2050 = vmax.f32 %v2034, 0.0
    %v2051 = vld [vmem:[%s17] sm:$0xff]
    %v2052 = vld [vmem:[%s17 + $0x8] sm:$0xff]
    %v2053 = vld [vmem:[%s17 + $0x10] sm:$0xff]
    %v2054 = vld [vmem:[%s17 + $0x18] sm:$0xff]
    %v2055 = vld [vmem:[%s17 + $0x20] sm:$0xff]
    %v2056 = vld [vmem:[%s17 + $0x28] sm:$0xff]
    %v2057 = vld [vmem:[%s18] sm:$0xff]
    %v2058 = vld [vmem:[%s18 + $0x8] sm:$0xff]
    %v2059 = vld [vmem:[%s18 + $0x10] sm:$0xff]
    %v2060 = vld [vmem:[%s18 + $0x18] sm:$0xff]
    %v2061 = vld [vmem:[%s18 + $0x20] sm:$0xff]
    %v2062 = vld [vmem:[%s18 + $0x28] sm:$0xff]
    %2064 = vset.pattern.permute.xlu0 0
    %2065 = vperm.xlu0 %2064, %v2057
    %v2066 = vpop.permute.xlu0 %2065
    %2069 = vset.pattern.permute.xlu0 0
    %2070 = vperm.xlu0 %2069, %v2058
    %v2071 = vpop.permute.xlu0 %2070
    %2074 = vset.pattern.permute.xlu0 0
    %2075 = vperm.xlu0 %2074, %v2059
    %v2076 = vpop.permute.xlu0 %2075
    %2079 = vset.pattern.permute.xlu0 0
    %2080 = vperm.xlu0 %2079, %v2060
    %v2081 = vpop.permute.xlu0 %2080
    %2084 = vset.pattern.permute.xlu0 0
    %2085 = vperm.xlu0 %2084, %v2061
    %v2086 = vpop.permute.xlu0 %2085
    %2089 = vset.pattern.permute.xlu0 0
    %2090 = vperm.xlu0 %2089, %v2062
    %v2091 = vpop.permute.xlu0 %2090
    %2093 = vmatpush.msra.mxu0 %v2050
    %2094 = vmatpush.msra.mxu0 %v2049
    %2095 = vmatpush.msra.mxu0 %v2048
    %2096 = vmatpush.msra.mxu0 %v2047
    %2097 = vmatpush.msra.mxu0 %v2046
    %2098 = vmatpush.msra.mxu0 %v2045
    %2099 = vmatpush.msra.mxu0 %v2044
    %2100 = vmatpush.msra.mxu0 %v2043
    %2101 = vmatpush.msra.mxu0 %v2042
    %2102 = vmatpush.msra.mxu0 %v2041
    %2103 = vmatpush.msra.mxu0 %v2040
    %2104 = vmatpush.msra.mxu0 %v2039
    %2105 = vmatpush.msra.mxu0 %v2038
    %2106 = vmatpush.msra.mxu0 %v2037
    %2107 = vmatpush.msra.mxu0 %v2036
    %2108 = vmatpush.msra.mxu0 %v2035
    %2109 = vmatmul.f32.gmra.mxu0 %v2051
    %v2110 = vpop.f32.mrf.mxu0
    %v2111 = vadd.f32 %v2066, %v2110
    %2112 = vmatmul.f32.gmra.mxu0 %v2052
    %v2113 = vpop.f32.mrf.mxu0
    %v2114 = vadd.f32 %v2071, %v2113
    %2115 = vmatmul.f32.gmra.mxu0 %v2053
    %v2116 = vpop.f32.mrf.mxu0
    %v2117 = vadd.f32 %v2076, %v2116
    %2118 = vmatmul.f32.gmra.mxu0 %v2054
    %v2119 = vpop.f32.mrf.mxu0
    %v2120 = vadd.f32 %v2081, %v2119
    %2121 = vmatmul.f32.gmra.mxu0 %v2055
    %v2122 = vpop.f32.mrf.mxu0
    %v2123 = vadd.f32 %v2086, %v2122
    %2124 = vmatmul.f32.gmra.mxu0 %v2056
    %v2125 = vpop.f32.mrf.mxu0
    %v2126 = vadd.f32 %v2091, %v2125
    %2127 = vdwg.mxu0
    %v2128 = vmul.f32 %v64, %v70
    %v2129 = vmul.f32 %v64, %v102
    %v2131 = vrot.slane %v70, 1
    %v2133 = vmul.f32 %v64, %v2131
    %v2135 = vrot.slane %v102, 1
    %v2137 = vmul.f32 %v64, %v2135
    %v2138 = vmul.f32 %v2120, %v2128
    %v2139 = vadd.f32 %v2138, 0.0
    %v2140 = vmul.f32 %v2111, %v2129
    %v2141 = vadd.f32 %v2140, 0.0
    %v2143 = vrot.slane %v2133, 7
    %v2145 = vmul.f32 %v2120, %v2143
    %v2147 = vrot.slane %v2145, 1
    %v2149 = vadd.f32 %v2139, %v2147
    %v2151 = vrot.slane %v2137, 7
    %v2153 = vmul.f32 %v2111, %v2151
    %v2155 = vrot.slane %v2153, 1
    %v2157 = vadd.f32 %v2141, %v2155
    %v2159 = vrot.slane %v2128, 6
    %v2161 = vmul.f32 %v2120, %v2159
    %v2162 = vadd.f32 %v2161, 0.0
    %v2164 = vrot.slane %v2129, 6
    %v2166 = vmul.f32 %v2111, %v2164
    %v2167 = vadd.f32 %v2166, 0.0
    %v2168 = vrot.slane %v2133, 5
    %v2170 = vmul.f32 %v2120, %v2168
    %v2172 = vrot.slane %v2170, 1
    %v2174 = vadd.f32 %v2162, %v2172
    %v2175 = vrot.slane %v2137, 5
    %v2177 = vmul.f32 %v2111, %v2175
    %v2179 = vrot.slane %v2177, 1
    %v2181 = vadd.f32 %v2167, %v2179
    %v2182 = vrot.slane %v70, 7
    %v2184 = vmul.f32 %v64, %v2182
    %v2185 = vrot.slane %v102, 7
    %v2187 = vmul.f32 %v64, %v2185
    %v2188 = vrot.slane %v70, 6
    %v2190 = vmul.f32 %v64, %v2188
    %v2191 = vrot.slane %v102, 6
    %v2193 = vmul.f32 %v64, %v2191
    %v2194 = vrot.slane %v70, 5
    %v2196 = vmul.f32 %v64, %v2194
    %v2197 = vrot.slane %v102, 5
    %v2199 = vmul.f32 %v64, %v2197
    %v2201 = vrot.slane %v2184, 5
    %v2203 = vmul.f32 %v2120, %v2201
    %v2204 = vadd.f32 %v2203, 0.0
    %v2206 = vrot.slane %v2187, 1
    %v2208 = vmul.f32 %v2114, %v2206
    %v2209 = vadd.f32 %v2208, 0.0
    %v2211 = vrot.slane %v2190, 6
    %v2213 = vmul.f32 %v2120, %v2211
    %v2214 = vadd.f32 %v2213, 0.0
    %v2216 = vrot.slane %v2193, 2
    %v2218 = vmul.f32 %v2114, %v2216
    %v2219 = vadd.f32 %v2218, 0.0
    %v2221 = vrot.slane %v2196, 7
    %v2223 = vmul.f32 %v2120, %v2221
    %v2224 = vadd.f32 %v2223, 0.0
    %v2226 = vrot.slane %v2199, 3
    %v2228 = vmul.f32 %v2114, %v2226
    %v2229 = vadd.f32 %v2228, 0.0
    %v2230 = vrot.slane %v2128, 4
    %v2232 = vmul.f32 %v2120, %v2230
    %v2234 = vrot.slane %v2232, 1
    %v2236 = vadd.f32 %v2204, %v2234
    %v2237 = vmul.f32 %v2114, %v2129
    %v2239 = vrot.slane %v2237, 1
    %v2241 = vadd.f32 %v2209, %v2239
    %v2243 = vrot.slane %v2203, 1
    %v2245 = vadd.f32 %v2214, %v2243
    %v2247 = vrot.slane %v2208, 1
    %v2249 = vadd.f32 %v2219, %v2247
    %v2251 = vrot.slane %v2213, 1
    %v2253 = vadd.f32 %v2224, %v2251
    %v2255 = vrot.slane %v2218, 1
    %v2257 = vadd.f32 %v2229, %v2255
    %v2258 = vrot.slane %v2184, 3
    %v2260 = vmul.f32 %v2120, %v2258
    %v2261 = vadd.f32 %v2260, 0.0
    %v2262 = vrot.slane %v2187, 7
    %v2264 = vmul.f32 %v2114, %v2262
    %v2265 = vadd.f32 %v2264, 0.0
    %v2266 = vrot.slane %v2190, 4
    %v2268 = vmul.f32 %v2120, %v2266
    %v2269 = vadd.f32 %v2268, 0.0
    %v2270 = vmul.f32 %v2114, %v2193
    %v2271 = vadd.f32 %v2270, 0.0
    %v2272 = vrot.slane %v2196, 5
    %v2274 = vmul.f32 %v2120, %v2272
    %v2275 = vadd.f32 %v2274, 0.0
    %v2276 = vrot.slane %v2199, 1
    %v2278 = vmul.f32 %v2114, %v2276
    %v2279 = vadd.f32 %v2278, 0.0
    %v2280 = vrot.slane %v2128, 2
    %v2282 = vmul.f32 %v2120, %v2280
    %v2284 = vrot.slane %v2282, 1
    %v2286 = vadd.f32 %v2261, %v2284
    %v2287 = vmul.f32 %v2114, %v2164
    %v2289 = vrot.slane %v2287, 1
    %v2291 = vadd.f32 %v2265, %v2289
    %v2293 = vrot.slane %v2260, 1
    %v2295 = vadd.f32 %v2269, %v2293
    %v2297 = vrot.slane %v2264, 1
    %v2299 = vadd.f32 %v2271, %v2297
    %v2301 = vrot.slane %v2268, 1
    %v2303 = vadd.f32 %v2275, %v2301
    %v2305 = vrot.slane %v2270, 1
    %v2307 = vadd.f32 %v2279, %v2305
    %v2308 = vrot.slane %v2190, 1
    %v2310 = vadd.f32 %v2190, %v2308
    %v2311 = vrot.slane %v2190, 2
    %v2313 = vadd.f32 %v2310, %v2311
    %v2314 = vrot.slane %v2193, 1
    %v2316 = vadd.f32 %v2193, %v2314
    %v2317 = vadd.f32 %v2316, %v2216
    %v2318 = vrot.slane %v2133, 1
    %v2320 = vadd.f32 %v2133, %v2318
    %v2321 = vrot.slane %v2133, 2
    %v2323 = vadd.f32 %v2320, %v2321
    %v2324 = vrot.slane %v2137, 1
    %v2326 = vadd.f32 %v2137, %v2324
    %v2327 = vrot.slane %v2137, 2
    %v2329 = vadd.f32 %v2326, %v2327
    %v2331 = vrot.slane %v2313, 4
    %v2333 = vmul.f32 %v2123, %v2331
    %v2334 = vadd.f32 %v2149, %v2333
    %v2335 = vmul.f32 %v2111, %v2317
    %v2337 = vrot.slane %v2335, 4
    %v2339 = vadd.f32 %v2157, %v2337
    %v2341 = vrot.slane %v2323, 3
    %v2343 = vmul.f32 %v2123, %v2341
    %v2345 = vrot.slane %v2343, 1
    %v2347 = vadd.f32 %v2334, %v2345
    %v2349 = vrot.slane %v2329, 7
    %v2351 = vmul.f32 %v2111, %v2349
    %v2353 = vrot.slane %v2351, 5
    %v2355 = vadd.f32 %v2339, %v2353
    %v2356 = vrot.slane %v2313, 2
    %v2358 = vmul.f32 %v2123, %v2356
    %v2359 = vadd.f32 %v2174, %v2358
    %v2361 = vrot.slane %v2317, 6
    %v2363 = vmul.f32 %v2111, %v2361
    %v2365 = vrot.slane %v2363, 4
    %v2367 = vadd.f32 %v2181, %v2365
    %v2368 = vrot.slane %v2323, 1
    %v2370 = vmul.f32 %v2123, %v2368
    %v2372 = vrot.slane %v2370, 1
    %v2374 = vadd.f32 %v2359, %v2372
    %v2375 = vrot.slane %v2329, 5
    %v2377 = vmul.f32 %v2111, %v2375
    %v2379 = vrot.slane %v2377, 5
    %v2381 = vadd.f32 %v2367, %v2379
    %v2382 = vrot.slane %v70, 3
    %v2384 = vmul.f32 %v64, %v2382
    %v2385 = vmul.f32 %v65, %v2382
    %v2387 = vrot.slane %v2385, 1
    %v2389 = vadd.f32 %v2384, %v2387
    %v2390 = vrot.slane %v2385, 2
    %v2392 = vadd.f32 %v2389, %v2390
    %v2393 = vrot.slane %v102, 3
    %v2395 = vmul.f32 %v64, %v2393
    %v2396 = vmul.f32 %v65, %v2393
    %v2398 = vrot.slane %v2396, 1
    %v2400 = vadd.f32 %v2395, %v2398
    %v2401 = vrot.slane %v2396, 2
    %v2403 = vadd.f32 %v2400, %v2401
    %v2404 = vmul.f32 %v65, %v2188
    %v2406 = vrot.slane %v2404, 1
    %v2408 = vadd.f32 %v2190, %v2406
    %v2409 = vrot.slane %v2404, 2
    %v2411 = vadd.f32 %v2408, %v2409
    %v2412 = vmul.f32 %v65, %v2191
    %v2414 = vrot.slane %v2412, 1
    %v2416 = vadd.f32 %v2193, %v2414
    %v2417 = vrot.slane %v2412, 2
    %v2419 = vadd.f32 %v2416, %v2417
    %v2420 = vmul.f32 %v65, %v70
    %v2422 = vrot.slane %v2420, 1
    %v2424 = vadd.f32 %v2420, %v2422
    %v2425 = vrot.slane %v2420, 2
    %v2427 = vadd.f32 %v2424, %v2425
    %v2428 = vmul.f32 %v65, %v102
    %v2430 = vrot.slane %v2428, 1
    %v2432 = vadd.f32 %v2428, %v2430
    %v2433 = vrot.slane %v2428, 2
    %v2435 = vadd.f32 %v2432, %v2433
    %v2436 = vadd.f32 %v2385, %v2387
    %v2437 = vadd.f32 %v2436, %v2390
    %v2438 = vadd.f32 %v2396, %v2398
    %v2439 = vadd.f32 %v2438, %v2401
    %v2440 = vmul.f32 %v65, %v2194
    %v2442 = vrot.slane %v2440, 1
    %v2444 = vadd.f32 %v2440, %v2442
    %v2445 = vrot.slane %v2440, 2
    %v2447 = vadd.f32 %v2444, %v2445
    %v2448 = vmul.f32 %v65, %v2197
    %v2450 = vrot.slane %v2448, 1
    %v2452 = vadd.f32 %v2448, %v2450
    %v2453 = vrot.slane %v2448, 2
    %v2455 = vadd.f32 %v2452, %v2453
    %v2457 = vrot.slane %v2392, 3
    %v2459 = vmul.f32 %v2123, %v2457
    %v2460 = vadd.f32 %v2236, %v2459
    %v2462 = vrot.slane %v2403, 3
    %v2464 = vmul.f32 %v2114, %v2462
    %v2466 = vrot.slane %v2464, 4
    %v2468 = vadd.f32 %v2241, %v2466
    %v2470 = vrot.slane %v2427, 6
    %v2472 = vmul.f32 %v2123, %v2470
    %v2473 = vadd.f32 %v2245, %v2472
    %v2475 = vrot.slane %v2435, 6
    %v2477 = vmul.f32 %v2114, %v2475
    %v2479 = vrot.slane %v2477, 4
    %v2481 = vadd.f32 %v2249, %v2479
    %v2483 = vrot.slane %v2447, 1
    %v2485 = vmul.f32 %v2123, %v2483
    %v2486 = vadd.f32 %v2253, %v2485
    %v2488 = vrot.slane %v2455, 1
    %v2490 = vmul.f32 %v2114, %v2488
    %v2492 = vrot.slane %v2490, 4
    %v2494 = vadd.f32 %v2257, %v2492
    %v2496 = vrot.slane %v2411, 2
    %v2498 = vmul.f32 %v2123, %v2496
    %v2500 = vrot.slane %v2498, 1
    %v2502 = vadd.f32 %v2460, %v2500
    %v2504 = vrot.slane %v2419, 2
    %v2506 = vmul.f32 %v2114, %v2504
    %v2508 = vrot.slane %v2506, 5
    %v2510 = vadd.f32 %v2468, %v2508
    %v2512 = vrot.slane %v2437, 5
    %v2514 = vmul.f32 %v2123, %v2512
    %v2516 = vrot.slane %v2514, 1
    %v2518 = vadd.f32 %v2473, %v2516
    %v2520 = vrot.slane %v2439, 5
    %v2522 = vmul.f32 %v2114, %v2520
    %v2524 = vrot.slane %v2522, 5
    %v2526 = vadd.f32 %v2481, %v2524
    %v2527 = vmul.f32 %v2123, %v2427
    %v2529 = vrot.slane %v2527, 1
    %v2531 = vadd.f32 %v2486, %v2529
    %v2532 = vmul.f32 %v2114, %v2435
    %v2534 = vrot.slane %v2532, 5
    %v2536 = vadd.f32 %v2494, %v2534
    %v2537 = vrot.slane %v2392, 1
    %v2539 = vmul.f32 %v2123, %v2537
    %v2540 = vadd.f32 %v2286, %v2539
    %v2541 = vrot.slane %v2403, 1
    %v2543 = vmul.f32 %v2114, %v2541
    %v2545 = vrot.slane %v2543, 4
    %v2547 = vadd.f32 %v2291, %v2545
    %v2548 = vrot.slane %v2427, 4
    %v2550 = vmul.f32 %v2123, %v2548
    %v2551 = vadd.f32 %v2295, %v2550
    %v2552 = vrot.slane %v2435, 4
    %v2554 = vmul.f32 %v2114, %v2552
    %v2556 = vrot.slane %v2554, 4
    %v2558 = vadd.f32 %v2299, %v2556
    %v2559 = vrot.slane %v2447, 7
    %v2561 = vmul.f32 %v2123, %v2559
    %v2562 = vadd.f32 %v2303, %v2561
    %v2563 = vrot.slane %v2455, 7
    %v2565 = vmul.f32 %v2114, %v2563
    %v2567 = vrot.slane %v2565, 4
    %v2569 = vadd.f32 %v2307, %v2567
    %v2570 = vmul.f32 %v2123, %v2411
    %v2572 = vrot.slane %v2570, 1
    %v2574 = vadd.f32 %v2540, %v2572
    %v2575 = vmul.f32 %v2114, %v2419
    %v2577 = vrot.slane %v2575, 5
    %v2579 = vadd.f32 %v2547, %v2577
    %v2580 = vrot.slane %v2437, 3
    %v2582 = vmul.f32 %v2123, %v2580
    %v2584 = vrot.slane %v2582, 1
    %v2586 = vadd.f32 %v2551, %v2584
    %v2587 = vrot.slane %v2439, 3
    %v2589 = vmul.f32 %v2114, %v2587
    %v2591 = vrot.slane %v2589, 5
    %v2593 = vadd.f32 %v2558, %v2591
    %v2595 = vrot.slane %v2472, 1
    %v2597 = vadd.f32 %v2562, %v2595
    %v2598 = vrot.slane %v2477, 5
    %v2600 = vadd.f32 %v2569, %v2598
    %v2601 = vrot.slane %v70, 2
    %v2603 = vmul.f32 %v66, %v2601
    %v2605 = vrot.slane %v2603, 1
    %v2607 = vadd.f32 %v2603, %v2605
    %v2608 = vrot.slane %v2603, 2
    %v2610 = vadd.f32 %v2607, %v2608
    %v2611 = vrot.slane %v102, 2
    %v2613 = vmul.f32 %v66, %v2611
    %v2615 = vrot.slane %v2613, 1
    %v2617 = vadd.f32 %v2613, %v2615
    %v2618 = vrot.slane %v2613, 2
    %v2620 = vadd.f32 %v2617, %v2618
    %v2621 = vmul.f32 %v66, %v2194
    %v2623 = vrot.slane %v2621, 1
    %v2625 = vadd.f32 %v2621, %v2623
    %v2626 = vrot.slane %v2621, 2
    %v2628 = vadd.f32 %v2625, %v2626
    %v2629 = vmul.f32 %v66, %v2197
    %v2631 = vrot.slane %v2629, 1
    %v2633 = vadd.f32 %v2629, %v2631
    %v2634 = vrot.slane %v2629, 2
    %v2636 = vadd.f32 %v2633, %v2634
    %v2637 = vmul.f32 %v66, %v2182
    %v2639 = vrot.slane %v2637, 1
    %v2641 = vadd.f32 %v2637, %v2639
    %v2642 = vrot.slane %v2637, 2
    %v2644 = vadd.f32 %v2641, %v2642
    %v2645 = vmul.f32 %v66, %v2185
    %v2647 = vrot.slane %v2645, 1
    %v2649 = vadd.f32 %v2645, %v2647
    %v2650 = vrot.slane %v2645, 2
    %v2652 = vadd.f32 %v2649, %v2650
    %v2653 = vrot.slane %v70, 4
    %v2655 = vmul.f32 %v66, %v2653
    %v2657 = vrot.slane %v2655, 1
    %v2659 = vadd.f32 %v2655, %v2657
    %v2660 = vmul.f32 %v67, %v2653
    %v2662 = vrot.slane %v2660, 2
    %v2664 = vadd.f32 %v2659, %v2662
    %v2665 = vrot.slane %v102, 4
    %v2667 = vmul.f32 %v66, %v2665
    %v2669 = vrot.slane %v2667, 1
    %v2671 = vadd.f32 %v2667, %v2669
    %v2672 = vmul.f32 %v67, %v2665
    %v2674 = vrot.slane %v2672, 2
    %v2676 = vadd.f32 %v2671, %v2674
    %v2677 = vmul.f32 %v67, %v2182
    %v2679 = vrot.slane %v2677, 2
    %v2681 = vadd.f32 %v2641, %v2679
    %v2682 = vmul.f32 %v67, %v2185
    %v2684 = vrot.slane %v2682, 2
    %v2686 = vadd.f32 %v2649, %v2684
    %v2687 = vmul.f32 %v2126, %v2610
    %v2689 = vrot.slane %v2687, 4
    %v2691 = vadd.f32 %v2502, %v2689
    %v2692 = vmul.f32 %v2117, %v2620
    %v2693 = vadd.f32 %v2510, %v2692
    %v2695 = vrot.slane %v2644, 3
    %v2697 = vmul.f32 %v2126, %v2695
    %v2699 = vrot.slane %v2697, 4
    %v2701 = vadd.f32 %v2518, %v2699
    %v2703 = vrot.slane %v2652, 3
    %v2705 = vmul.f32 %v2117, %v2703
    %v2706 = vadd.f32 %v2526, %v2705
    %v2708 = vrot.slane %v2664, 6
    %v2710 = vmul.f32 %v2126, %v2708
    %v2712 = vrot.slane %v2710, 4
    %v2714 = vadd.f32 %v2531, %v2712
    %v2716 = vrot.slane %v2676, 6
    %v2718 = vmul.f32 %v2117, %v2716
    %v2719 = vadd.f32 %v2536, %v2718
    %v2721 = vrot.slane %v2628, 7
    %v2723 = vmul.f32 %v2126, %v2721
    %v2725 = vrot.slane %v2723, 5
    %v2727 = vadd.f32 %v2691, %v2725
    %v2729 = vrot.slane %v2636, 7
    %v2731 = vmul.f32 %v2117, %v2729
    %v2733 = vrot.slane %v2731, 1
    %v2735 = vadd.f32 %v2693, %v2733
    %v2737 = vrot.slane %v2610, 2
    %v2739 = vmul.f32 %v2126, %v2737
    %v2741 = vrot.slane %v2739, 5
    %v2743 = vadd.f32 %v2701, %v2741
    %v2745 = vrot.slane %v2620, 2
    %v2747 = vmul.f32 %v2117, %v2745
    %v2749 = vrot.slane %v2747, 1
    %v2751 = vadd.f32 %v2706, %v2749
    %v2753 = vrot.slane %v2681, 5
    %v2755 = vmul.f32 %v2126, %v2753
    %v2757 = vrot.slane %v2755, 5
    %v2759 = vadd.f32 %v2714, %v2757
    %v2761 = vrot.slane %v2686, 5
    %v2763 = vmul.f32 %v2117, %v2761
    %v2765 = vrot.slane %v2763, 1
    %v2767 = vadd.f32 %v2719, %v2765
    %v2768 = vrot.slane %v2610, 6
    %v2770 = vmul.f32 %v2126, %v2768
    %v2772 = vrot.slane %v2770, 4
    %v2774 = vadd.f32 %v2574, %v2772
    %v2775 = vrot.slane %v2620, 6
    %v2777 = vmul.f32 %v2117, %v2775
    %v2778 = vadd.f32 %v2579, %v2777
    %v2779 = vrot.slane %v2644, 1
    %v2781 = vmul.f32 %v2126, %v2779
    %v2783 = vrot.slane %v2781, 4
    %v2785 = vadd.f32 %v2586, %v2783
    %v2786 = vrot.slane %v2652, 1
    %v2788 = vmul.f32 %v2117, %v2786
    %v2789 = vadd.f32 %v2593, %v2788
    %v2790 = vrot.slane %v2664, 4
    %v2792 = vmul.f32 %v2126, %v2790
    %v2794 = vrot.slane %v2792, 4
    %v2796 = vadd.f32 %v2597, %v2794
    %v2797 = vrot.slane %v2676, 4
    %v2799 = vmul.f32 %v2117, %v2797
    %v2800 = vadd.f32 %v2600, %v2799
    %v2801 = vrot.slane %v2628, 5
    %v2803 = vmul.f32 %v2126, %v2801
    %v2805 = vrot.slane %v2803, 5
    %v2807 = vadd.f32 %v2774, %v2805
    %v2808 = vrot.slane %v2636, 5
    %v2810 = vmul.f32 %v2117, %v2808
    %v2812 = vrot.slane %v2810, 1
    %v2814 = vadd.f32 %v2778, %v2812
    %v2815 = vrot.slane %v2687, 5
    %v2817 = vadd.f32 %v2785, %v2815
    %v2819 = vrot.slane %v2692, 1
    %v2821 = vadd.f32 %v2789, %v2819
    %v2822 = vrot.slane %v2681, 3
    %v2824 = vmul.f32 %v2126, %v2822
    %v2826 = vrot.slane %v2824, 5
    %v2828 = vadd.f32 %v2796, %v2826
    %v2829 = vrot.slane %v2686, 3
    %v2831 = vmul.f32 %v2117, %v2829
    %v2833 = vrot.slane %v2831, 1
    %v2835 = vadd.f32 %v2800, %v2833
    %v2836 = vmul.f32 %v67, %v2131
    %v2838 = vrot.slane %v2836, 1
    %v2840 = vadd.f32 %v2836, %v2838
    %v2841 = vrot.slane %v2836, 2
    %v2843 = vadd.f32 %v2840, %v2841
    %v2844 = vmul.f32 %v67, %v2135
    %v2846 = vrot.slane %v2844, 1
    %v2848 = vadd.f32 %v2844, %v2846
    %v2849 = vrot.slane %v2844, 2
    %v2851 = vadd.f32 %v2848, %v2849
    %v2852 = vrot.slane %v2660, 1
    %v2854 = vadd.f32 %v2660, %v2852
    %v2855 = vadd.f32 %v2854, %v2662
    %v2856 = vrot.slane %v2672, 1
    %v2858 = vadd.f32 %v2672, %v2856
    %v2859 = vadd.f32 %v2858, %v2674
    %v2860 = vmul.f32 %v67, %v2188
    %v2862 = vrot.slane %v2860, 1
    %v2864 = vadd.f32 %v2860, %v2862
    %v2865 = vrot.slane %v2860, 2
    %v2867 = vadd.f32 %v2864, %v2865
    %v2868 = vmul.f32 %v67, %v2191
    %v2870 = vrot.slane %v2868, 1
    %v2872 = vadd.f32 %v2868, %v2870
    %v2873 = vrot.slane %v2868, 2
    %v2875 = vadd.f32 %v2872, %v2873
    %v2876 = vmul.f32 %v67, %v2382
    %v2877 = vmul.f32 %v68, %v2382
    %v2879 = vrot.slane %v2877, 1
    %v2881 = vadd.f32 %v2876, %v2879
    %v2882 = vrot.slane %v2877, 2
    %v2884 = vadd.f32 %v2881, %v2882
    %v2885 = vmul.f32 %v67, %v2393
    %v2886 = vmul.f32 %v68, %v2393
    %v2888 = vrot.slane %v2886, 1
    %v2890 = vadd.f32 %v2885, %v2888
    %v2891 = vrot.slane %v2886, 2
    %v2893 = vadd.f32 %v2890, %v2891
    %v2894 = vmul.f32 %v68, %v2188
    %v2896 = vrot.slane %v2894, 1
    %v2898 = vadd.f32 %v2860, %v2896
    %v2899 = vrot.slane %v2894, 2
    %v2901 = vadd.f32 %v2898, %v2899
    %v2902 = vmul.f32 %v68, %v2191
    %v2904 = vrot.slane %v2902, 1
    %v2906 = vadd.f32 %v2868, %v2904
    %v2907 = vrot.slane %v2902, 2
    %v2909 = vadd.f32 %v2906, %v2907
    %v2911 = vrot.slane %v2843, 5
    %v2913 = vmul.f32 %v2126, %v2911
    %v2914 = vadd.f32 %v2727, %v2913
    %v2916 = vrot.slane %v2851, 5
    %v2918 = vmul.f32 %v2117, %v2916
    %v2920 = vrot.slane %v2918, 4
    %v2922 = vadd.f32 %v2735, %v2920
    %v2923 = vmul.f32 %v2126, %v2867
    %v2924 = vadd.f32 %v2743, %v2923
    %v2925 = vmul.f32 %v2117, %v2875
    %v2927 = vrot.slane %v2925, 4
    %v2929 = vadd.f32 %v2751, %v2927
    %v2931 = vrot.slane %v2884, 3
    %v2933 = vmul.f32 %v2126, %v2931
    %v2934 = vadd.f32 %v2759, %v2933
    %v2936 = vrot.slane %v2893, 3
    %v2938 = vmul.f32 %v2117, %v2936
    %v2940 = vrot.slane %v2938, 4
    %v2942 = vadd.f32 %v2767, %v2940
    %v2944 = vrot.slane %v2855, 4
    %v2946 = vmul.f32 %v2126, %v2944
    %v2948 = vrot.slane %v2946, 1
    %v2950 = vadd.f32 %v2914, %v2948
    %v2952 = vrot.slane %v2859, 4
    %v2954 = vmul.f32 %v2117, %v2952
    %v2956 = vrot.slane %v2954, 5
    %v2958 = vadd.f32 %v2922, %v2956
    %v2959 = vrot.slane %v2843, 7
    %v2961 = vmul.f32 %v2126, %v2959
    %v2963 = vrot.slane %v2961, 1
    %v2965 = vadd.f32 %v2924, %v2963
    %v2966 = vrot.slane %v2851, 7
    %v2968 = vmul.f32 %v2117, %v2966
    %v2970 = vrot.slane %v2968, 5
    %v2972 = vadd.f32 %v2929, %v2970
    %v2974 = vrot.slane %v2901, 2
    %v2976 = vmul.f32 %v2126, %v2974
    %v2978 = vrot.slane %v2976, 1
    %v2980 = vadd.f32 %v2934, %v2978
    %v2982 = vrot.slane %v2909, 2
    %v2984 = vmul.f32 %v2117, %v2982
    %v2986 = vrot.slane %v2984, 5
    %v2988 = vadd.f32 %v2942, %v2986
    %v2989 = vrot.slane %v2843, 3
    %v2991 = vmul.f32 %v2126, %v2989
    %v2992 = vadd.f32 %v2807, %v2991
    %v2993 = vrot.slane %v2851, 3
    %v2995 = vmul.f32 %v2117, %v2993
    %v2997 = vrot.slane %v2995, 4
    %v2999 = vadd.f32 %v2814, %v2997
    %v3001 = vrot.slane %v2867, 6
    %v3003 = vmul.f32 %v2126, %v3001
    %v3004 = vadd.f32 %v2817, %v3003
    %v3006 = vrot.slane %v2875, 6
    %v3008 = vmul.f32 %v2117, %v3006
    %v3010 = vrot.slane %v3008, 4
    %v3012 = vadd.f32 %v2821, %v3010
    %v3013 = vrot.slane %v2884, 1
    %v3015 = vmul.f32 %v2126, %v3013
    %v3016 = vadd.f32 %v2828, %v3015
    %v3017 = vrot.slane %v2893, 1
    %v3019 = vmul.f32 %v2117, %v3017
    %v3021 = vrot.slane %v3019, 4
    %v3023 = vadd.f32 %v2835, %v3021
    %v3024 = vrot.slane %v2855, 2
    %v3026 = vmul.f32 %v2126, %v3024
    %v3028 = vrot.slane %v3026, 1
    %v3030 = vadd.f32 %v2992, %v3028
    %v3031 = vrot.slane %v2859, 2
    %v3033 = vmul.f32 %v2117, %v3031
    %v3035 = vrot.slane %v3033, 5
    %v3037 = vadd.f32 %v2999, %v3035
    %v3039 = vrot.slane %v2913, 1
    %v3041 = vadd.f32 %v3004, %v3039
    %v3042 = vrot.slane %v2918, 5
    %v3044 = vadd.f32 %v3012, %v3042
    %v3045 = vmul.f32 %v2126, %v2901
    %v3047 = vrot.slane %v3045, 1
    %v3049 = vadd.f32 %v3016, %v3047
    %v3050 = vmul.f32 %v2117, %v2909
    %v3052 = vrot.slane %v3050, 5
    %v3054 = vadd.f32 %v3023, %v3052
    %v3056 = vrot.slane %v2381, 1
    %v3059 = vrot.slane %v2958, 6
    %v3062 = vrot.slane %v2972, 5
    %v3065 = vrot.slane %v2988, 4
    %v3068 = vrot.slane %v3037, 5
    %v3071 = vrot.slane %v3044, 4
    %v3074 = vrot.slane %v3054, 3
    %vm3076 = vcmask 1040384
    %v3077 = vsel %vm3076, %v2355, %v3056
    %vm3078 = vcmask 1041408
    %v3079 = vsel %vm3078, %v3077, %v3059
    %vm3080 = vcmask 1042432
    %v3081 = vsel %vm3080, %v3079, %v3062
    %vm3082 = vcmask 1043456
    %v3083 = vsel %vm3082, %v3081, %v3065
    %vm3084 = vcmask 1044480
    %v3085 = vsel %vm3084, %v3083, %v3068
    %vm3086 = vcmask 1045504
    %v3087 = vsel %vm3086, %v3085, %v3071
    %vm3088 = vcmask 1046528
    %v3089 = vsel %vm3088, %v3087, %v3074
    %v3090 = vmul.f32 %v149, %v3089
    %v3092 = vsel %vm80, 1.0, 0
    %3094 = vmatpush.msra.mxu0 0.0
    %3095 = vmatpush.msra.mxu0 0.0
    %3096 = vmatpush.msra.mxu0 0.0
    %3097 = vmatpush.msra.mxu0 0.0
    %3098 = vmatpush.msra.mxu0 0.0
    %3099 = vmatpush.msra.mxu0 0.0
    %3100 = vmatpush.msra.mxu0 0.0
    %3101 = vmatpush.msra.mxu0 0.0
    %3102 = vmatpush.msra.mxu0 0.0
    %3103 = vmatpush.msra.mxu0 0.0
    %3104 = vmatpush.msra.mxu0 0.0
    %3105 = vmatpush.msra.mxu0 0.0
    %3106 = vmatpush.msra.mxu0 0.0
    %3107 = vmatpush.msra.mxu0 0.0
    %3108 = vmatpush.msra.mxu0 0.0
    %3109 = vmatpush.msra.mxu0 %v3090
    %3110 = vmatmul.f32.gmra.mxu0 %v3092
    %v3111 = vpop.f32.mrf.mxu0
    %v3112 = vadd.f32 0.0, %v3111
    %3113 = vdwg.mxu0
    %vm3114 = vcmask 57344
    %v3115 = vsel %vm3114, %v3112, -inf
    %3116 = vmax.xlane.f32.xlu0 %v3115
    %v3117 = vpop.xlane.xlu0 %3116
    %vm3118 = vcmask 122944
    %v3119 = vsel %vm3118, %v3112, -inf
    %3120 = vmax.xlane.f32.xlu0 %v3119
    %v3121 = vpop.xlane.xlu0 %3120
    %vm3122 = vcmask 188544
    %v3123 = vsel %vm3122, %v3112, -inf
    %3124 = vmax.xlane.f32.xlu0 %v3123
    %v3125 = vpop.xlane.xlu0 %3124
    %vm3126 = vcmask 254144
    %v3127 = vsel %vm3126, %v3112, -inf
    %3128 = vmax.xlane.f32.xlu0 %v3127
    %v3129 = vpop.xlane.xlu0 %3128
    %vm3130 = vcmask 319744
    %v3131 = vsel %vm3130, %v3112, -inf
    %3132 = vmax.xlane.f32.xlu0 %v3131
    %v3133 = vpop.xlane.xlu0 %3132
    %vm3134 = vcmask 385344
    %v3135 = vsel %vm3134, %v3112, -inf
    %3136 = vmax.xlane.f32.xlu0 %v3135
    %v3137 = vpop.xlane.xlu0 %3136
    %vm3138 = vcmask 450944
    %v3139 = vsel %vm3138, %v3112, -inf
    %3140 = vmax.xlane.f32.xlu0 %v3139
    %v3141 = vpop.xlane.xlu0 %3140
    %vm3142 = vcmask 516544
    %v3143 = vsel %vm3142, %v3112, -inf
    %3144 = vmax.xlane.f32.xlu0 %v3143
    %v3145 = vpop.xlane.xlu0 %3144
    %vm3146 = vcmask 7168
    %v3147 = vsel %vm3146, %v3117, %v3121
    %vm3148 = vcmask 15360
    %v3149 = vsel %vm3148, %v3147, %v3125
    %vm3150 = vcmask 23552
    %v3151 = vsel %vm3150, %v3149, %v3129
    %vm3152 = vcmask 31744
    %v3153 = vsel %vm3152, %v3151, %v3133
    %vm3154 = vcmask 39936
    %v3155 = vsel %vm3154, %v3153, %v3137
    %vm3156 = vcmask 48128
    %v3157 = vsel %vm3156, %v3155, %v3141
    %vm3158 = vcmask 56320
    %v3159 = vsel %vm3158, %v3157, %v3145
    %v3161 = vsel %vm80, %v3159, 0
    %3163 = vmatpush.msra.mxu0 0.0
    %3164 = vmatpush.msra.mxu0 0.0
    %3165 = vmatpush.msra.mxu0 0.0
    %3166 = vmatpush.msra.mxu0 0.0
    %3167 = vmatpush.msra.mxu0 0.0
    %3168 = vmatpush.msra.mxu0 0.0
    %3169 = vmatpush.msra.mxu0 0.0
    %3170 = vmatpush.msra.mxu0 0.0
    %3171 = vmatpush.msra.mxu0 0.0
    %3172 = vmatpush.msra.mxu0 0.0
    %3173 = vmatpush.msra.mxu0 0.0
    %3174 = vmatpush.msra.mxu0 0.0
    %3175 = vmatpush.msra.mxu0 0.0
    %3176 = vmatpush.msra.mxu0 0.0
    %3177 = vmatpush.msra.mxu0 0.0
    %3178 = vmatpush.msra.mxu0 %v71
    %3179 = vmatmul.f32.gmra.mxu0 %v3161
    %v3180 = vpop.f32.mrf.mxu0
    %v3181 = vadd.f32 0.0, %v3180
    %3182 = vdwg.mxu0
    %v3183 = vsub.f32 %v3112, %v3181
    %v3184 = vmul.f32 %v3183, 1.442695
    %v3185 = vpow.pop %v3184
    %vm3186 = vcmask 523264
    %v3188 = vsel %vm3186, %v3185, 0
    %3190 = vmatpush.msra.mxu0 0.0
    %3191 = vmatpush.msra.mxu0 0.0
    %3192 = vmatpush.msra.mxu0 0.0
    %3193 = vmatpush.msra.mxu0 0.0
    %3194 = vmatpush.msra.mxu0 0.0
    %3195 = vmatpush.msra.mxu0 0.0
    %3196 = vmatpush.msra.mxu0 0.0
    %3197 = vmatpush.msra.mxu0 0.0
    %3198 = vmatpush.msra.mxu0 %v79
    %3199 = vmatpush.msra.mxu0 %v78
    %3200 = vmatpush.msra.mxu0 %v77
    %3201 = vmatpush.msra.mxu0 %v76
    %3202 = vmatpush.msra.mxu0 %v75
    %3203 = vmatpush.msra.mxu0 %v74
    %3204 = vmatpush.msra.mxu0 %v73
    %3205 = vmatpush.msra.mxu0 %v72
    %3206 = vmatmul.f32.gmra.mxu0 %v3188
    %v3207 = vpop.f32.mrf.mxu0
    %v3208 = vadd.f32 0.0, %v3207
    %3209 = vdwg.mxu0
    %v3210 = vrcp.pop %v3208
    %v3211 = vmul.f32 %v3208, %v3210
    %v3212 = vsub.f32 2.0, %v3211
    %v3213 = vmul.f32 %v3210, %v3212
    %v3215 = vsel %vm80, %v3213, 0
    %3217 = vmatpush.msra.mxu0 0.0
    %3218 = vmatpush.msra.mxu0 0.0
    %3219 = vmatpush.msra.mxu0 0.0
    %3220 = vmatpush.msra.mxu0 0.0
    %3221 = vmatpush.msra.mxu0 0.0
    %3222 = vmatpush.msra.mxu0 0.0
    %3223 = vmatpush.msra.mxu0 0.0
    %3224 = vmatpush.msra.mxu0 0.0
    %3225 = vmatpush.msra.mxu0 0.0
    %3226 = vmatpush.msra.mxu0 0.0
    %3227 = vmatpush.msra.mxu0 0.0
    %3228 = vmatpush.msra.mxu0 0.0
    %3229 = vmatpush.msra.mxu0 0.0
    %3230 = vmatpush.msra.mxu0 0.0
    %3231 = vmatpush.msra.mxu0 0.0
    %3232 = vmatpush.msra.mxu0 %v71
    %3233 = vmatmul.f32.gmra.mxu0 %v3215
    %v3234 = vpop.f32.mrf.mxu0
    %v3235 = vadd.f32 0.0, %v3234
    %3236 = vdwg.mxu0
    %v3237 = vmul.f32 %v3185, %v3235
    %v3239 = vrot.slane %v2374, 1
    %v3242 = vrot.slane %v2950, 2
    %v3245 = vrot.slane %v2965, 1
    %v3248 = vrot.slane %v3030, 1
    %v3251 = vrot.slane %v3049, 7
    %v3253 = vsel %vm3076, %v2347, %v3239
    %v3254 = vsel %vm3078, %v3253, %v3242
    %v3255 = vsel %vm3080, %v3254, %v3245
    %v3256 = vsel %vm3082, %v3255, %v2980
    %v3257 = vsel %vm3084, %v3256, %v3248
    %v3258 = vsel %vm3086, %v3257, %v3041
    %v3259 = vsel %vm3088, %v3258, %v3251
    %v3260 = vperm.slane %v3237, 0
    %v3261 = vmul.f32 %v3259, %v3260
    %v3263 = vsel %vm3186, %v3261, 0
    %3265 = vmatpush.msra.mxu0 0.0
    %3266 = vmatpush.msra.mxu0 0.0
    %3267 = vmatpush.msra.mxu0 0.0
    %3268 = vmatpush.msra.mxu0 0.0
    %3269 = vmatpush.msra.mxu0 0.0
    %3270 = vmatpush.msra.mxu0 0.0
    %3271 = vmatpush.msra.mxu0 0.0
    %3272 = vmatpush.msra.mxu0 0.0
    %3273 = vmatpush.msra.mxu0 %v79
    %3274 = vmatpush.msra.mxu0 %v78
    %3275 = vmatpush.msra.mxu0 %v77
    %3276 = vmatpush.msra.mxu0 %v76
    %3277 = vmatpush.msra.mxu0 %v75
    %3278 = vmatpush.msra.mxu0 %v74
    %3279 = vmatpush.msra.mxu0 %v73
    %3280 = vmatpush.msra.mxu0 %v72
    %3281 = vmatmul.f32.gmra.mxu0 %v3263
    %v3282 = vpop.f32.mrf.mxu0
    %v3283 = vadd.f32 0.0, %v3282
    %3284 = vdwg.mxu0
    %3285 = vst.msk [vmem:[#allocation2] sm:$0xff] %vm80, %v3283
    // Predicated region
    $region78: #{tpu_custom_call.1} parent=1 // pred_check
      _
    $region79: #{tpu_custom_call.1} parent=1 // pred_check_branch
      %3287 = sbr.rel (0) target = $region81
    $region80: #{tpu_custom_call.1} parent=1 // pred_region
      %3289 = vsyncadd [#allocation3], 0
      %s3291 = sshll.u32 [#allocation2], 4
      %s3292 = int_to_ptr.vmem [resolvable:$true] %s3291
      %s3293 = sshll.u32 %s19, 4
      %s3294 = int_to_ptr.hbm [resolvable:$true] %s3293
      %3296 = dma.vmem_to_hbm [thread:$0]  %s3292, 128, %s3294, [#allocation3]
    $region81: #{tpu_custom_call.1} parent=1 // pred_fallthru
      _
    // Predicated region
    $region82: #{tpu_custom_call.1} parent=1 // pred_check
      _
    $region83: #{tpu_custom_call.1} parent=1 // pred_check_branch
      %3298 = sbr.rel (0) target = $region85
    $region84: #{tpu_custom_call.1} parent=1 // pred_region
      %3300 = dma.done [#allocation3], 128
    $region85: #{tpu_custom_call.1} parent=1 // pred_fallthru
      _
    %3301 = vsyncpa [#allocation3], 1

</llo_original>
